<compile_context>
chip_gen: v5e
topology: v5e:2x2
jax: 0.10.0
libtpu: 0.0.40
codegen_flags: <defaults>
</compile_context>

<pallas_src>
import functools

import jax
import jax.numpy as jnp
from jax import lax
from jax.experimental import pallas as pl
from jax.experimental.pallas import tpu as pltpu

EPS = 1e-5      # nn.BatchNorm2d default eps
LANE = 128      # pad every channel axis to a multiple of the TPU lane width


def _round_up(v, m):
    return (v + m - 1) // m * m


def _row_tile(p):
    """Largest row tile <= 256 that divides p (>=2 grid steps for the demo)."""
    for t in (256, 128, 64, 32, 16, 8):
        if p % t == 0:
            return t
    return p


def _pad1d(v, target):
    v = v.astype(jnp.float32)
    return jnp.pad(v, (0, target - v.shape[0]))


def _fold_bn(s, sq, count, gamma, beta):
    """Fold (sum, sumsq over `count` positions) + BN affine into scale/shift."""
    mean = s / count
    var = jnp.maximum(sq / count - mean * mean, 0.0)
    scale = gamma * lax.rsqrt(var + EPS)
    shift = beta - mean * scale
    return scale.reshape(1, -1), shift.reshape(1, -1)


# ------------------------------ kernel bodies --------------------------------
def _bn_stats_kernel(x_ref, p_ref):
    """Per-tile (sum, sum-of-squares) over the rows of a (TP, C) block."""
    xb = x_ref[...]
    s = jnp.sum(xb, axis=0, keepdims=True)
    sq = jnp.sum(xb * xb, axis=0, keepdims=True)
    p_ref[...] = jnp.concatenate([s, sq], axis=0).reshape(1, 2, xb.shape[1])


def _conv3x3_kernel(x_ref, scale_ref, shift_ref, w_ref, bias_ref,
                    y_ref, pstat_ref, *, H, W, Cin, Cmid):
    """relu(bn1_affine(x)) -> 3x3 conv (im2col, single bf16 MXU matmul) + bias,
    with fused per-channel partial (sum, sumsq) of the result for bn2."""
    x = x_ref[0]                                                  # (H, W, Cin)
    a = jnp.maximum(x * scale_ref[...] + shift_ref[...], 0.0)     # bn1 + ReLU
    # conv1's padding=1 pads the post-ReLU activation with zeros: do it in VMEM.
    zr = jnp.zeros((1, W, Cin), jnp.float32)
    a = jnp.concatenate([zr, a, zr], axis=0)                      # (H+2, W, Cin)
    zc = jnp.zeros((H + 2, 1, Cin), jnp.float32)
    a = jnp.concatenate([zc, a, zc], axis=1)                      # (H+2, W+2, Cin)
    # im2col: stack the 9 taps along K -> one matmul with K = 9*Cin.
    cols = jnp.concatenate(
        [a[ky:ky + H, kx:kx + W, :] for ky in range(3) for kx in range(3)],
        axis=-1).reshape(H * W, 9 * Cin)
    y = jnp.dot(cols.astype(jnp.bfloat16), w_ref[...],
                preferred_element_type=jnp.float32)               # (H*W, Cmid)
    y = y + bias_ref[...]
    y_ref[...] = y.reshape(1, H, W, Cmid)
    pstat_ref[...] = jnp.concatenate(
        [jnp.sum(y, axis=0, keepdims=True),
         jnp.sum(y * y, axis=0, keepdims=True)], axis=0).reshape(1, 2, Cmid)


def _conv1x1_kernel(y_ref, scale_ref, shift_ref, w_ref, bias_ref, o_ref):
    """relu(bn2_affine(y)) -> 1x1 conv (bf16 MXU matmul) + bias."""
    a = jnp.maximum(y_ref[...] * scale_ref[...] + shift_ref[...], 0.0)
    o_ref[...] = jnp.dot(a.astype(jnp.bfloat16), w_ref[...],
                         preferred_element_type=jnp.float32) + bias_ref[...]


# --------------------------------- wrapper ------------------------------------
@jax.jit
def seg_head(x_nchw, bn1_g, bn1_b, conv1_w, conv1_b, bn2_g, bn2_b,
             conv2_w, conv2_b):
    N, Cin, H, W = x_nchw.shape
    Cmid = conv1_w.shape[0]
    Cout = conv2_w.shape[0]
    assert conv1_w.shape == (Cmid, Cin, 3, 3)
    assert conv2_w.shape == (Cout, Cmid, 1, 1)

    cin_p, cmid_p, cout_p = (_round_up(c, LANE) for c in (Cin, Cmid, Cout))
    P = N * H * W
    TP = _row_tile(P)
    ntiles = P // TP
    f32 = jnp.float32

    parallel = lambda n: pltpu.CompilerParams(
        dimension_semantics=("parallel",) * n)

    # NCHW -> lane-dense NHWC, channels zero-padded to a multiple of 128.
    # TODO(synk): in a full network keep NHWC end-to-end instead of transposing
    # per layer.
    x = jnp.transpose(x_nchw, (0, 2, 3, 1)).astype(f32)
    x = jnp.pad(x, ((0, 0), (0, 0), (0, 0), (0, cin_p - Cin)))

    # ---- phase 1: bn1 batch statistics (per-tile partials, O(C) fold) ----
    part1 = pl.pallas_call(
        _bn_stats_kernel,
        out_shape=jax.ShapeDtypeStruct((ntiles, 2, cin_p), f32),
        grid=(ntiles,),
        in_specs=[pl.BlockSpec((TP, cin_p), lambda i: (i, 0))],
        out_specs=pl.BlockSpec((1, 2, cin_p), lambda i: (i, 0, 0)),
        compiler_params=parallel(1),
    )(x.reshape(P, cin_p))
    stats1 = jnp.sum(part1, axis=0)
    scale1, shift1 = _fold_bn(stats1[0], stats1[1], P,
                              _pad1d(bn1_g, cin_p), _pad1d(bn1_b, cin_p))

    # ---- phase 2: fused bn1-affine + ReLU + 3x3 conv (+ bn2 partial stats) ----
    w1 = jnp.transpose(conv1_w, (2, 3, 1, 0)).astype(f32)        # (3,3,Cin,Cmid)
    w1 = jnp.pad(w1, ((0, 0), (0, 0), (0, cin_p - Cin), (0, cmid_p - Cmid)))
    w1 = w1.reshape(9 * cin_p, cmid_p).astype(jnp.bfloat16)
    bias1 = _pad1d(conv1_b, cmid_p).reshape(1, cmid_p)

    # TODO(synk): for large H*W, tile spatially with a manual halo DMA
    # (pl.ANY + pltpu.make_async_copy) instead of one full image per grid step.
    y, part2 = pl.pallas_call(
        functools.partial(_conv3x3_kernel, H=H, W=W, Cin=cin_p, Cmid=cmid_p),
        out_shape=(jax.ShapeDtypeStruct((N, H, W, cmid_p), f32),
                   jax.ShapeDtypeStruct((N, 2, cmid_p), f32)),
        grid=(N,),
        in_specs=[pl.BlockSpec((1, H, W, cin_p), lambda n: (n, 0, 0, 0)),
                  pl.BlockSpec((1, cin_p), lambda n: (0, 0)),
                  pl.BlockSpec((1, cin_p), lambda n: (0, 0)),
                  pl.BlockSpec((9 * cin_p, cmid_p), lambda n: (0, 0)),
                  pl.BlockSpec((1, cmid_p), lambda n: (0, 0))],
        out_specs=(pl.BlockSpec((1, H, W, cmid_p), lambda n: (n, 0, 0, 0)),
                   pl.BlockSpec((1, 2, cmid_p), lambda n: (n, 0, 0))),
        compiler_params=parallel(1),
    )(x, scale1, shift1, w1, bias1)

    stats2 = jnp.sum(part2, axis=0)
    scale2, shift2 = _fold_bn(stats2[0], stats2[1], P,
                              _pad1d(bn2_g, cmid_p), _pad1d(bn2_b, cmid_p))

    # ---- phase 3: fused bn2-affine + ReLU + 1x1 conv ----
    w2 = jnp.transpose(conv2_w.reshape(Cout, Cmid), (1, 0)).astype(f32)
    w2 = jnp.pad(w2, ((0, cmid_p - Cmid), (0, cout_p - Cout))).astype(jnp.bfloat16)
    bias2 = _pad1d(conv2_b, cout_p).reshape(1, cout_p)

    out2d = pl.pallas_call(
        _conv1x1_kernel,
        out_shape=jax.ShapeDtypeStruct((P, cout_p), f32),
        grid=(ntiles,),
        in_specs=[pl.BlockSpec((TP, cmid_p), lambda i: (i, 0)),
                  pl.BlockSpec((1, cmid_p), lambda i: (0, 0)),
                  pl.BlockSpec((1, cmid_p), lambda i: (0, 0)),
                  pl.BlockSpec((cmid_p, cout_p), lambda i: (0, 0)),
                  pl.BlockSpec((1, cout_p), lambda i: (0, 0))],
        out_specs=pl.BlockSpec((TP, cout_p), lambda i: (i, 0)),
        compiler_params=parallel(1),
    )(y.reshape(P, cmid_p), scale2, shift2, w2, bias2)

    out = out2d.reshape(N, H, W, cout_p)[..., :Cout]
    return jnp.transpose(out, (0, 3, 1, 2))                       # back to NCHW


# ---------------------------- pure-JAX reference ------------------------------
def _conv_ref(x_nhwc, w_oihw, bias, padding):
    w_hwio = jnp.transpose(w_oihw, (2, 3, 1, 0)).astype(jnp.float32)
    y = lax.conv_general_dilated(
        x_nhwc, w_hwio, window_strides=(1, 1),
        padding=((padding, padding), (padding, padding)),
        dimension_numbers=('NHWC', 'HWIO', 'NHWC'),
        precision=lax.Precision.HIGHEST)
    return y + bias.reshape(1, 1, 1, -1)


def _bn_relu_ref(x_nhwc, g, b):
    m = jnp.mean(x_nhwc, axis=(0, 1, 2), keepdims=True)
    v = jnp.mean((x_nhwc - m) ** 2, axis=(0, 1, 2), keepdims=True)
    xn = (x_nhwc - m) * lax.rsqrt(v + EPS)
    return jnp.maximum(xn * g.reshape(1, 1, 1, -1) + b.reshape(1, 1, 1, -1), 0.0)


def seg_head_ref(x_nchw, bn1_g, bn1_b, conv1_w, conv1_b, bn2_g, bn2_b,
                 conv2_w, conv2_b):
    x = jnp.transpose(x_nchw, (0, 2, 3, 1)).astype(jnp.float32)
    h = _conv_ref(_bn_relu_ref(x, bn1_g, bn1_b), conv1_w, conv1_b, 1)
    out = _conv_ref(_bn_relu_ref(h, bn2_g, bn2_b), conv2_w, conv2_b, 0)
    return jnp.transpose(out, (0, 3, 1, 2))


if __name__ == "__main__":
    # SegHead(in_channels=32, inter_channels=64, out_channels=16), N=2, 16x16.
    N, Cin, Cmid, Cout, H, W = 2, 32, 64, 16, 16, 16
    ks = jax.random.split(jax.random.PRNGKey(0), 9)
    x = jax.random.normal(ks[0], (N, Cin, H, W), jnp.float32)
    bn1_g = 1.0 + 0.1 * jax.random.normal(ks[1], (Cin,), jnp.float32)
    bn1_b = 0.1 * jax.random.normal(ks[2], (Cin,), jnp.float32)
    conv1_w = 0.05 * jax.random.normal(ks[3], (Cmid, Cin, 3, 3), jnp.float32)
    conv1_b = 0.1 * jax.random.normal(ks[4], (Cmid,), jnp.float32)
    bn2_g = 1.0 + 0.1 * jax.random.normal(ks[5], (Cmid,), jnp.float32)
    bn2_b = 0.1 * jax.random.normal(ks[6], (Cmid,), jnp.float32)
    conv2_w = 0.1 * jax.random.normal(ks[7], (Cout, Cmid, 1, 1), jnp.float32)
    conv2_b = 0.1 * jax.random.normal(ks[8], (Cout,), jnp.float32)

    args = (x, bn1_g, bn1_b, conv1_w, conv1_b, bn2_g, bn2_b, conv2_w, conv2_b)
    out = jax.block_until_ready(seg_head(*args))
    ref = jax.block_until_ready(seg_head_ref(*args))

    assert out.shape == (N, Cout, H, W)
    # Tolerance accounts for bf16 MXU inputs (f32 accumulation) vs f32 reference.
    assert jnp.allclose(out, ref, atol=3e-2, rtol=3e-2), \
        float(jnp.max(jnp.abs(out - ref)))
    print("KERNEL_OK")
</pallas_src>

<mosaic_0001>
module attributes {stable_mosaic.version = 11 : i64} {
  func.func @_bn_stats_kernel(%arg0: i32, %arg1: memref<256x128xf32, #tpu.memory_space<vmem>>, %arg2: memref<1x2x128xf32, #tpu.memory_space<vmem>>) attributes {dimension_semantics = [#tpu.dimension_semantics<parallel>], iteration_bounds = array<i64: 2>, scalar_prefetch = 0 : i64, scratch_operands = 0 : i64, tpu.core_type = #tpu.core_type<tc>, window_params = [{transform_indices = @transform_0, window_bounds = array<i64: 256, 128>}, {transform_indices = @transform_1, window_bounds = array<i64: 1, 2, 128>}]} {
    %c0 = arith.constant 0 : index
    %c0_0 = arith.constant 0 : index
    %0 = vector.load %arg1[%c0, %c0_0] : memref<256x128xf32, #tpu.memory_space<vmem>>, vector<256x128xf32>
    %cst = arith.constant dense<0.000000e+00> : vector<128xf32>
    %1 = vector.multi_reduction <add>, %0, %cst [0] : vector<256x128xf32> to vector<128xf32>
    %2 = vector.shape_cast %1 : vector<128xf32> to vector<1x128xf32>
    %3 = arith.mulf %0, %0 : vector<256x128xf32>
    %cst_1 = arith.constant dense<0.000000e+00> : vector<128xf32>
    %4 = vector.multi_reduction <add>, %3, %cst_1 [0] : vector<256x128xf32> to vector<128xf32>
    %5 = vector.shape_cast %4 : vector<128xf32> to vector<1x128xf32>
    %6 = tpu.concatenate %2, %5 in 0 : vector<1x128xf32>, vector<1x128xf32> -> vector<2x128xf32>
    %7 = vector.shape_cast %6 : vector<2x128xf32> to vector<1x2x128xf32>
    %c0_2 = arith.constant 0 : index
    %c0_3 = arith.constant 0 : index
    %c0_4 = arith.constant 0 : index
    %8 = vector.load %arg2[%c0_2, %c0_3, %c0_4] : memref<1x2x128xf32, #tpu.memory_space<vmem>>, vector<1x2x128xf32>
    tpu.vector_store %arg2[%c0_2, %c0_3, %c0_4], %7 {strides = array<i32>} : memref<1x2x128xf32, #tpu.memory_space<vmem>>, vector<1x2x128xf32>,
    return
  }
  func.func @transform_0(%arg0: i32) -> (i32, i32) {
    %c0_i32 = arith.constant 0 : i32
    %c0_i32_0 = arith.constant 0 : i32
    return %arg0, %c0_i32 : i32, i32
  }
  func.func @transform_1(%arg0: i32) -> (i32, i32, i32) {
    %c0_i32 = arith.constant 0 : i32
    %c0_i32_0 = arith.constant 0 : i32
    %c0_i32_1 = arith.constant 0 : i32
    return %arg0, %c0_i32, %c0_i32_0 : i32, i32, i32
  }
}

module attributes {stable_mosaic.version = 11 : i64} {
  func.func @_conv3x3_kernel(%arg0: i32, %arg1: memref<1x16x16x128xf32, #tpu.memory_space<vmem>>, %arg2: memref<1x128xf32, #tpu.memory_space<vmem>>, %arg3: memref<1x128xf32, #tpu.memory_space<vmem>>, %arg4: memref<1152x128xbf16, #tpu.memory_space<vmem>>, %arg5: memref<1x128xf32, #tpu.memory_space<vmem>>, %arg6: memref<1x16x16x128xf32, #tpu.memory_space<vmem>>, %arg7: memref<1x2x128xf32, #tpu.memory_space<vmem>>) attributes {dimension_semantics = [#tpu.dimension_semantics<parallel>], iteration_bounds = array<i64: 2>, scalar_prefetch = 0 : i64, scratch_operands = 0 : i64, tpu.core_type = #tpu.core_type<tc>, window_params = [{transform_indices = @transform_0, window_bounds = array<i64: 1, 16, 16, 128>}, {pipeline_mode = #tpu.pipeline_mode<synchronous>, transform_indices = @transform_1, window_bounds = array<i64: 1, 128>}, {pipeline_mode = #tpu.pipeline_mode<synchronous>, transform_indices = @transform_2, window_bounds = array<i64: 1, 128>}, {pipeline_mode = #tpu.pipeline_mode<synchronous>, transform_indices = @transform_3, window_bounds = array<i64: 1152, 128>}, {pipeline_mode = #tpu.pipeline_mode<synchronous>, transform_indices = @transform_4, window_bounds = array<i64: 1, 128>}, {transform_indices = @transform_5, window_bounds = array<i64: 1, 16, 16, 128>}, {transform_indices = @transform_6, window_bounds = array<i64: 1, 2, 128>}]} {
    %c0 = arith.constant 0 : index
    %c0_0 = arith.constant 0 : index
    %c0_1 = arith.constant 0 : index
    %c0_2 = arith.constant 0 : index
    %0 = vector.load %arg1[%c0, %c0_0, %c0_1, %c0_2] : memref<1x16x16x128xf32, #tpu.memory_space<vmem>>, vector<1x16x16x128xf32>
    %1 = vector.shape_cast %0 : vector<1x16x16x128xf32> to vector<16x16x128xf32>
    %c0_3 = arith.constant 0 : index
    %c0_4 = arith.constant 0 : index
    %2 = vector.load %arg2[%c0_3, %c0_4] : memref<1x128xf32, #tpu.memory_space<vmem>>, vector<1x128xf32>
    %3 = vector.shape_cast %2 : vector<1x128xf32> to vector<1x1x128xf32>
    %4 = vector.broadcast %3 : vector<1x1x128xf32> to vector<16x16x128xf32>
    %5 = arith.mulf %1, %4 : vector<16x16x128xf32>
    %c0_5 = arith.constant 0 : index
    %c0_6 = arith.constant 0 : index
    %6 = vector.load %arg3[%c0_5, %c0_6] : memref<1x128xf32, #tpu.memory_space<vmem>>, vector<1x128xf32>
    %7 = vector.shape_cast %6 : vector<1x128xf32> to vector<1x1x128xf32>
    %8 = vector.broadcast %7 : vector<1x1x128xf32> to vector<16x16x128xf32>
    %9 = arith.addf %5, %8 : vector<16x16x128xf32>
    %cst = arith.constant 0.000000e+00 : f32
    %10 = vector.broadcast %cst : f32 to vector<16x16x128xf32>
    %11 = arith.maximumf %9, %10 : vector<16x16x128xf32>
    %cst_7 = arith.constant 0.000000e+00 : f32
    %12 = vector.broadcast %cst_7 : f32 to vector<1x16x128xf32>
    %13 = tpu.concatenate %12, %11, %12 in 0 : vector<1x16x128xf32>, vector<16x16x128xf32>, vector<1x16x128xf32> -> vector<18x16x128xf32>
    %cst_8 = arith.constant 0.000000e+00 : f32
    %14 = vector.broadcast %cst_8 : f32 to vector<18x1x128xf32>
    %15 = tpu.concatenate %14, %13, %14 in 1 : vector<18x1x128xf32>, vector<18x16x128xf32>, vector<18x1x128xf32> -> vector<18x18x128xf32>
    %16 = vector.extract_strided_slice %15 {offsets = [0, 0, 0], sizes = [16, 16, 128], strides = [1, 1, 1]} : vector<18x18x128xf32> to vector<16x16x128xf32>
    %17 = vector.extract_strided_slice %15 {offsets = [0, 1, 0], sizes = [16, 16, 128], strides = [1, 1, 1]} : vector<18x18x128xf32> to vector<16x16x128xf32>
    %18 = vector.extract_strided_slice %15 {offsets = [0, 2, 0], sizes = [16, 16, 128], strides = [1, 1, 1]} : vector<18x18x128xf32> to vector<16x16x128xf32>
    %19 = vector.extract_strided_slice %15 {offsets = [1, 0, 0], sizes = [16, 16, 128], strides = [1, 1, 1]} : vector<18x18x128xf32> to vector<16x16x128xf32>
    %20 = vector.extract_strided_slice %15 {offsets = [1, 1, 0], sizes = [16, 16, 128], strides = [1, 1, 1]} : vector<18x18x128xf32> to vector<16x16x128xf32>
    %21 = vector.extract_strided_slice %15 {offsets = [1, 2, 0], sizes = [16, 16, 128], strides = [1, 1, 1]} : vector<18x18x128xf32> to vector<16x16x128xf32>
    %22 = vector.extract_strided_slice %15 {offsets = [2, 0, 0], sizes = [16, 16, 128], strides = [1, 1, 1]} : vector<18x18x128xf32> to vector<16x16x128xf32>
    %23 = vector.extract_strided_slice %15 {offsets = [2, 1, 0], sizes = [16, 16, 128], strides = [1, 1, 1]} : vector<18x18x128xf32> to vector<16x16x128xf32>
    %24 = vector.extract_strided_slice %15 {offsets = [2, 2, 0], sizes = [16, 16, 128], strides = [1, 1, 1]} : vector<18x18x128xf32> to vector<16x16x128xf32>
    %25 = tpu.concatenate %16, %17, %18, %19, %20, %21, %22, %23, %24 in 2 : vector<16x16x128xf32>, vector<16x16x128xf32>, vector<16x16x128xf32>, vector<16x16x128xf32>, vector<16x16x128xf32>, vector<16x16x128xf32>, vector<16x16x128xf32>, vector<16x16x128xf32>, vector<16x16x128xf32> -> vector<16x16x1152xf32>
    %26 = vector.shape_cast %25 : vector<16x16x1152xf32> to vector<256x1152xf32>
    %27 = arith.truncf %26 : vector<256x1152xf32> to vector<256x1152xbf16>
    %c0_9 = arith.constant 0 : index
    %c0_10 = arith.constant 0 : index
    %28 = vector.load %arg4[%c0_9, %c0_10] : memref<1152x128xbf16, #tpu.memory_space<vmem>>, vector<1152x128xbf16>
    %cst_11 = arith.constant dense<0.000000e+00> : vector<256x128xf32>
    %29 = tpu.matmul %27, %28, %cst_11 {dimension_numbers = #tpu.dot_dimension_numbers<[1], [0], [0], [1], [0, 0, 1, 1], [], []>} : vector<256x1152xbf16>, vector<1152x128xbf16>, vector<256x128xf32> -> vector<256x128xf32>
    %c0_12 = arith.constant 0 : index
    %c0_13 = arith.constant 0 : index
    %30 = vector.load %arg5[%c0_12, %c0_13] : memref<1x128xf32, #tpu.memory_space<vmem>>, vector<1x128xf32>
    %31 = vector.broadcast %30 : vector<1x128xf32> to vector<256x128xf32>
    %32 = arith.addf %29, %31 : vector<256x128xf32>
    %33 = vector.shape_cast %32 : vector<256x128xf32> to vector<1x16x16x128xf32>
    %c0_14 = arith.constant 0 : index
    %c0_15 = arith.constant 0 : index
    %c0_16 = arith.constant 0 : index
    %c0_17 = arith.constant 0 : index
    %34 = vector.load %arg6[%c0_14, %c0_15, %c0_16, %c0_17] : memref<1x16x16x128xf32, #tpu.memory_space<vmem>>, vector<1x16x16x128xf32>
    tpu.vector_store %arg6[%c0_14, %c0_15, %c0_16, %c0_17], %33 {strides = array<i32>} : memref<1x16x16x128xf32, #tpu.memory_space<vmem>>, vector<1x16x16x128xf32>,
    %cst_18 = arith.constant dense<0.000000e+00> : vector<128xf32>
    %35 = vector.multi_reduction <add>, %32, %cst_18 [0] : vector<256x128xf32> to vector<128xf32>
    %36 = vector.shape_cast %35 : vector<128xf32> to vector<1x128xf32>
    %37 = arith.mulf %32, %32 : vector<256x128xf32>
    %cst_19 = arith.constant dense<0.000000e+00> : vector<128xf32>
    %38 = vector.multi_reduction <add>, %37, %cst_19 [0] : vector<256x128xf32> to vector<128xf32>
    %39 = vector.shape_cast %38 : vector<128xf32> to vector<1x128xf32>
    %40 = tpu.concatenate %36, %39 in 0 : vector<1x128xf32>, vector<1x128xf32> -> vector<2x128xf32>
    %41 = vector.shape_cast %40 : vector<2x128xf32> to vector<1x2x128xf32>
    %c0_20 = arith.constant 0 : index
    %c0_21 = arith.constant 0 : index
    %c0_22 = arith.constant 0 : index
    %42 = vector.load %arg7[%c0_20, %c0_21, %c0_22] : memref<1x2x128xf32, #tpu.memory_space<vmem>>, vector<1x2x128xf32>
    tpu.vector_store %arg7[%c0_20, %c0_21, %c0_22], %41 {strides = array<i32>} : memref<1x2x128xf32, #tpu.memory_space<vmem>>, vector<1x2x128xf32>,
    return
  }
  func.func @transform_0(%arg0: i32) -> (i32, i32, i32, i32) {
    %c0_i32 = arith.constant 0 : i32
    %c0_i32_0 = arith.constant 0 : i32
    %c0_i32_1 = arith.constant 0 : i32
    %c0_i32_2 = arith.constant 0 : i32
    return %arg0, %c0_i32, %c0_i32_0, %c0_i32_1 : i32, i32, i32, i32
  }
  func.func @transform_1(%arg0: i32) -> (i32, i32) {
    %c0_i32 = arith.constant 0 : i32
    %c0_i32_0 = arith.constant 0 : i32
    %c0_i32_1 = arith.constant 0 : i32
    return %c0_i32, %c0_i32_0 : i32, i32
  }
  func.func @transform_2(%arg0: i32) -> (i32, i32) {
    %c0_i32 = arith.constant 0 : i32
    %c0_i32_0 = arith.constant 0 : i32
    %c0_i32_1 = arith.constant 0 : i32
    return %c0_i32, %c0_i32_0 : i32, i32
  }
  func.func @transform_3(%arg0: i32) -> (i32, i32) {
    %c0_i32 = arith.constant 0 : i32
    %c0_i32_0 = arith.constant 0 : i32
    %c0_i32_1 = arith.constant 0 : i32
    return %c0_i32, %c0_i32_0 : i32, i32
  }
  func.func @transform_4(%arg0: i32) -> (i32, i32) {
    %c0_i32 = arith.constant 0 : i32
    %c0_i32_0 = arith.constant 0 : i32
    %c0_i32_1 = arith.constant 0 : i32
    return %c0_i32, %c0_i32_0 : i32, i32
  }
  func.func @transform_5(%arg0: i32) -> (i32, i32, i32, i32) {
    %c0_i32 = arith.constant 0 : i32
    %c0_i32_0 = arith.constant 0 : i32
    %c0_i32_1 = arith.constant 0 : i32
    %c0_i32_2 = arith.constant 0 : i32
    return %arg0, %c0_i32, %c0_i32_0, %c0_i32_1 : i32, i32, i32, i32
  }
  func.func @transform_6(%arg0: i32) -> (i32, i32, i32) {
    %c0_i32 = arith.constant 0 : i32
    %c0_i32_0 = arith.constant 0 : i32
    %c0_i32_1 = arith.constant 0 : i32
    return %arg0, %c0_i32, %c0_i32_0 : i32, i32, i32
  }
}

module attributes {stable_mosaic.version = 11 : i64} {
  func.func @_conv1x1_kernel(%arg0: i32, %arg1: memref<256x128xf32, #tpu.memory_space<vmem>>, %arg2: memref<1x128xf32, #tpu.memory_space<vmem>>, %arg3: memref<1x128xf32, #tpu.memory_space<vmem>>, %arg4: memref<128x128xbf16, #tpu.memory_space<vmem>>, %arg5: memref<1x128xf32, #tpu.memory_space<vmem>>, %arg6: memref<256x128xf32, #tpu.memory_space<vmem>>) attributes {dimension_semantics = [#tpu.dimension_semantics<parallel>], iteration_bounds = array<i64: 2>, scalar_prefetch = 0 : i64, scratch_operands = 0 : i64, tpu.core_type = #tpu.core_type<tc>, window_params = [{transform_indices = @transform_0, window_bounds = array<i64: 256, 128>}, {pipeline_mode = #tpu.pipeline_mode<synchronous>, transform_indices = @transform_1, window_bounds = array<i64: 1, 128>}, {pipeline_mode = #tpu.pipeline_mode<synchronous>, transform_indices = @transform_2, window_bounds = array<i64: 1, 128>}, {pipeline_mode = #tpu.pipeline_mode<synchronous>, transform_indices = @transform_3, window_bounds = array<i64: 128, 128>}, {pipeline_mode = #tpu.pipeline_mode<synchronous>, transform_indices = @transform_4, window_bounds = array<i64: 1, 128>}, {transform_indices = @transform_5, window_bounds = array<i64: 256, 128>}]} {
    %c0 = arith.constant 0 : index
    %c0_0 = arith.constant 0 : index
    %0 = vector.load %arg1[%c0, %c0_0] : memref<256x128xf32, #tpu.memory_space<vmem>>, vector<256x128xf32>
    %c0_1 = arith.constant 0 : index
    %c0_2 = arith.constant 0 : index
    %1 = vector.load %arg2[%c0_1, %c0_2] : memref<1x128xf32, #tpu.memory_space<vmem>>, vector<1x128xf32>
    %2 = vector.broadcast %1 : vector<1x128xf32> to vector<256x128xf32>
    %3 = arith.mulf %0, %2 : vector<256x128xf32>
    %c0_3 = arith.constant 0 : index
    %c0_4 = arith.constant 0 : index
    %4 = vector.load %arg3[%c0_3, %c0_4] : memref<1x128xf32, #tpu.memory_space<vmem>>, vector<1x128xf32>
    %5 = vector.broadcast %4 : vector<1x128xf32> to vector<256x128xf32>
    %6 = arith.addf %3, %5 : vector<256x128xf32>
    %cst = arith.constant 0.000000e+00 : f32
    %7 = vector.broadcast %cst : f32 to vector<256x128xf32>
    %8 = arith.maximumf %6, %7 : vector<256x128xf32>
    %9 = arith.truncf %8 : vector<256x128xf32> to vector<256x128xbf16>
    %c0_5 = arith.constant 0 : index
    %c0_6 = arith.constant 0 : index
    %10 = vector.load %arg4[%c0_5, %c0_6] : memref<128x128xbf16, #tpu.memory_space<vmem>>, vector<128x128xbf16>
    %cst_7 = arith.constant dense<0.000000e+00> : vector<256x128xf32>
    %11 = tpu.matmul %9, %10, %cst_7 {dimension_numbers = #tpu.dot_dimension_numbers<[1], [0], [0], [1], [0, 0, 1, 1], [], []>} : vector<256x128xbf16>, vector<128x128xbf16>, vector<256x128xf32> -> vector<256x128xf32>
    %c0_8 = arith.constant 0 : index
    %c0_9 = arith.constant 0 : index
    %12 = vector.load %arg5[%c0_8, %c0_9] : memref<1x128xf32, #tpu.memory_space<vmem>>, vector<1x128xf32>
    %13 = vector.broadcast %12 : vector<1x128xf32> to vector<256x128xf32>
    %14 = arith.addf %11, %13 : vector<256x128xf32>
    %c0_10 = arith.constant 0 : index
    %c0_11 = arith.constant 0 : index
    %15 = vector.load %arg6[%c0_10, %c0_11] : memref<256x128xf32, #tpu.memory_space<vmem>>, vector<256x128xf32>
    tpu.vector_store %arg6[%c0_10, %c0_11], %14 {strides = array<i32>} : memref<256x128xf32, #tpu.memory_space<vmem>>, vector<256x128xf32>,
    return
  }
  func.func @transform_0(%arg0: i32) -> (i32, i32) {
    %c0_i32 = arith.constant 0 : i32
    %c0_i32_0 = arith.constant 0 : i32
    return %arg0, %c0_i32 : i32, i32
  }
  func.func @transform_1(%arg0: i32) -> (i32, i32) {
    %c0_i32 = arith.constant 0 : i32
    %c0_i32_0 = arith.constant 0 : i32
    %c0_i32_1 = arith.constant 0 : i32
    return %c0_i32, %c0_i32_0 : i32, i32
  }
  func.func @transform_2(%arg0: i32) -> (i32, i32) {
    %c0_i32 = arith.constant 0 : i32
    %c0_i32_0 = arith.constant 0 : i32
    %c0_i32_1 = arith.constant 0 : i32
    return %c0_i32, %c0_i32_0 : i32, i32
  }
  func.func @transform_3(%arg0: i32) -> (i32, i32) {
    %c0_i32 = arith.constant 0 : i32
    %c0_i32_0 = arith.constant 0 : i32
    %c0_i32_1 = arith.constant 0 : i32
    return %c0_i32, %c0_i32_0 : i32, i32
  }
  func.func @transform_4(%arg0: i32) -> (i32, i32) {
    %c0_i32 = arith.constant 0 : i32
    %c0_i32_0 = arith.constant 0 : i32
    %c0_i32_1 = arith.constant 0 : i32
    return %c0_i32, %c0_i32_0 : i32, i32
  }
  func.func @transform_5(%arg0: i32) -> (i32, i32) {
    %c0_i32 = arith.constant 0 : i32
    %c0_i32_0 = arith.constant 0 : i32
    return %arg0, %c0_i32 : i32, i32
  }
}

</mosaic_0001>

<llo_original>
// kernel: seg_head.3
$region0: #{seg_head.3}
  #allocation0 [shape = 'u32[]', space=smem, size = 0x4, offset = 0x4, fixed_abs, tag = 'smem constant byte address 0x4 - core index']
  #allocation1 [shape = 'u32[72,128]{1,0:T(1,128)}', space=vmem, size = 0x9000, scoped, tag = 'internal scratch']
  %s0 = inlined_call_operand.vmem [shape: f32[512,128], index: 0, kind: input, shape index: {}]
  %s1 = inlined_call_operand.vmem [shape: f32[2,2,128], index: 1, kind: output, shape index: {}]
  %s2 = sld [smem:[#allocation0]]
  $region37: #{seg_head.3} parent=0
    _
  %s4 = ssub.s32 1, %s2
  %s5 = scalar_select 0, %s4, %s2
  loop: start=0, step=1, limit=4
  $region2: #{seg_head.3} parent=0 // loop_pre_header
    _
  $region3: #{seg_head.3} parent=0 // loop_header
    %s7 = sphi 0, %s11
    %p8 = scmp.ge.s32.totalorder %s7, 4
    %s17 = sphi 0, %s19
    %s20 = sphi 0, %s17
    %s21 = sphi 0, %s20
    %s37 = sphi 0, %s21
    %s43 = sphi 0, %s45
    %s46 = sphi 0, %s43
    %s47 = sphi 0, %s46
    %s63 = sphi 0, %s47
  $region4: #{seg_head.3} parent=0 // loop_header_branch
    %10 = sbr.rel (%p8) target = $region8
  $region5: #{seg_head.3} parent=0 // loop_body
    %s12 = ssub.s32 %s7, 1
    %s13 = ssub.s32 %s7, 2
    %s14 = sadd.s32 %s7, 1
    %s15 = ssub.s32 %s7, %s14
    %p16 = scmp.eq.s32.totalorder %s15, 0
    %s18 = sadd.s32 %s17, 1
    %s19 = scalar_select %p16, %s17, %s18
    %p22 = pneg %p16
    %p23 = scmp.eq.s32.totalorder %s7, 1
    %p24 = por %p22, %p23
    %p25 = scmp.ne.s32.totalorder %s17, %s20
    %p26 = scmp.eq.s32.totalorder %s7, 0
    %p27 = por %p25, %p26
    %p28 = scmp.ne.s32.totalorder %s17, %s20
    %p29 = scmp.eq.s32.totalorder %s12, 1
    %p30 = por %p28, %p29
    %p31 = scmp.ne.s32.totalorder %s20, %s21
    %p32 = scmp.eq.s32.totalorder %s12, 0
    %p33 = por %p31, %p32
    %p34 = scmp.ne.s32.totalorder %s20, %s21
    %p35 = scmp.eq.s32.totalorder %s13, 1
    %p36 = por %p34, %p35
    %p38 = scmp.ne.s32.totalorder %s21, %s37
    %p39 = scmp.eq.s32.totalorder %s13, 0
    %p40 = por %p38, %p39
    %s41 = ssub.s32 %s7, %s14
    %p42 = scmp.eq.s32.totalorder %s41, 0
    %s44 = sadd.s32 %s43, 1
    %s45 = scalar_select %p42, %s43, %s44
    %p48 = pneg %p42
    %p49 = scmp.eq.s32.totalorder %s7, 1
    %p50 = por %p48, %p49
    %p51 = scmp.ne.s32.totalorder %s43, %s46
    %p52 = scmp.eq.s32.totalorder %s7, 0
    %p53 = por %p51, %p52
    %p54 = scmp.ne.s32.totalorder %s43, %s46
    %p55 = scmp.eq.s32.totalorder %s12, 1
    %p56 = por %p54, %p55
    %p57 = scmp.ne.s32.totalorder %s46, %s47
    %p58 = scmp.eq.s32.totalorder %s12, 0
    %p59 = por %p57, %p58
    %p60 = scmp.ne.s32.totalorder %s46, %s47
    %p61 = scmp.eq.s32.totalorder %s13, 1
    %p62 = por %p60, %p61
    %p64 = scmp.ne.s32.totalorder %s47, %s63
    %p65 = scmp.eq.s32.totalorder %s13, 0
    %p66 = por %p64, %p65
    %p67 = scmp.le.s32.totalorder 1, %s7
    %p68 = scmp.lt.s32.totalorder %s7, 3
    %p69 = pnand %p67, %p68
    %p70 = pneg %p69
    // Predicated region
    $region9: #{seg_head.3} parent=5 // pred_check
      _
    $region10: #{seg_head.3} parent=5 // pred_check_branch
      %72 = sbr.rel (%p69) target = $region12
    $region11: #{seg_head.3} parent=5 // pred_region
      %s73 = ssub.s32 %s7, 1
    $region12: #{seg_head.3} parent=5 // pred_fallthru
      _
    %p74 = scmp.lt.s32.totalorder %s7, 2
    // Predicated region
    $region13: #{seg_head.3} parent=5 // pred_check
      %p75 = pneg %p74
    $region14: #{seg_head.3} parent=5 // pred_check_branch
      %77 = sbr.rel (%p75) target = $region16
    $region15: #{seg_head.3} parent=5 // pred_region
      // Predicated region
      $region17: #{seg_head.3} parent=15 // pred_check
        %p78 = pneg %p27
      $region18: #{seg_head.3} parent=15 // pred_check_branch
        %80 = sbr.rel (%p78) target = $region20
      $region19: #{seg_head.3} parent=15 // pred_region
        %s81 = smul.u32 32, %s7
        %p82 = scmp.lt.s32.totalorder %s81, 63
        %s83 = scalar_select %p82, %s81, 63
        %s84 = smul.addr %s83, 8
        %s85 = scalar_lea.vmem %s0, %s84
        %s86 = smul.u32 32, %s7
      $region20: #{seg_head.3} parent=15 // pred_fallthru
        _
    $region16: #{seg_head.3} parent=5 // pred_fallthru
      _
    %p87 = scmp.le.s32.totalorder 1, %s7
    %p88 = scmp.lt.s32.totalorder %s7, 3
    %p89 = pnand %p87, %p88
    %p90 = pneg %p89
    // Predicated region
    $region21: #{seg_head.3} parent=5 // pred_check
      _
    $region22: #{seg_head.3} parent=5 // pred_check_branch
      %92 = sbr.rel (%p89) target = $region24
    $region23: #{seg_head.3} parent=5 // pred_region
      %s93 = ssub.s32 %s7, 1
      %s94 = smul.u32 32, %s12
      %p95 = scmp.lt.s32.totalorder %s94, 63
      %s96 = scalar_select %p95, %s94, 63
      %s97 = smul.addr %s96, 8
      %s98 = scalar_lea.vmem %s0, %s97
      %p99 = pneg %p33
      %p100 = pneg %p30
      %p101 = pneg %p59
      %p102 = pneg %p56
      %p103 = scmp.lt.s32.totalorder %s12, 1
      %s104 = scalar_select %p103, %s12, 1
      %s105 = smul.addr %s104, 2
      %s106 = scalar_lea.vmem %s1, %s105
      %s107 = smul.u32 32, %s12
      %p108 = scmp.lt.s32.totalorder %s107, 63
      %s109 = scalar_select %p108, %s107, 63
      %s110 = smul.addr %s109, 8
      %s111 = scalar_lea.vmem %s0, %s110
      %s112 = smul.u32 32, %s12
      %p113 = scmp.lt.s32.totalorder %s12, 1
      %s114 = scalar_select %p113, %s12, 1
      %s115 = smul.addr %s114, 2
      %s116 = scalar_lea.vmem %s1, %s115
      %v117 = vld [vmem:[%s111] sm:$0xff]
      %v118 = vld [vmem:[%s111 + $0x8] sm:$0xff]
      %v119 = vld [vmem:[%s111 + $0x10] sm:$0xff]
      %v120 = vld [vmem:[%s111 + $0x18] sm:$0xff]
      %v121 = vld [vmem:[%s111 + $0x20] sm:$0xff]
      %v122 = vld [vmem:[%s111 + $0x28] sm:$0xff]
      %v123 = vld [vmem:[%s111 + $0x30] sm:$0xff]
      %v124 = vld [vmem:[%s111 + $0x38] sm:$0xff]
      %v125 = vld [vmem:[%s111 + $0x40] sm:$0xff]
      %v126 = vld [vmem:[%s111 + $0x48] sm:$0xff]
      %v127 = vld [vmem:[%s111 + $0x50] sm:$0xff]
      %v128 = vld [vmem:[%s111 + $0x58] sm:$0xff]
      %v129 = vld [vmem:[%s111 + $0x60] sm:$0xff]
      %v130 = vld [vmem:[%s111 + $0x68] sm:$0xff]
      %v131 = vld [vmem:[%s111 + $0x70] sm:$0xff]
      %v132 = vld [vmem:[%s111 + $0x78] sm:$0xff]
      %v133 = vld [vmem:[%s111 + $0x80] sm:$0xff]
      %v134 = vld [vmem:[%s111 + $0x88] sm:$0xff]
      %v135 = vld [vmem:[%s111 + $0x90] sm:$0xff]
      %v136 = vld [vmem:[%s111 + $0x98] sm:$0xff]
      %v137 = vld [vmem:[%s111 + $0xa0] sm:$0xff]
      %v138 = vld [vmem:[%s111 + $0xa8] sm:$0xff]
      %v139 = vld [vmem:[%s111 + $0xb0] sm:$0xff]
      %v140 = vld [vmem:[%s111 + $0xb8] sm:$0xff]
      %v141 = vld [vmem:[%s111 + $0xc0] sm:$0xff]
      %v142 = vld [vmem:[%s111 + $0xc8] sm:$0xff]
      %v143 = vld [vmem:[%s111 + $0xd0] sm:$0xff]
      %v144 = vld [vmem:[%s111 + $0xd8] sm:$0xff]
      %v145 = vld [vmem:[%s111 + $0xe0] sm:$0xff]
      %v146 = vld [vmem:[%s111 + $0xe8] sm:$0xff]
      %v147 = vld [vmem:[%s111 + $0xf0] sm:$0xff]
      %v148 = vld [vmem:[%s111 + $0xf8] sm:$0xff]
      %v149 = vadd.f32 %v117, %v118
      %v150 = vadd.f32 %v149, %v119
      %v151 = vadd.f32 %v150, %v120
      %v152 = vadd.f32 %v151, %v121
      %v153 = vadd.f32 %v152, %v122
      %v154 = vadd.f32 %v153, %v123
      %v155 = vadd.f32 %v154, %v124
      %v156 = vadd.f32 %v155, %v125
      %v157 = vadd.f32 %v156, %v126
      %v158 = vadd.f32 %v157, %v127
      %v159 = vadd.f32 %v158, %v128
      %v160 = vadd.f32 %v159, %v129
      %v161 = vadd.f32 %v160, %v130
      %v162 = vadd.f32 %v161, %v131
      %v163 = vadd.f32 %v162, %v132
      %v164 = vadd.f32 %v163, %v133
      %v165 = vadd.f32 %v164, %v134
      %v166 = vadd.f32 %v165, %v135
      %v167 = vadd.f32 %v166, %v136
      %v168 = vadd.f32 %v167, %v137
      %v169 = vadd.f32 %v168, %v138
      %v170 = vadd.f32 %v169, %v139
      %v171 = vadd.f32 %v170, %v140
      %v172 = vadd.f32 %v171, %v141
      %v173 = vadd.f32 %v172, %v142
      %v174 = vadd.f32 %v173, %v143
      %v175 = vadd.f32 %v174, %v144
      %v176 = vadd.f32 %v175, %v145
      %v177 = vadd.f32 %v176, %v146
      %v178 = vadd.f32 %v177, %v147
      %v179 = vadd.f32 %v178, %v148
      %v180 = vrot.slane %v179, 4
      %v181 = vadd.f32 %v179, %v180
      %v182 = vrot.slane %v181, 2
      %v183 = vadd.f32 %v181, %v182
      %v184 = vrot.slane %v183, 1
      %v185 = vadd.f32 %v183, %v184
      %v186 = vmul.f32 %v117, %v117
      %v187 = vmul.f32 %v118, %v118
      %v188 = vmul.f32 %v119, %v119
      %v189 = vmul.f32 %v120, %v120
      %v190 = vmul.f32 %v121, %v121
      %v191 = vmul.f32 %v122, %v122
      %v192 = vmul.f32 %v123, %v123
      %v193 = vmul.f32 %v124, %v124
      %v194 = vmul.f32 %v125, %v125
      %v195 = vmul.f32 %v126, %v126
      %v196 = vmul.f32 %v127, %v127
      %v197 = vmul.f32 %v128, %v128
      %v198 = vmul.f32 %v129, %v129
      %v199 = vmul.f32 %v130, %v130
      %v200 = vmul.f32 %v131, %v131
      %v201 = vmul.f32 %v132, %v132
      %v202 = vmul.f32 %v133, %v133
      %v203 = vmul.f32 %v134, %v134
      %v204 = vmul.f32 %v135, %v135
      %v205 = vmul.f32 %v136, %v136
      %v206 = vmul.f32 %v137, %v137
      %v207 = vmul.f32 %v138, %v138
      %v208 = vmul.f32 %v139, %v139
      %v209 = vmul.f32 %v140, %v140
      %v210 = vmul.f32 %v141, %v141
      %v211 = vmul.f32 %v142, %v142
      %v212 = vmul.f32 %v143, %v143
      %v213 = vmul.f32 %v144, %v144
      %v214 = vmul.f32 %v145, %v145
      %v215 = vmul.f32 %v146, %v146
      %v216 = vmul.f32 %v147, %v147
      %v217 = vmul.f32 %v148, %v148
      %v218 = vadd.f32 %v186, %v187
      %v219 = vadd.f32 %v218, %v188
      %v220 = vadd.f32 %v219, %v189
      %v221 = vadd.f32 %v220, %v190
      %v222 = vadd.f32 %v221, %v191
      %v223 = vadd.f32 %v222, %v192
      %v224 = vadd.f32 %v223, %v193
      %v225 = vadd.f32 %v224, %v194
      %v226 = vadd.f32 %v225, %v195
      %v227 = vadd.f32 %v226, %v196
      %v228 = vadd.f32 %v227, %v197
      %v229 = vadd.f32 %v228, %v198
      %v230 = vadd.f32 %v229, %v199
      %v231 = vadd.f32 %v230, %v200
      %v232 = vadd.f32 %v231, %v201
      %v233 = vadd.f32 %v232, %v202
      %v234 = vadd.f32 %v233, %v203
      %v235 = vadd.f32 %v234, %v204
      %v236 = vadd.f32 %v235, %v205
      %v237 = vadd.f32 %v236, %v206
      %v238 = vadd.f32 %v237, %v207
      %v239 = vadd.f32 %v238, %v208
      %v240 = vadd.f32 %v239, %v209
      %v241 = vadd.f32 %v240, %v210
      %v242 = vadd.f32 %v241, %v211
      %v243 = vadd.f32 %v242, %v212
      %v244 = vadd.f32 %v243, %v213
      %v245 = vadd.f32 %v244, %v214
      %v246 = vadd.f32 %v245, %v215
      %v247 = vadd.f32 %v246, %v216
      %v248 = vadd.f32 %v247, %v217
      %v249 = vrot.slane %v248, 4
      %v250 = vadd.f32 %v248, %v249
      %v251 = vrot.slane %v250, 2
      %v252 = vadd.f32 %v250, %v251
      %v253 = vrot.slane %v252, 1
      %v254 = vadd.f32 %v252, %v253
      %vm255 = vcmask 1040384
      %v256 = vsel %vm255, %v185, %v254
      %257 = vst [vmem:[%s116] sm:$0x3] %v256
      %p258 = scmp.lt.s32.totalorder %s12, 1
      %s259 = scalar_select %p258, %s12, 1
      %s260 = smul.addr %s259, 2
      %s261 = scalar_lea.vmem %s1, %s260
      // Predicated region
      $region25: #{seg_head.3} parent=23 // pred_check
        %p262 = pneg %p56
      $region26: #{seg_head.3} parent=23 // pred_check_branch
        %264 = sbr.rel (%p262) target = $region28
      $region27: #{seg_head.3} parent=23 // pred_region
        _
      $region28: #{seg_head.3} parent=23 // pred_fallthru
        _
    $region24: #{seg_head.3} parent=5 // pred_fallthru
      _
    %p265 = scmp.le.s32.totalorder 2, %s7
    // Predicated region
    $region29: #{seg_head.3} parent=5 // pred_check
      %p266 = pneg %p265
    $region30: #{seg_head.3} parent=5 // pred_check_branch
      %268 = sbr.rel (%p266) target = $region32
    $region31: #{seg_head.3} parent=5 // pred_region
      %s269 = ssub.s32 %s7, 2
      // Predicated region
      $region33: #{seg_head.3} parent=31 // pred_check
        %p270 = pneg %p62
      $region34: #{seg_head.3} parent=31 // pred_check_branch
        %272 = sbr.rel (%p270) target = $region36
      $region35: #{seg_head.3} parent=31 // pred_region
        %p273 = scmp.lt.s32.totalorder %s13, 1
        %s274 = scalar_select %p273, %s13, 1
        %s275 = smul.addr %s274, 2
        %s276 = scalar_lea.vmem %s1, %s275
      $region36: #{seg_head.3} parent=31 // pred_fallthru
        _
    $region32: #{seg_head.3} parent=5 // pred_fallthru
      _
  $region6: #{seg_head.3} parent=0 // loop_footer
    %s11 = sadd.s32 1, %s7
  $region7: #{seg_head.3} parent=0 // loop_footer_branch
    %6 = sbr.rel target = $region3
  $region8: #{seg_head.3} parent=0 // loop_exit
    _

// kernel: seg_head.5
$region0: #{seg_head.5}
  #allocation0 [shape = 'u32[]', space=smem, size = 0x4, offset = 0x4, fixed_abs, tag = 'smem constant byte address 0x4 - core index']
  #allocation1 [shape = 'u32[72,128]{1,0:T(1,128)}', space=vmem, size = 0x9000, scoped, tag = 'internal scratch']
  %s0 = inlined_call_operand.vmem [shape: f32[512,128], index: 0, kind: input, shape index: {}]
  %s1 = inlined_call_operand.vmem [shape: f32[1,128], index: 1, kind: input, shape index: {}]
  %s2 = inlined_call_operand.vmem [shape: f32[1,128], index: 2, kind: input, shape index: {}]
  %s3 = inlined_call_operand.vmem [shape: bf16[128,128], index: 3, kind: input, shape index: {}]
  %s4 = inlined_call_operand.vmem [shape: f32[1,128], index: 4, kind: input, shape index: {}]
  %s5 = inlined_call_operand.vmem [shape: f32[512,128], index: 5, kind: output, shape index: {}]
  %s6 = sld [smem:[#allocation0]]
  $region53: #{seg_head.5} parent=0
    _
  %s8 = ssub.s32 1, %s6
  %s9 = scalar_select 0, %s8, %s6
  loop: start=0, step=1, limit=4
  $region2: #{seg_head.5} parent=0 // loop_pre_header
    _
  $region3: #{seg_head.5} parent=0 // loop_header
    %s11 = sphi 0, %s15
    %p12 = scmp.ge.s32.totalorder %s11, 4
    %s21 = sphi 0, %s23
    %s24 = sphi 0, %s21
    %s25 = sphi 0, %s24
    %s41 = sphi 0, %s25
    %s45 = sphi 0, %s45
    %s47 = sphi 0, %s45
    %s48 = sphi 0, %s47
    %s62 = sphi 0, %s48
    %s66 = sphi 0, %s66
    %s68 = sphi 0, %s66
    %s69 = sphi 0, %s68
    %s83 = sphi 0, %s69
    %s87 = sphi 0, %s87
    %s89 = sphi 0, %s87
    %s90 = sphi 0, %s89
    %s104 = sphi 0, %s90
    %s108 = sphi 0, %s108
    %s110 = sphi 0, %s108
    %s111 = sphi 0, %s110
    %s125 = sphi 0, %s111
    %s131 = sphi 0, %s133
    %s134 = sphi 0, %s131
    %s135 = sphi 0, %s134
    %s151 = sphi 0, %s135
  $region4: #{seg_head.5} parent=0 // loop_header_branch
    %14 = sbr.rel (%p12) target = $region8
  $region5: #{seg_head.5} parent=0 // loop_body
    %s16 = ssub.s32 %s11, 1
    %s17 = ssub.s32 %s11, 2
    %s18 = sadd.s32 %s11, 1
    %s19 = ssub.s32 %s11, %s18
    %p20 = scmp.eq.s32.totalorder %s19, 0
    %s22 = sadd.s32 %s21, 1
    %s23 = scalar_select %p20, %s21, %s22
    %p26 = pneg %p20
    %p27 = scmp.eq.s32.totalorder %s11, 1
    %p28 = por %p26, %p27
    %p29 = scmp.ne.s32.totalorder %s21, %s24
    %p30 = scmp.eq.s32.totalorder %s11, 0
    %p31 = por %p29, %p30
    %p32 = scmp.ne.s32.totalorder %s21, %s24
    %p33 = scmp.eq.s32.totalorder %s16, 1
    %p34 = por %p32, %p33
    %p35 = scmp.ne.s32.totalorder %s24, %s25
    %p36 = scmp.eq.s32.totalorder %s16, 0
    %p37 = por %p35, %p36
    %p38 = scmp.ne.s32.totalorder %s24, %s25
    %p39 = scmp.eq.s32.totalorder %s17, 1
    %p40 = por %p38, %p39
    %p42 = scmp.ne.s32.totalorder %s25, %s41
    %p43 = scmp.eq.s32.totalorder %s17, 0
    %p44 = por %p42, %p43
    %s46 = sadd.s32 %s45, 1
    %p49 = scmp.eq.s32.totalorder %s11, 1
    %p50 = scmp.ne.s32.totalorder %s45, %s47
    %p51 = scmp.eq.s32.totalorder %s11, 0
    %p52 = por %p50, %p51
    %p53 = scmp.ne.s32.totalorder %s45, %s47
    %p54 = scmp.eq.s32.totalorder %s16, 1
    %p55 = por %p53, %p54
    %p56 = scmp.ne.s32.totalorder %s47, %s48
    %p57 = scmp.eq.s32.totalorder %s16, 0
    %p58 = por %p56, %p57
    %p59 = scmp.ne.s32.totalorder %s47, %s48
    %p60 = scmp.eq.s32.totalorder %s17, 1
    %p61 = por %p59, %p60
    %p63 = scmp.ne.s32.totalorder %s48, %s62
    %p64 = scmp.eq.s32.totalorder %s17, 0
    %p65 = por %p63, %p64
    %s67 = sadd.s32 %s66, 1
    %p70 = scmp.eq.s32.totalorder %s11, 1
    %p71 = scmp.ne.s32.totalorder %s66, %s68
    %p72 = scmp.eq.s32.totalorder %s11, 0
    %p73 = por %p71, %p72
    %p74 = scmp.ne.s32.totalorder %s66, %s68
    %p75 = scmp.eq.s32.totalorder %s16, 1
    %p76 = por %p74, %p75
    %p77 = scmp.ne.s32.totalorder %s68, %s69
    %p78 = scmp.eq.s32.totalorder %s16, 0
    %p79 = por %p77, %p78
    %p80 = scmp.ne.s32.totalorder %s68, %s69
    %p81 = scmp.eq.s32.totalorder %s17, 1
    %p82 = por %p80, %p81
    %p84 = scmp.ne.s32.totalorder %s69, %s83
    %p85 = scmp.eq.s32.totalorder %s17, 0
    %p86 = por %p84, %p85
    %s88 = sadd.s32 %s87, 1
    %p91 = scmp.eq.s32.totalorder %s11, 1
    %p92 = scmp.ne.s32.totalorder %s87, %s89
    %p93 = scmp.eq.s32.totalorder %s11, 0
    %p94 = por %p92, %p93
    %p95 = scmp.ne.s32.totalorder %s87, %s89
    %p96 = scmp.eq.s32.totalorder %s16, 1
    %p97 = por %p95, %p96
    %p98 = scmp.ne.s32.totalorder %s89, %s90
    %p99 = scmp.eq.s32.totalorder %s16, 0
    %p100 = por %p98, %p99
    %p101 = scmp.ne.s32.totalorder %s89, %s90
    %p102 = scmp.eq.s32.totalorder %s17, 1
    %p103 = por %p101, %p102
    %p105 = scmp.ne.s32.totalorder %s90, %s104
    %p106 = scmp.eq.s32.totalorder %s17, 0
    %p107 = por %p105, %p106
    %s109 = sadd.s32 %s108, 1
    %p112 = scmp.eq.s32.totalorder %s11, 1
    %p113 = scmp.ne.s32.totalorder %s108, %s110
    %p114 = scmp.eq.s32.totalorder %s11, 0
    %p115 = por %p113, %p114
    %p116 = scmp.ne.s32.totalorder %s108, %s110
    %p117 = scmp.eq.s32.totalorder %s16, 1
    %p118 = por %p116, %p117
    %p119 = scmp.ne.s32.totalorder %s110, %s111
    %p120 = scmp.eq.s32.totalorder %s16, 0
    %p121 = por %p119, %p120
    %p122 = scmp.ne.s32.totalorder %s110, %s111
    %p123 = scmp.eq.s32.totalorder %s17, 1
    %p124 = por %p122, %p123
    %p126 = scmp.ne.s32.totalorder %s111, %s125
    %p127 = scmp.eq.s32.totalorder %s17, 0
    %p128 = por %p126, %p127
    %s129 = ssub.s32 %s11, %s18
    %p130 = scmp.eq.s32.totalorder %s129, 0
    %s132 = sadd.s32 %s131, 1
    %s133 = scalar_select %p130, %s131, %s132
    %p136 = pneg %p130
    %p137 = scmp.eq.s32.totalorder %s11, 1
    %p138 = por %p136, %p137
    %p139 = scmp.ne.s32.totalorder %s131, %s134
    %p140 = scmp.eq.s32.totalorder %s11, 0
    %p141 = por %p139, %p140
    %p142 = scmp.ne.s32.totalorder %s131, %s134
    %p143 = scmp.eq.s32.totalorder %s16, 1
    %p144 = por %p142, %p143
    %p145 = scmp.ne.s32.totalorder %s134, %s135
    %p146 = scmp.eq.s32.totalorder %s16, 0
    %p147 = por %p145, %p146
    %p148 = scmp.ne.s32.totalorder %s134, %s135
    %p149 = scmp.eq.s32.totalorder %s17, 1
    %p150 = por %p148, %p149
    %p152 = scmp.ne.s32.totalorder %s135, %s151
    %p153 = scmp.eq.s32.totalorder %s17, 0
    %p154 = por %p152, %p153
    %p155 = scmp.le.s32.totalorder 1, %s11
    %p156 = scmp.lt.s32.totalorder %s11, 3
    %p157 = pnand %p155, %p156
    %p158 = pneg %p157
    // Predicated region
    $region9: #{seg_head.5} parent=5 // pred_check
      _
    $region10: #{seg_head.5} parent=5 // pred_check_branch
      %160 = sbr.rel (%p157) target = $region12
    $region11: #{seg_head.5} parent=5 // pred_region
      %s161 = ssub.s32 %s11, 1
      // Predicated region
      $region13: #{seg_head.5} parent=11 // pred_check
        %p162 = pneg %p58
      $region14: #{seg_head.5} parent=11 // pred_check_branch
        %164 = sbr.rel (%p162) target = $region16
      $region15: #{seg_head.5} parent=11 // pred_region
        _
      $region16: #{seg_head.5} parent=11 // pred_fallthru
        _
      // Predicated region
      $region17: #{seg_head.5} parent=11 // pred_check
        %p165 = pneg %p79
      $region18: #{seg_head.5} parent=11 // pred_check_branch
        %167 = sbr.rel (%p165) target = $region20
      $region19: #{seg_head.5} parent=11 // pred_region
        _
      $region20: #{seg_head.5} parent=11 // pred_fallthru
        _
      // Predicated region
      $region21: #{seg_head.5} parent=11 // pred_check
        %p168 = pneg %p100
      $region22: #{seg_head.5} parent=11 // pred_check_branch
        %170 = sbr.rel (%p168) target = $region24
      $region23: #{seg_head.5} parent=11 // pred_region
        _
      $region24: #{seg_head.5} parent=11 // pred_fallthru
        _
      // Predicated region
      $region25: #{seg_head.5} parent=11 // pred_check
        %p171 = pneg %p121
      $region26: #{seg_head.5} parent=11 // pred_check_branch
        %173 = sbr.rel (%p171) target = $region28
      $region27: #{seg_head.5} parent=11 // pred_region
        _
      $region28: #{seg_head.5} parent=11 // pred_fallthru
        _
    $region12: #{seg_head.5} parent=5 // pred_fallthru
      _
    %p174 = scmp.lt.s32.totalorder %s11, 2
    // Predicated region
    $region29: #{seg_head.5} parent=5 // pred_check
      %p175 = pneg %p174
    $region30: #{seg_head.5} parent=5 // pred_check_branch
      %177 = sbr.rel (%p175) target = $region32
    $region31: #{seg_head.5} parent=5 // pred_region
      // Predicated region
      $region33: #{seg_head.5} parent=31 // pred_check
        %p178 = pneg %p31
      $region34: #{seg_head.5} parent=31 // pred_check_branch
        %180 = sbr.rel (%p178) target = $region36
      $region35: #{seg_head.5} parent=31 // pred_region
        %s181 = smul.u32 32, %s11
        %p182 = scmp.lt.s32.totalorder %s181, 63
        %s183 = scalar_select %p182, %s181, 63
        %s184 = smul.addr %s183, 8
        %s185 = scalar_lea.vmem %s0, %s184
        %s186 = smul.u32 32, %s11
      $region36: #{seg_head.5} parent=31 // pred_fallthru
        _
    $region32: #{seg_head.5} parent=5 // pred_fallthru
      _
    %p187 = scmp.le.s32.totalorder 1, %s11
    %p188 = scmp.lt.s32.totalorder %s11, 3
    %p189 = pnand %p187, %p188
    %p190 = pneg %p189
    // Predicated region
    $region37: #{seg_head.5} parent=5 // pred_check
      _
    $region38: #{seg_head.5} parent=5 // pred_check_branch
      %192 = sbr.rel (%p189) target = $region40
    $region39: #{seg_head.5} parent=5 // pred_region
      %s193 = ssub.s32 %s11, 1
      %s194 = smul.u32 32, %s16
      %p195 = scmp.lt.s32.totalorder %s194, 63
      %s196 = scalar_select %p195, %s194, 63
      %s197 = smul.addr %s196, 8
      %s198 = scalar_lea.vmem %s0, %s197
      %p199 = pneg %p37
      %p200 = pneg %p34
      %p201 = pneg %p58
      %p202 = pneg %p55
      %p203 = pneg %p79
      %p204 = pneg %p76
      %p205 = pneg %p100
      %p206 = pneg %p97
      %p207 = pneg %p121
      %p208 = pneg %p118
      %p209 = pneg %p147
      %p210 = pneg %p144
      %s211 = smul.u32 32, %s16
      %p212 = scmp.lt.s32.totalorder %s211, 63
      %s213 = scalar_select %p212, %s211, 63
      %s214 = smul.addr %s213, 8
      %s215 = scalar_lea.vmem %s5, %s214
      %s216 = smul.u32 32, %s16
      %p217 = scmp.lt.s32.totalorder %s216, 63
      %s218 = scalar_select %p217, %s216, 63
      %s219 = smul.addr %s218, 8
      %s220 = scalar_lea.vmem %s0, %s219
      %s221 = smul.u32 32, %s16
      %s222 = smul.u32 32, %s16
      %p223 = scmp.lt.s32.totalorder %s222, 63
      %s224 = scalar_select %p223, %s222, 63
      %s225 = smul.addr %s224, 8
      %s226 = scalar_lea.vmem %s5, %s225
      %s227 = smul.u32 32, %s16
      %v228 = vld [vmem:[%s220] sm:$0xff]
      %v229 = vld [vmem:[%s220 + $0x8] sm:$0xff]
      %v230 = vld [vmem:[%s220 + $0x10] sm:$0xff]
      %v231 = vld [vmem:[%s220 + $0x18] sm:$0xff]
      %v232 = vld [vmem:[%s220 + $0x20] sm:$0xff]
      %v233 = vld [vmem:[%s220 + $0x28] sm:$0xff]
      %v234 = vld [vmem:[%s220 + $0x30] sm:$0xff]
      %v235 = vld [vmem:[%s220 + $0x38] sm:$0xff]
      %v236 = vld [vmem:[%s220 + $0x40] sm:$0xff]
      %v237 = vld [vmem:[%s220 + $0x48] sm:$0xff]
      %v238 = vld [vmem:[%s220 + $0x50] sm:$0xff]
      %v239 = vld [vmem:[%s220 + $0x58] sm:$0xff]
      %v240 = vld [vmem:[%s220 + $0x60] sm:$0xff]
      %v241 = vld [vmem:[%s220 + $0x68] sm:$0xff]
      %v242 = vld [vmem:[%s220 + $0x70] sm:$0xff]
      %v243 = vld [vmem:[%s220 + $0x78] sm:$0xff]
      %v244 = vld [vmem:[%s220 + $0x80] sm:$0xff]
      %v245 = vld [vmem:[%s220 + $0x88] sm:$0xff]
      %v246 = vld [vmem:[%s220 + $0x90] sm:$0xff]
      %v247 = vld [vmem:[%s220 + $0x98] sm:$0xff]
      %v248 = vld [vmem:[%s220 + $0xa0] sm:$0xff]
      %v249 = vld [vmem:[%s220 + $0xa8] sm:$0xff]
      %v250 = vld [vmem:[%s220 + $0xb0] sm:$0xff]
      %v251 = vld [vmem:[%s220 + $0xb8] sm:$0xff]
      %v252 = vld [vmem:[%s220 + $0xc0] sm:$0xff]
      %v253 = vld [vmem:[%s220 + $0xc8] sm:$0xff]
      %v254 = vld [vmem:[%s220 + $0xd0] sm:$0xff]
      %v255 = vld [vmem:[%s220 + $0xd8] sm:$0xff]
      %v256 = vld [vmem:[%s220 + $0xe0] sm:$0xff]
      %v257 = vld [vmem:[%s220 + $0xe8] sm:$0xff]
      %v258 = vld [vmem:[%s220 + $0xf0] sm:$0xff]
      %v259 = vld [vmem:[%s220 + $0xf8] sm:$0xff]
      %v260 = vld [vmem:[%s1] sm:$0x1]
      %v262 = vperm.slane %v260, 0
      %v264 = vmul.f32 %v228, %v262
      %v265 = vmul.f32 %v229, %v262
      %v266 = vmul.f32 %v230, %v262
      %v267 = vmul.f32 %v231, %v262
      %v268 = vmul.f32 %v232, %v262
      %v269 = vmul.f32 %v233, %v262
      %v270 = vmul.f32 %v234, %v262
      %v271 = vmul.f32 %v235, %v262
      %v272 = vmul.f32 %v236, %v262
      %v273 = vmul.f32 %v237, %v262
      %v274 = vmul.f32 %v238, %v262
      %v275 = vmul.f32 %v239, %v262
      %v276 = vmul.f32 %v240, %v262
      %v277 = vmul.f32 %v241, %v262
      %v278 = vmul.f32 %v242, %v262
      %v279 = vmul.f32 %v243, %v262
      %v280 = vmul.f32 %v244, %v262
      %v281 = vmul.f32 %v245, %v262
      %v282 = vmul.f32 %v246, %v262
      %v283 = vmul.f32 %v247, %v262
      %v284 = vmul.f32 %v248, %v262
      %v285 = vmul.f32 %v249, %v262
      %v286 = vmul.f32 %v250, %v262
      %v287 = vmul.f32 %v251, %v262
      %v288 = vmul.f32 %v252, %v262
      %v289 = vmul.f32 %v253, %v262
      %v290 = vmul.f32 %v254, %v262
      %v291 = vmul.f32 %v255, %v262
      %v292 = vmul.f32 %v256, %v262
      %v293 = vmul.f32 %v257, %v262
      %v294 = vmul.f32 %v258, %v262
      %v295 = vmul.f32 %v259, %v262
      %v296 = vld [vmem:[%s2] sm:$0x1]
      %v298 = vperm.slane %v296, 0
      %v300 = vadd.f32 %v264, %v298
      %v301 = vadd.f32 %v265, %v298
      %v302 = vadd.f32 %v266, %v298
      %v303 = vadd.f32 %v267, %v298
      %v304 = vadd.f32 %v268, %v298
      %v305 = vadd.f32 %v269, %v298
      %v306 = vadd.f32 %v270, %v298
      %v307 = vadd.f32 %v271, %v298
      %v308 = vadd.f32 %v272, %v298
      %v309 = vadd.f32 %v273, %v298
      %v310 = vadd.f32 %v274, %v298
      %v311 = vadd.f32 %v275, %v298
      %v312 = vadd.f32 %v276, %v298
      %v313 = vadd.f32 %v277, %v298
      %v314 = vadd.f32 %v278, %v298
      %v315 = vadd.f32 %v279, %v298
      %v316 = vadd.f32 %v280, %v298
      %v317 = vadd.f32 %v281, %v298
      %v318 = vadd.f32 %v282, %v298
      %v319 = vadd.f32 %v283, %v298
      %v320 = vadd.f32 %v284, %v298
      %v321 = vadd.f32 %v285, %v298
      %v322 = vadd.f32 %v286, %v298
      %v323 = vadd.f32 %v287, %v298
      %v324 = vadd.f32 %v288, %v298
      %v325 = vadd.f32 %v289, %v298
      %v326 = vadd.f32 %v290, %v298
      %v327 = vadd.f32 %v291, %v298
      %v328 = vadd.f32 %v292, %v298
      %v329 = vadd.f32 %v293, %v298
      %v330 = vadd.f32 %v294, %v298
      %v331 = vadd.f32 %v295, %v298
      %v332 = vmax.f32 %v300, 0.0
      %v333 = vmax.f32 %v301, 0.0
      %v334 = vmax.f32 %v302, 0.0
      %v335 = vmax.f32 %v303, 0.0
      %v336 = vmax.f32 %v304, 0.0
      %v337 = vmax.f32 %v305, 0.0
      %v338 = vmax.f32 %v306, 0.0
      %v339 = vmax.f32 %v307, 0.0
      %v340 = vmax.f32 %v308, 0.0
      %v341 = vmax.f32 %v309, 0.0
      %v342 = vmax.f32 %v310, 0.0
      %v343 = vmax.f32 %v311, 0.0
      %v344 = vmax.f32 %v312, 0.0
      %v345 = vmax.f32 %v313, 0.0
      %v346 = vmax.f32 %v314, 0.0
      %v347 = vmax.f32 %v315, 0.0
      %v348 = vmax.f32 %v316, 0.0
      %v349 = vmax.f32 %v317, 0.0
      %v350 = vmax.f32 %v318, 0.0
      %v351 = vmax.f32 %v319, 0.0
      %v352 = vmax.f32 %v320, 0.0
      %v353 = vmax.f32 %v321, 0.0
      %v354 = vmax.f32 %v322, 0.0
      %v355 = vmax.f32 %v323, 0.0
      %v356 = vmax.f32 %v324, 0.0
      %v357 = vmax.f32 %v325, 0.0
      %v358 = vmax.f32 %v326, 0.0
      %v359 = vmax.f32 %v327, 0.0
      %v360 = vmax.f32 %v328, 0.0
      %v361 = vmax.f32 %v329, 0.0
      %v362 = vmax.f32 %v330, 0.0
      %v363 = vmax.f32 %v331, 0.0
      %v364 = vpack.c.bf16 %v333, %v332
      %v365 = vpack.c.bf16 %v335, %v334
      %v366 = vpack.c.bf16 %v337, %v336
      %v367 = vpack.c.bf16 %v339, %v338
      %v368 = vpack.c.bf16 %v341, %v340
      %v369 = vpack.c.bf16 %v343, %v342
      %v370 = vpack.c.bf16 %v345, %v344
      %v371 = vpack.c.bf16 %v347, %v346
      %v372 = vpack.c.bf16 %v349, %v348
      %v373 = vpack.c.bf16 %v351, %v350
      %v374 = vpack.c.bf16 %v353, %v352
      %v375 = vpack.c.bf16 %v355, %v354
      %v376 = vpack.c.bf16 %v357, %v356
      %v377 = vpack.c.bf16 %v359, %v358
      %v378 = vpack.c.bf16 %v361, %v360
      %v379 = vpack.c.bf16 %v363, %v362
      %v380 = vld [vmem:[%s3] sm:$0xf]
      %v381 = vld [vmem:[%s3 + $0x4] sm:$0xf]
      %v382 = vld [vmem:[%s3 + $0x8] sm:$0xf]
      %v383 = vld [vmem:[%s3 + $0xc] sm:$0xf]
      %v384 = vld [vmem:[%s3 + $0x10] sm:$0xf]
      %v385 = vld [vmem:[%s3 + $0x14] sm:$0xf]
      %v386 = vld [vmem:[%s3 + $0x18] sm:$0xf]
      %v387 = vld [vmem:[%s3 + $0x1c] sm:$0xf]
      %v388 = vld [vmem:[%s3 + $0x20] sm:$0xf]
      %v389 = vld [vmem:[%s3 + $0x24] sm:$0xf]
      %v390 = vld [vmem:[%s3 + $0x28] sm:$0xf]
      %v391 = vld [vmem:[%s3 + $0x2c] sm:$0xf]
      %v392 = vld [vmem:[%s3 + $0x30] sm:$0xf]
      %v393 = vld [vmem:[%s3 + $0x34] sm:$0xf]
      %v394 = vld [vmem:[%s3 + $0x38] sm:$0xf]
      %v395 = vld [vmem:[%s3 + $0x3c] sm:$0xf]
      %v396 = vld [vmem:[%s4] sm:$0x1]
      %v398 = vperm.slane %v396, 0
      %v416 = vunpack.c.l.b16 %v380
      %v417 = vunpack.c.l.b16 %v381
      %v418 = vunpack.c.l.b16 %v382
      %v419 = vunpack.c.l.b16 %v383
      %v420 = vunpack.c.l.b16 %v384
      %v421 = vunpack.c.l.b16 %v385
      %v422 = vunpack.c.l.b16 %v386
      %v423 = vunpack.c.l.b16 %v387
      %v424 = vunpack.c.l.b16 %v388
      %v425 = vunpack.c.l.b16 %v389
      %v426 = vunpack.c.l.b16 %v390
      %v427 = vunpack.c.l.b16 %v391
      %v428 = vunpack.c.l.b16 %v392
      %v429 = vunpack.c.l.b16 %v393
      %v430 = vunpack.c.l.b16 %v394
      %v431 = vunpack.c.l.b16 %v395
      %v432 = vpack.c.b16 %v417, %v416
      %v433 = vpack.c.b16 %v419, %v418
      %v434 = vpack.c.b16 %v421, %v420
      %v435 = vpack.c.b16 %v423, %v422
      %v436 = vpack.c.b16 %v425, %v424
      %v437 = vpack.c.b16 %v427, %v426
      %v438 = vpack.c.b16 %v429, %v428
      %v439 = vpack.c.b16 %v431, %v430
      %448 = vmatpush.bf16.msra.mxu0 %v439
      %449 = vmatpush.bf16.msra.mxu0 %v438
      %450 = vmatpush.bf16.msra.mxu0 %v437
      %451 = vmatpush.bf16.msra.mxu0 %v436
      %452 = vmatpush.bf16.msra.mxu0 %v435
      %453 = vmatpush.bf16.msra.mxu0 %v434
      %454 = vmatpush.bf16.msra.mxu0 %v433
      %455 = vmatpush.bf16.msra.mxu0 %v432
      %456 = vmatmul.bf16.gmra.mxu0 %v364
      %v457 = vpop.f32.mrf.mxu0
      %v458 = vadd.f32 %v398, %v457
      %v459 = vpop.f32.mrf.mxu0
      %v460 = vadd.f32 %v398, %v459
      %461 = vmatmul.bf16.gmra.mxu0 %v365
      %v462 = vpop.f32.mrf.mxu0
      %v463 = vadd.f32 %v398, %v462
      %v464 = vpop.f32.mrf.mxu0
      %v465 = vadd.f32 %v398, %v464
      %466 = vmatmul.bf16.gmra.mxu0 %v366
      %v467 = vpop.f32.mrf.mxu0
      %v468 = vadd.f32 %v398, %v467
      %v469 = vpop.f32.mrf.mxu0
      %v470 = vadd.f32 %v398, %v469
      %471 = vmatmul.bf16.gmra.mxu0 %v367
      %v472 = vpop.f32.mrf.mxu0
      %v473 = vadd.f32 %v398, %v472
      %v474 = vpop.f32.mrf.mxu0
      %v475 = vadd.f32 %v398, %v474
      %476 = vmatmul.bf16.gmra.mxu0 %v368
      %v477 = vpop.f32.mrf.mxu0
      %v478 = vadd.f32 %v398, %v477
      %v479 = vpop.f32.mrf.mxu0
      %v480 = vadd.f32 %v398, %v479
      %481 = vmatmul.bf16.gmra.mxu0 %v369
      %v482 = vpop.f32.mrf.mxu0
      %v483 = vadd.f32 %v398, %v482
      %v484 = vpop.f32.mrf.mxu0
      %v485 = vadd.f32 %v398, %v484
      %486 = vmatmul.bf16.gmra.mxu0 %v370
      %v487 = vpop.f32.mrf.mxu0
      %v488 = vadd.f32 %v398, %v487
      %v489 = vpop.f32.mrf.mxu0
      %v490 = vadd.f32 %v398, %v489
      %491 = vmatmul.bf16.gmra.mxu0 %v371
      %v492 = vpop.f32.mrf.mxu0
      %v493 = vadd.f32 %v398, %v492
      %v494 = vpop.f32.mrf.mxu0
      %v495 = vadd.f32 %v398, %v494
      %496 = vmatmul.bf16.gmra.mxu0 %v372
      %v497 = vpop.f32.mrf.mxu0
      %v498 = vadd.f32 %v398, %v497
      %v499 = vpop.f32.mrf.mxu0
      %v500 = vadd.f32 %v398, %v499
      %501 = vmatmul.bf16.gmra.mxu0 %v373
      %v502 = vpop.f32.mrf.mxu0
      %v503 = vadd.f32 %v398, %v502
      %v504 = vpop.f32.mrf.mxu0
      %v505 = vadd.f32 %v398, %v504
      %506 = vmatmul.bf16.gmra.mxu0 %v374
      %v507 = vpop.f32.mrf.mxu0
      %v508 = vadd.f32 %v398, %v507
      %v509 = vpop.f32.mrf.mxu0
      %v510 = vadd.f32 %v398, %v509
      %511 = vmatmul.bf16.gmra.mxu0 %v375
      %v512 = vpop.f32.mrf.mxu0
      %v513 = vadd.f32 %v398, %v512
      %v514 = vpop.f32.mrf.mxu0
      %v515 = vadd.f32 %v398, %v514
      %516 = vmatmul.bf16.gmra.mxu0 %v376
      %v517 = vpop.f32.mrf.mxu0
      %v518 = vadd.f32 %v398, %v517
      %v519 = vpop.f32.mrf.mxu0
      %v520 = vadd.f32 %v398, %v519
      %521 = vmatmul.bf16.gmra.mxu0 %v377
      %v522 = vpop.f32.mrf.mxu0
      %v523 = vadd.f32 %v398, %v522
      %v524 = vpop.f32.mrf.mxu0
      %v525 = vadd.f32 %v398, %v524
      %526 = vmatmul.bf16.gmra.mxu0 %v378
      %v527 = vpop.f32.mrf.mxu0
      %v528 = vadd.f32 %v398, %v527
      %v529 = vpop.f32.mrf.mxu0
      %v530 = vadd.f32 %v398, %v529
      %531 = vmatmul.bf16.gmra.mxu0 %v379
      %v532 = vpop.f32.mrf.mxu0
      %v533 = vadd.f32 %v398, %v532
      %v534 = vpop.f32.mrf.mxu0
      %v535 = vadd.f32 %v398, %v534
      %536 = vdwg.mxu0
      %537 = vst [vmem:[%s226] sm:$0xff] %v458
      %538 = vst [vmem:[%s226 + $0x8] sm:$0xff] %v460
      %539 = vst [vmem:[%s226 + $0x10] sm:$0xff] %v463
      %540 = vst [vmem:[%s226 + $0x18] sm:$0xff] %v465
      %541 = vst [vmem:[%s226 + $0x20] sm:$0xff] %v468
      %542 = vst [vmem:[%s226 + $0x28] sm:$0xff] %v470
      %543 = vst [vmem:[%s226 + $0x30] sm:$0xff] %v473
      %544 = vst [vmem:[%s226 + $0x38] sm:$0xff] %v475
      %545 = vst [vmem:[%s226 + $0x40] sm:$0xff] %v478
      %546 = vst [vmem:[%s226 + $0x48] sm:$0xff] %v480
      %547 = vst [vmem:[%s226 + $0x50] sm:$0xff] %v483
      %548 = vst [vmem:[%s226 + $0x58] sm:$0xff] %v485
      %549 = vst [vmem:[%s226 + $0x60] sm:$0xff] %v488
      %550 = vst [vmem:[%s226 + $0x68] sm:$0xff] %v490
      %551 = vst [vmem:[%s226 + $0x70] sm:$0xff] %v493
      %552 = vst [vmem:[%s226 + $0x78] sm:$0xff] %v495
      %553 = vst [vmem:[%s226 + $0x80] sm:$0xff] %v498
      %554 = vst [vmem:[%s226 + $0x88] sm:$0xff] %v500
      %555 = vst [vmem:[%s226 + $0x90] sm:$0xff] %v503
      %556 = vst [vmem:[%s226 + $0x98] sm:$0xff] %v505
      %557 = vst [vmem:[%s226 + $0xa0] sm:$0xff] %v508
      %558 = vst [vmem:[%s226 + $0xa8] sm:$0xff] %v510
      %559 = vst [vmem:[%s226 + $0xb0] sm:$0xff] %v513
      %560 = vst [vmem:[%s226 + $0xb8] sm:$0xff] %v515
      %561 = vst [vmem:[%s226 + $0xc0] sm:$0xff] %v518
      %562 = vst [vmem:[%s226 + $0xc8] sm:$0xff] %v520
      %563 = vst [vmem:[%s226 + $0xd0] sm:$0xff] %v523
      %564 = vst [vmem:[%s226 + $0xd8] sm:$0xff] %v525
      %565 = vst [vmem:[%s226 + $0xe0] sm:$0xff] %v528
      %566 = vst [vmem:[%s226 + $0xe8] sm:$0xff] %v530
      %567 = vst [vmem:[%s226 + $0xf0] sm:$0xff] %v533
      %568 = vst [vmem:[%s226 + $0xf8] sm:$0xff] %v535
      %s569 = smul.u32 32, %s16
      %p570 = scmp.lt.s32.totalorder %s569, 63
      %s571 = scalar_select %p570, %s569, 63
      %s572 = smul.addr %s571, 8
      %s573 = scalar_lea.vmem %s5, %s572
      // Predicated region
      $region41: #{seg_head.5} parent=39 // pred_check
        %p574 = pneg %p144
      $region42: #{seg_head.5} parent=39 // pred_check_branch
        %576 = sbr.rel (%p574) target = $region44
      $region43: #{seg_head.5} parent=39 // pred_region
        %s577 = smul.u32 32, %s16
      $region44: #{seg_head.5} parent=39 // pred_fallthru
        _
    $region40: #{seg_head.5} parent=5 // pred_fallthru
      _
    %p578 = scmp.le.s32.totalorder 2, %s11
    // Predicated region
    $region45: #{seg_head.5} parent=5 // pred_check
      %p579 = pneg %p578
    $region46: #{seg_head.5} parent=5 // pred_check_branch
      %581 = sbr.rel (%p579) target = $region48
    $region47: #{seg_head.5} parent=5 // pred_region
      %s582 = ssub.s32 %s11, 2
      // Predicated region
      $region49: #{seg_head.5} parent=47 // pred_check
        %p583 = pneg %p150
      $region50: #{seg_head.5} parent=47 // pred_check_branch
        %585 = sbr.rel (%p583) target = $region52
      $region51: #{seg_head.5} parent=47 // pred_region
        %s586 = smul.u32 32, %s17
        %p587 = scmp.lt.s32.totalorder %s586, 63
        %s588 = scalar_select %p587, %s586, 63
        %s589 = smul.addr %s588, 8
        %s590 = scalar_lea.vmem %s5, %s589
      $region52: #{seg_head.5} parent=47 // pred_fallthru
        _
    $region48: #{seg_head.5} parent=5 // pred_fallthru
      _
  $region6: #{seg_head.5} parent=0 // loop_footer
    %s15 = sadd.s32 1, %s11
  $region7: #{seg_head.5} parent=0 // loop_footer_branch
    %10 = sbr.rel target = $region3
  $region8: #{seg_head.5} parent=0 // loop_exit
    _

// kernel: seg_head.4
$region0: #{seg_head.4}
  #allocation0 [shape = 'u32[]', space=smem, size = 0x4, offset = 0x4, fixed_abs, tag = 'smem constant byte address 0x4 - core index']
  #allocation1 [shape = 'u32[72,128]{1,0:T(1,128)}', space=vmem, size = 0x9000, scoped, tag = 'internal scratch']
  %s0 = inlined_call_operand.vmem [shape: f32[2,16,16,128], index: 0, kind: input, shape index: {}]
  %s1 = inlined_call_operand.vmem [shape: f32[1,128], index: 1, kind: input, shape index: {}]
  %s2 = inlined_call_operand.vmem [shape: f32[1,128], index: 2, kind: input, shape index: {}]
  %s3 = inlined_call_operand.vmem [shape: bf16[1152,128], index: 3, kind: input, shape index: {}]
  %s4 = inlined_call_operand.vmem [shape: f32[1,128], index: 4, kind: input, shape index: {}]
  %s5 = inlined_call_operand.vmem [shape: f32[2,16,16,128], index: 5, kind: output, shape index: {0}]
  %s6 = inlined_call_operand.vmem [shape: f32[2,2,128], index: 6, kind: output, shape index: {1}]
  %7 = xla_tuple %s5, %s6
  %s8 = sld [smem:[#allocation0]]
  $region61: #{seg_head.4} parent=0
    _
  %s10 = ssub.s32 1, %s8
  %s11 = scalar_select 0, %s10, %s8
  loop: start=0, step=1, limit=4
  $region2: #{seg_head.4} parent=0 // loop_pre_header
    _
  $region3: #{seg_head.4} parent=0 // loop_header
    %s13 = sphi 0, %s17
    %p14 = scmp.ge.s32.totalorder %s13, 4
    %s23 = sphi 0, %s25
    %s26 = sphi 0, %s23
    %s27 = sphi 0, %s26
    %s43 = sphi 0, %s27
    %s47 = sphi 0, %s47
    %s49 = sphi 0, %s47
    %s50 = sphi 0, %s49
    %s64 = sphi 0, %s50
    %s68 = sphi 0, %s68
    %s70 = sphi 0, %s68
    %s71 = sphi 0, %s70
    %s85 = sphi 0, %s71
    %s89 = sphi 0, %s89
    %s91 = sphi 0, %s89
    %s92 = sphi 0, %s91
    %s106 = sphi 0, %s92
    %s110 = sphi 0, %s110
    %s112 = sphi 0, %s110
    %s113 = sphi 0, %s112
    %s127 = sphi 0, %s113
    %s133 = sphi 0, %s135
    %s136 = sphi 0, %s133
    %s137 = sphi 0, %s136
    %s153 = sphi 0, %s137
    %s159 = sphi 0, %s161
    %s162 = sphi 0, %s159
    %s163 = sphi 0, %s162
    %s179 = sphi 0, %s163
  $region4: #{seg_head.4} parent=0 // loop_header_branch
    %16 = sbr.rel (%p14) target = $region8
  $region5: #{seg_head.4} parent=0 // loop_body
    %s18 = ssub.s32 %s13, 1
    %s19 = ssub.s32 %s13, 2
    %s20 = sadd.s32 %s13, 1
    %s21 = ssub.s32 %s13, %s20
    %p22 = scmp.eq.s32.totalorder %s21, 0
    %s24 = sadd.s32 %s23, 1
    %s25 = scalar_select %p22, %s23, %s24
    %p28 = pneg %p22
    %p29 = scmp.eq.s32.totalorder %s13, 1
    %p30 = por %p28, %p29
    %p31 = scmp.ne.s32.totalorder %s23, %s26
    %p32 = scmp.eq.s32.totalorder %s13, 0
    %p33 = por %p31, %p32
    %p34 = scmp.ne.s32.totalorder %s23, %s26
    %p35 = scmp.eq.s32.totalorder %s18, 1
    %p36 = por %p34, %p35
    %p37 = scmp.ne.s32.totalorder %s26, %s27
    %p38 = scmp.eq.s32.totalorder %s18, 0
    %p39 = por %p37, %p38
    %p40 = scmp.ne.s32.totalorder %s26, %s27
    %p41 = scmp.eq.s32.totalorder %s19, 1
    %p42 = por %p40, %p41
    %p44 = scmp.ne.s32.totalorder %s27, %s43
    %p45 = scmp.eq.s32.totalorder %s19, 0
    %p46 = por %p44, %p45
    %s48 = sadd.s32 %s47, 1
    %p51 = scmp.eq.s32.totalorder %s13, 1
    %p52 = scmp.ne.s32.totalorder %s47, %s49
    %p53 = scmp.eq.s32.totalorder %s13, 0
    %p54 = por %p52, %p53
    %p55 = scmp.ne.s32.totalorder %s47, %s49
    %p56 = scmp.eq.s32.totalorder %s18, 1
    %p57 = por %p55, %p56
    %p58 = scmp.ne.s32.totalorder %s49, %s50
    %p59 = scmp.eq.s32.totalorder %s18, 0
    %p60 = por %p58, %p59
    %p61 = scmp.ne.s32.totalorder %s49, %s50
    %p62 = scmp.eq.s32.totalorder %s19, 1
    %p63 = por %p61, %p62
    %p65 = scmp.ne.s32.totalorder %s50, %s64
    %p66 = scmp.eq.s32.totalorder %s19, 0
    %p67 = por %p65, %p66
    %s69 = sadd.s32 %s68, 1
    %p72 = scmp.eq.s32.totalorder %s13, 1
    %p73 = scmp.ne.s32.totalorder %s68, %s70
    %p74 = scmp.eq.s32.totalorder %s13, 0
    %p75 = por %p73, %p74
    %p76 = scmp.ne.s32.totalorder %s68, %s70
    %p77 = scmp.eq.s32.totalorder %s18, 1
    %p78 = por %p76, %p77
    %p79 = scmp.ne.s32.totalorder %s70, %s71
    %p80 = scmp.eq.s32.totalorder %s18, 0
    %p81 = por %p79, %p80
    %p82 = scmp.ne.s32.totalorder %s70, %s71
    %p83 = scmp.eq.s32.totalorder %s19, 1
    %p84 = por %p82, %p83
    %p86 = scmp.ne.s32.totalorder %s71, %s85
    %p87 = scmp.eq.s32.totalorder %s19, 0
    %p88 = por %p86, %p87
    %s90 = sadd.s32 %s89, 1
    %p93 = scmp.eq.s32.totalorder %s13, 1
    %p94 = scmp.ne.s32.totalorder %s89, %s91
    %p95 = scmp.eq.s32.totalorder %s13, 0
    %p96 = por %p94, %p95
    %p97 = scmp.ne.s32.totalorder %s89, %s91
    %p98 = scmp.eq.s32.totalorder %s18, 1
    %p99 = por %p97, %p98
    %p100 = scmp.ne.s32.totalorder %s91, %s92
    %p101 = scmp.eq.s32.totalorder %s18, 0
    %p102 = por %p100, %p101
    %p103 = scmp.ne.s32.totalorder %s91, %s92
    %p104 = scmp.eq.s32.totalorder %s19, 1
    %p105 = por %p103, %p104
    %p107 = scmp.ne.s32.totalorder %s92, %s106
    %p108 = scmp.eq.s32.totalorder %s19, 0
    %p109 = por %p107, %p108
    %s111 = sadd.s32 %s110, 1
    %p114 = scmp.eq.s32.totalorder %s13, 1
    %p115 = scmp.ne.s32.totalorder %s110, %s112
    %p116 = scmp.eq.s32.totalorder %s13, 0
    %p117 = por %p115, %p116
    %p118 = scmp.ne.s32.totalorder %s110, %s112
    %p119 = scmp.eq.s32.totalorder %s18, 1
    %p120 = por %p118, %p119
    %p121 = scmp.ne.s32.totalorder %s112, %s113
    %p122 = scmp.eq.s32.totalorder %s18, 0
    %p123 = por %p121, %p122
    %p124 = scmp.ne.s32.totalorder %s112, %s113
    %p125 = scmp.eq.s32.totalorder %s19, 1
    %p126 = por %p124, %p125
    %p128 = scmp.ne.s32.totalorder %s113, %s127
    %p129 = scmp.eq.s32.totalorder %s19, 0
    %p130 = por %p128, %p129
    %s131 = ssub.s32 %s13, %s20
    %p132 = scmp.eq.s32.totalorder %s131, 0
    %s134 = sadd.s32 %s133, 1
    %s135 = scalar_select %p132, %s133, %s134
    %p138 = pneg %p132
    %p139 = scmp.eq.s32.totalorder %s13, 1
    %p140 = por %p138, %p139
    %p141 = scmp.ne.s32.totalorder %s133, %s136
    %p142 = scmp.eq.s32.totalorder %s13, 0
    %p143 = por %p141, %p142
    %p144 = scmp.ne.s32.totalorder %s133, %s136
    %p145 = scmp.eq.s32.totalorder %s18, 1
    %p146 = por %p144, %p145
    %p147 = scmp.ne.s32.totalorder %s136, %s137
    %p148 = scmp.eq.s32.totalorder %s18, 0
    %p149 = por %p147, %p148
    %p150 = scmp.ne.s32.totalorder %s136, %s137
    %p151 = scmp.eq.s32.totalorder %s19, 1
    %p152 = por %p150, %p151
    %p154 = scmp.ne.s32.totalorder %s137, %s153
    %p155 = scmp.eq.s32.totalorder %s19, 0
    %p156 = por %p154, %p155
    %s157 = ssub.s32 %s13, %s20
    %p158 = scmp.eq.s32.totalorder %s157, 0
    %s160 = sadd.s32 %s159, 1
    %s161 = scalar_select %p158, %s159, %s160
    %p164 = pneg %p158
    %p165 = scmp.eq.s32.totalorder %s13, 1
    %p166 = por %p164, %p165
    %p167 = scmp.ne.s32.totalorder %s159, %s162
    %p168 = scmp.eq.s32.totalorder %s13, 0
    %p169 = por %p167, %p168
    %p170 = scmp.ne.s32.totalorder %s159, %s162
    %p171 = scmp.eq.s32.totalorder %s18, 1
    %p172 = por %p170, %p171
    %p173 = scmp.ne.s32.totalorder %s162, %s163
    %p174 = scmp.eq.s32.totalorder %s18, 0
    %p175 = por %p173, %p174
    %p176 = scmp.ne.s32.totalorder %s162, %s163
    %p177 = scmp.eq.s32.totalorder %s19, 1
    %p178 = por %p176, %p177
    %p180 = scmp.ne.s32.totalorder %s163, %s179
    %p181 = scmp.eq.s32.totalorder %s19, 0
    %p182 = por %p180, %p181
    %p183 = scmp.le.s32.totalorder 1, %s13
    %p184 = scmp.lt.s32.totalorder %s13, 3
    %p185 = pnand %p183, %p184
    %p186 = pneg %p185
    // Predicated region
    $region9: #{seg_head.4} parent=5 // pred_check
      _
    $region10: #{seg_head.4} parent=5 // pred_check_branch
      %188 = sbr.rel (%p185) target = $region12
    $region11: #{seg_head.4} parent=5 // pred_region
      %s189 = ssub.s32 %s13, 1
      // Predicated region
      $region13: #{seg_head.4} parent=11 // pred_check
        %p190 = pneg %p60
      $region14: #{seg_head.4} parent=11 // pred_check_branch
        %192 = sbr.rel (%p190) target = $region16
      $region15: #{seg_head.4} parent=11 // pred_region
        _
      $region16: #{seg_head.4} parent=11 // pred_fallthru
        _
      // Predicated region
      $region17: #{seg_head.4} parent=11 // pred_check
        %p193 = pneg %p81
      $region18: #{seg_head.4} parent=11 // pred_check_branch
        %195 = sbr.rel (%p193) target = $region20
      $region19: #{seg_head.4} parent=11 // pred_region
        _
      $region20: #{seg_head.4} parent=11 // pred_fallthru
        _
      // Predicated region
      $region21: #{seg_head.4} parent=11 // pred_check
        %p196 = pneg %p102
      $region22: #{seg_head.4} parent=11 // pred_check_branch
        %198 = sbr.rel (%p196) target = $region24
      $region23: #{seg_head.4} parent=11 // pred_region
        _
      $region24: #{seg_head.4} parent=11 // pred_fallthru
        _
      // Predicated region
      $region25: #{seg_head.4} parent=11 // pred_check
        %p199 = pneg %p123
      $region26: #{seg_head.4} parent=11 // pred_check_branch
        %201 = sbr.rel (%p199) target = $region28
      $region27: #{seg_head.4} parent=11 // pred_region
        _
      $region28: #{seg_head.4} parent=11 // pred_fallthru
        _
    $region12: #{seg_head.4} parent=5 // pred_fallthru
      _
    %p202 = scmp.lt.s32.totalorder %s13, 2
    // Predicated region
    $region29: #{seg_head.4} parent=5 // pred_check
      %p203 = pneg %p202
    $region30: #{seg_head.4} parent=5 // pred_check_branch
      %205 = sbr.rel (%p203) target = $region32
    $region31: #{seg_head.4} parent=5 // pred_region
      // Predicated region
      $region33: #{seg_head.4} parent=31 // pred_check
        %p206 = pneg %p33
      $region34: #{seg_head.4} parent=31 // pred_check_branch
        %208 = sbr.rel (%p206) target = $region36
      $region35: #{seg_head.4} parent=31 // pred_region
        %p209 = scmp.lt.s32.totalorder %s13, 1
        %s210 = scalar_select %p209, %s13, 1
        %s211 = smul.addr %s210, 32
        %s212 = smul.addr %s211, 8
        %s213 = scalar_lea.vmem %s0, %s212
      $region36: #{seg_head.4} parent=31 // pred_fallthru
        _
    $region32: #{seg_head.4} parent=5 // pred_fallthru
      _
    %p214 = scmp.le.s32.totalorder 1, %s13
    %p215 = scmp.lt.s32.totalorder %s13, 3
    %p216 = pnand %p214, %p215
    %p217 = pneg %p216
    // Predicated region
    $region37: #{seg_head.4} parent=5 // pred_check
      _
    $region38: #{seg_head.4} parent=5 // pred_check_branch
      %219 = sbr.rel (%p216) target = $region40
    $region39: #{seg_head.4} parent=5 // pred_region
      %s220 = ssub.s32 %s13, 1
      %p221 = scmp.lt.s32.totalorder %s18, 1
      %s222 = scalar_select %p221, %s18, 1
      %s223 = smul.addr %s222, 32
      %s224 = smul.addr %s223, 8
      %s225 = scalar_lea.vmem %s0, %s224
      %p226 = pneg %p39
      %p227 = pneg %p36
      %p228 = pneg %p60
      %p229 = pneg %p57
      %p230 = pneg %p81
      %p231 = pneg %p78
      %p232 = pneg %p102
      %p233 = pneg %p99
      %p234 = pneg %p123
      %p235 = pneg %p120
      %p236 = pneg %p149
      %p237 = pneg %p146
      %p238 = scmp.lt.s32.totalorder %s18, 1
      %s239 = scalar_select %p238, %s18, 1
      %s240 = smul.addr %s239, 32
      %s241 = smul.addr %s240, 8
      %s242 = scalar_lea.vmem %s5, %s241
      %p243 = pneg %p175
      %p244 = pneg %p172
      %p245 = scmp.lt.s32.totalorder %s18, 1
      %s246 = scalar_select %p245, %s18, 1
      %s247 = smul.addr %s246, 2
      %s248 = scalar_lea.vmem %s6, %s247
      %p249 = scmp.lt.s32.totalorder %s18, 1
      %s250 = scalar_select %p249, %s18, 1
      %s251 = smul.addr %s250, 32
      %s252 = smul.addr %s251, 8
      %s253 = scalar_lea.vmem %s0, %s252
      %p254 = scmp.lt.s32.totalorder %s18, 1
      %s255 = scalar_select %p254, %s18, 1
      %s256 = smul.addr %s255, 32
      %s257 = smul.addr %s256, 8
      %s258 = scalar_lea.vmem %s5, %s257
      %p259 = scmp.lt.s32.totalorder %s18, 1
      %s260 = scalar_select %p259, %s18, 1
      %s261 = smul.addr %s260, 2
      %s262 = scalar_lea.vmem %s6, %s261
      %v263 = vld [vmem:[%s253] sm:$0xff]
      %v264 = vld [vmem:[%s253 + $0x8] sm:$0xff]
      %v265 = vld [vmem:[%s253 + $0x10] sm:$0xff]
      %v266 = vld [vmem:[%s253 + $0x18] sm:$0xff]
      %v267 = vld [vmem:[%s253 + $0x20] sm:$0xff]
      %v268 = vld [vmem:[%s253 + $0x28] sm:$0xff]
      %v269 = vld [vmem:[%s253 + $0x30] sm:$0xff]
      %v270 = vld [vmem:[%s253 + $0x38] sm:$0xff]
      %v271 = vld [vmem:[%s253 + $0x40] sm:$0xff]
      %v272 = vld [vmem:[%s253 + $0x48] sm:$0xff]
      %v273 = vld [vmem:[%s253 + $0x50] sm:$0xff]
      %v274 = vld [vmem:[%s253 + $0x58] sm:$0xff]
      %v275 = vld [vmem:[%s253 + $0x60] sm:$0xff]
      %v276 = vld [vmem:[%s253 + $0x68] sm:$0xff]
      %v277 = vld [vmem:[%s253 + $0x70] sm:$0xff]
      %v278 = vld [vmem:[%s253 + $0x78] sm:$0xff]
      %v279 = vld [vmem:[%s253 + $0x80] sm:$0xff]
      %v280 = vld [vmem:[%s253 + $0x88] sm:$0xff]
      %v281 = vld [vmem:[%s253 + $0x90] sm:$0xff]
      %v282 = vld [vmem:[%s253 + $0x98] sm:$0xff]
      %v283 = vld [vmem:[%s253 + $0xa0] sm:$0xff]
      %v284 = vld [vmem:[%s253 + $0xa8] sm:$0xff]
      %v285 = vld [vmem:[%s253 + $0xb0] sm:$0xff]
      %v286 = vld [vmem:[%s253 + $0xb8] sm:$0xff]
      %v287 = vld [vmem:[%s253 + $0xc0] sm:$0xff]
      %v288 = vld [vmem:[%s253 + $0xc8] sm:$0xff]
      %v289 = vld [vmem:[%s253 + $0xd0] sm:$0xff]
      %v290 = vld [vmem:[%s253 + $0xd8] sm:$0xff]
      %v291 = vld [vmem:[%s253 + $0xe0] sm:$0xff]
      %v292 = vld [vmem:[%s253 + $0xe8] sm:$0xff]
      %v293 = vld [vmem:[%s253 + $0xf0] sm:$0xff]
      %v294 = vld [vmem:[%s253 + $0xf8] sm:$0xff]
      %v295 = vld [vmem:[%s1] sm:$0x1]
      %v297 = vperm.slane %v295, 0
      %v299 = vmul.f32 %v263, %v297
      %v300 = vmul.f32 %v264, %v297
      %v301 = vmul.f32 %v265, %v297
      %v302 = vmul.f32 %v266, %v297
      %v303 = vmul.f32 %v267, %v297
      %v304 = vmul.f32 %v268, %v297
      %v305 = vmul.f32 %v269, %v297
      %v306 = vmul.f32 %v270, %v297
      %v307 = vmul.f32 %v271, %v297
      %v308 = vmul.f32 %v272, %v297
      %v309 = vmul.f32 %v273, %v297
      %v310 = vmul.f32 %v274, %v297
      %v311 = vmul.f32 %v275, %v297
      %v312 = vmul.f32 %v276, %v297
      %v313 = vmul.f32 %v277, %v297
      %v314 = vmul.f32 %v278, %v297
      %v315 = vmul.f32 %v279, %v297
      %v316 = vmul.f32 %v280, %v297
      %v317 = vmul.f32 %v281, %v297
      %v318 = vmul.f32 %v282, %v297
      %v319 = vmul.f32 %v283, %v297
      %v320 = vmul.f32 %v284, %v297
      %v321 = vmul.f32 %v285, %v297
      %v322 = vmul.f32 %v286, %v297
      %v323 = vmul.f32 %v287, %v297
      %v324 = vmul.f32 %v288, %v297
      %v325 = vmul.f32 %v289, %v297
      %v326 = vmul.f32 %v290, %v297
      %v327 = vmul.f32 %v291, %v297
      %v328 = vmul.f32 %v292, %v297
      %v329 = vmul.f32 %v293, %v297
      %v330 = vmul.f32 %v294, %v297
      %v331 = vld [vmem:[%s2] sm:$0x1]
      %v333 = vperm.slane %v331, 0
      %v335 = vadd.f32 %v299, %v333
      %v336 = vadd.f32 %v300, %v333
      %v337 = vadd.f32 %v301, %v333
      %v338 = vadd.f32 %v302, %v333
      %v339 = vadd.f32 %v303, %v333
      %v340 = vadd.f32 %v304, %v333
      %v341 = vadd.f32 %v305, %v333
      %v342 = vadd.f32 %v306, %v333
      %v343 = vadd.f32 %v307, %v333
      %v344 = vadd.f32 %v308, %v333
      %v345 = vadd.f32 %v309, %v333
      %v346 = vadd.f32 %v310, %v333
      %v347 = vadd.f32 %v311, %v333
      %v348 = vadd.f32 %v312, %v333
      %v349 = vadd.f32 %v313, %v333
      %v350 = vadd.f32 %v314, %v333
      %v351 = vadd.f32 %v315, %v333
      %v352 = vadd.f32 %v316, %v333
      %v353 = vadd.f32 %v317, %v333
      %v354 = vadd.f32 %v318, %v333
      %v355 = vadd.f32 %v319, %v333
      %v356 = vadd.f32 %v320, %v333
      %v357 = vadd.f32 %v321, %v333
      %v358 = vadd.f32 %v322, %v333
      %v359 = vadd.f32 %v323, %v333
      %v360 = vadd.f32 %v324, %v333
      %v361 = vadd.f32 %v325, %v333
      %v362 = vadd.f32 %v326, %v333
      %v363 = vadd.f32 %v327, %v333
      %v364 = vadd.f32 %v328, %v333
      %v365 = vadd.f32 %v329, %v333
      %v366 = vadd.f32 %v330, %v333
      %v367 = vmax.f32 %v335, 0.0
      %v368 = vmax.f32 %v336, 0.0
      %v369 = vmax.f32 %v337, 0.0
      %v370 = vmax.f32 %v338, 0.0
      %v371 = vmax.f32 %v339, 0.0
      %v372 = vmax.f32 %v340, 0.0
      %v373 = vmax.f32 %v341, 0.0
      %v374 = vmax.f32 %v342, 0.0
      %v375 = vmax.f32 %v343, 0.0
      %v376 = vmax.f32 %v344, 0.0
      %v377 = vmax.f32 %v345, 0.0
      %v378 = vmax.f32 %v346, 0.0
      %v379 = vmax.f32 %v347, 0.0
      %v380 = vmax.f32 %v348, 0.0
      %v381 = vmax.f32 %v349, 0.0
      %v382 = vmax.f32 %v350, 0.0
      %v383 = vmax.f32 %v351, 0.0
      %v384 = vmax.f32 %v352, 0.0
      %v385 = vmax.f32 %v353, 0.0
      %v386 = vmax.f32 %v354, 0.0
      %v387 = vmax.f32 %v355, 0.0
      %v388 = vmax.f32 %v356, 0.0
      %v389 = vmax.f32 %v357, 0.0
      %v390 = vmax.f32 %v358, 0.0
      %v391 = vmax.f32 %v359, 0.0
      %v392 = vmax.f32 %v360, 0.0
      %v393 = vmax.f32 %v361, 0.0
      %v394 = vmax.f32 %v362, 0.0
      %v395 = vmax.f32 %v363, 0.0
      %v396 = vmax.f32 %v364, 0.0
      %v397 = vmax.f32 %v365, 0.0
      %v398 = vmax.f32 %v366, 0.0
      %vm432 = vcmask 1040384
      %v433 = vrot.slane 0.0, 7
      %v434 = vsel %vm432, %v433, %v433
      %v435 = vrot.slane %v367, 7
      %v436 = vrot.slane %v368, 7
      %v437 = vsel %vm432, %v435, %v436
      %v438 = vrot.slane %v369, 7
      %v439 = vrot.slane %v370, 7
      %v440 = vsel %vm432, %v438, %v439
      %v441 = vrot.slane %v371, 7
      %v442 = vrot.slane %v372, 7
      %v443 = vsel %vm432, %v441, %v442
      %v444 = vrot.slane %v373, 7
      %v445 = vrot.slane %v374, 7
      %v446 = vsel %vm432, %v444, %v445
      %v447 = vrot.slane %v375, 7
      %v448 = vrot.slane %v376, 7
      %v449 = vsel %vm432, %v447, %v448
      %v450 = vrot.slane %v377, 7
      %v451 = vrot.slane %v378, 7
      %v452 = vsel %vm432, %v450, %v451
      %v453 = vrot.slane %v379, 7
      %v454 = vrot.slane %v380, 7
      %v455 = vsel %vm432, %v453, %v454
      %v456 = vrot.slane %v381, 7
      %v457 = vrot.slane %v382, 7
      %v458 = vsel %vm432, %v456, %v457
      %v459 = vrot.slane %v383, 7
      %v460 = vrot.slane %v384, 7
      %v461 = vsel %vm432, %v459, %v460
      %v462 = vrot.slane %v385, 7
      %v463 = vrot.slane %v386, 7
      %v464 = vsel %vm432, %v462, %v463
      %v465 = vrot.slane %v387, 7
      %v466 = vrot.slane %v388, 7
      %v467 = vsel %vm432, %v465, %v466
      %v468 = vrot.slane %v389, 7
      %v469 = vrot.slane %v390, 7
      %v470 = vsel %vm432, %v468, %v469
      %v471 = vrot.slane %v391, 7
      %v472 = vrot.slane %v392, 7
      %v473 = vsel %vm432, %v471, %v472
      %v474 = vrot.slane %v393, 7
      %v475 = vrot.slane %v394, 7
      %v476 = vsel %vm432, %v474, %v475
      %v477 = vrot.slane %v395, 7
      %v478 = vrot.slane %v396, 7
      %v479 = vsel %vm432, %v477, %v478
      %v480 = vrot.slane %v397, 7
      %v481 = vrot.slane %v398, 7
      %v482 = vsel %vm432, %v480, %v481
      %v533 = vsel %vm432, 0.0, %v433
      %v534 = vsel %vm432, 0.0, %v435
      %v535 = vsel %vm432, 0.0, %v438
      %v536 = vsel %vm432, 0.0, %v441
      %v537 = vsel %vm432, 0.0, %v444
      %v538 = vsel %vm432, 0.0, %v447
      %v539 = vsel %vm432, 0.0, %v450
      %v540 = vsel %vm432, 0.0, %v453
      %v541 = vsel %vm432, 0.0, %v456
      %v542 = vsel %vm432, 0.0, %v459
      %v543 = vsel %vm432, 0.0, %v462
      %v544 = vsel %vm432, 0.0, %v465
      %v545 = vsel %vm432, 0.0, %v468
      %v546 = vsel %vm432, 0.0, %v471
      %v547 = vsel %vm432, 0.0, %v474
      %v548 = vsel %vm432, 0.0, %v477
      %v549 = vsel %vm432, 0.0, %v480
      %v550 = vsel %vm432, %v433, 0.0
      %v551 = vsel %vm432, %v436, 0.0
      %v552 = vsel %vm432, %v439, 0.0
      %v553 = vsel %vm432, %v442, 0.0
      %v554 = vsel %vm432, %v445, 0.0
      %v555 = vsel %vm432, %v448, 0.0
      %v556 = vsel %vm432, %v451, 0.0
      %v557 = vsel %vm432, %v454, 0.0
      %v558 = vsel %vm432, %v457, 0.0
      %v559 = vsel %vm432, %v460, 0.0
      %v560 = vsel %vm432, %v463, 0.0
      %v561 = vsel %vm432, %v466, 0.0
      %v562 = vsel %vm432, %v469, 0.0
      %v563 = vsel %vm432, %v472, 0.0
      %v564 = vsel %vm432, %v475, 0.0
      %v565 = vsel %vm432, %v478, 0.0
      %v566 = vsel %vm432, %v481, 0.0
      %vm599 = vcmask 1046528
      %v600 = vrot.slane %v533, 1
      %v601 = vrot.slane %v434, 1
      %v602 = vsel %vm599, %v600, %v601
      %v603 = vrot.slane %v550, 1
      %v604 = vsel %vm599, %v601, %v603
      %v605 = vrot.slane %v534, 1
      %v606 = vrot.slane %v437, 1
      %v607 = vsel %vm599, %v605, %v606
      %v608 = vrot.slane %v551, 1
      %v609 = vsel %vm599, %v606, %v608
      %v610 = vrot.slane %v535, 1
      %v611 = vrot.slane %v440, 1
      %v612 = vsel %vm599, %v610, %v611
      %v613 = vrot.slane %v552, 1
      %v614 = vsel %vm599, %v611, %v613
      %v615 = vrot.slane %v536, 1
      %v616 = vrot.slane %v443, 1
      %v617 = vsel %vm599, %v615, %v616
      %v618 = vrot.slane %v553, 1
      %v619 = vsel %vm599, %v616, %v618
      %v620 = vrot.slane %v537, 1
      %v621 = vrot.slane %v446, 1
      %v622 = vsel %vm599, %v620, %v621
      %v623 = vrot.slane %v554, 1
      %v624 = vsel %vm599, %v621, %v623
      %v625 = vrot.slane %v538, 1
      %v626 = vrot.slane %v449, 1
      %v627 = vsel %vm599, %v625, %v626
      %v628 = vrot.slane %v555, 1
      %v629 = vsel %vm599, %v626, %v628
      %v630 = vrot.slane %v539, 1
      %v631 = vrot.slane %v452, 1
      %v632 = vsel %vm599, %v630, %v631
      %v633 = vrot.slane %v556, 1
      %v634 = vsel %vm599, %v631, %v633
      %v635 = vrot.slane %v540, 1
      %v636 = vrot.slane %v455, 1
      %v637 = vsel %vm599, %v635, %v636
      %v638 = vrot.slane %v557, 1
      %v639 = vsel %vm599, %v636, %v638
      %v640 = vrot.slane %v541, 1
      %v641 = vrot.slane %v458, 1
      %v642 = vsel %vm599, %v640, %v641
      %v643 = vrot.slane %v558, 1
      %v644 = vsel %vm599, %v641, %v643
      %v645 = vrot.slane %v542, 1
      %v646 = vrot.slane %v461, 1
      %v647 = vsel %vm599, %v645, %v646
      %v648 = vrot.slane %v559, 1
      %v649 = vsel %vm599, %v646, %v648
      %v650 = vrot.slane %v543, 1
      %v651 = vrot.slane %v464, 1
      %v652 = vsel %vm599, %v650, %v651
      %v653 = vrot.slane %v560, 1
      %v654 = vsel %vm599, %v651, %v653
      %v655 = vrot.slane %v544, 1
      %v656 = vrot.slane %v467, 1
      %v657 = vsel %vm599, %v655, %v656
      %v658 = vrot.slane %v561, 1
      %v659 = vsel %vm599, %v656, %v658
      %v660 = vrot.slane %v545, 1
      %v661 = vrot.slane %v470, 1
      %v662 = vsel %vm599, %v660, %v661
      %v663 = vrot.slane %v562, 1
      %v664 = vsel %vm599, %v661, %v663
      %v665 = vrot.slane %v546, 1
      %v666 = vrot.slane %v473, 1
      %v667 = vsel %vm599, %v665, %v666
      %v668 = vrot.slane %v563, 1
      %v669 = vsel %vm599, %v666, %v668
      %v670 = vrot.slane %v547, 1
      %v671 = vrot.slane %v476, 1
      %v672 = vsel %vm599, %v670, %v671
      %v673 = vrot.slane %v564, 1
      %v674 = vsel %vm599, %v671, %v673
      %v675 = vrot.slane %v548, 1
      %v676 = vrot.slane %v479, 1
      %v677 = vsel %vm599, %v675, %v676
      %v678 = vrot.slane %v565, 1
      %v679 = vsel %vm599, %v676, %v678
      %vm712 = vcmask 1045504
      %v713 = vrot.slane %v533, 2
      %v714 = vrot.slane %v434, 2
      %v715 = vsel %vm712, %v713, %v714
      %v716 = vrot.slane %v550, 2
      %v717 = vsel %vm712, %v714, %v716
      %v718 = vrot.slane %v534, 2
      %v719 = vrot.slane %v437, 2
      %v720 = vsel %vm712, %v718, %v719
      %v721 = vrot.slane %v551, 2
      %v722 = vsel %vm712, %v719, %v721
      %v723 = vrot.slane %v535, 2
      %v724 = vrot.slane %v440, 2
      %v725 = vsel %vm712, %v723, %v724
      %v726 = vrot.slane %v552, 2
      %v727 = vsel %vm712, %v724, %v726
      %v728 = vrot.slane %v536, 2
      %v729 = vrot.slane %v443, 2
      %v730 = vsel %vm712, %v728, %v729
      %v731 = vrot.slane %v553, 2
      %v732 = vsel %vm712, %v729, %v731
      %v733 = vrot.slane %v537, 2
      %v734 = vrot.slane %v446, 2
      %v735 = vsel %vm712, %v733, %v734
      %v736 = vrot.slane %v554, 2
      %v737 = vsel %vm712, %v734, %v736
      %v738 = vrot.slane %v538, 2
      %v739 = vrot.slane %v449, 2
      %v740 = vsel %vm712, %v738, %v739
      %v741 = vrot.slane %v555, 2
      %v742 = vsel %vm712, %v739, %v741
      %v743 = vrot.slane %v539, 2
      %v744 = vrot.slane %v452, 2
      %v745 = vsel %vm712, %v743, %v744
      %v746 = vrot.slane %v556, 2
      %v747 = vsel %vm712, %v744, %v746
      %v748 = vrot.slane %v540, 2
      %v749 = vrot.slane %v455, 2
      %v750 = vsel %vm712, %v748, %v749
      %v751 = vrot.slane %v557, 2
      %v752 = vsel %vm712, %v749, %v751
      %v753 = vrot.slane %v541, 2
      %v754 = vrot.slane %v458, 2
      %v755 = vsel %vm712, %v753, %v754
      %v756 = vrot.slane %v558, 2
      %v757 = vsel %vm712, %v754, %v756
      %v758 = vrot.slane %v542, 2
      %v759 = vrot.slane %v461, 2
      %v760 = vsel %vm712, %v758, %v759
      %v761 = vrot.slane %v559, 2
      %v762 = vsel %vm712, %v759, %v761
      %v763 = vrot.slane %v543, 2
      %v764 = vrot.slane %v464, 2
      %v765 = vsel %vm712, %v763, %v764
      %v766 = vrot.slane %v560, 2
      %v767 = vsel %vm712, %v764, %v766
      %v768 = vrot.slane %v544, 2
      %v769 = vrot.slane %v467, 2
      %v770 = vsel %vm712, %v768, %v769
      %v771 = vrot.slane %v561, 2
      %v772 = vsel %vm712, %v769, %v771
      %v773 = vrot.slane %v545, 2
      %v774 = vrot.slane %v470, 2
      %v775 = vsel %vm712, %v773, %v774
      %v776 = vrot.slane %v562, 2
      %v777 = vsel %vm712, %v774, %v776
      %v778 = vrot.slane %v546, 2
      %v779 = vrot.slane %v473, 2
      %v780 = vsel %vm712, %v778, %v779
      %v781 = vrot.slane %v563, 2
      %v782 = vsel %vm712, %v779, %v781
      %v783 = vrot.slane %v547, 2
      %v784 = vrot.slane %v476, 2
      %v785 = vsel %vm712, %v783, %v784
      %v786 = vrot.slane %v564, 2
      %v787 = vsel %vm712, %v784, %v786
      %v788 = vrot.slane %v548, 2
      %v789 = vrot.slane %v479, 2
      %v790 = vsel %vm712, %v788, %v789
      %v791 = vrot.slane %v565, 2
      %v792 = vsel %vm712, %v789, %v791
      %v827 = vrot.slane %v549, 1
      %v828 = vrot.slane %v482, 1
      %v829 = vsel %vm599, %v827, %v828
      %v830 = vrot.slane %v566, 1
      %v831 = vsel %vm599, %v828, %v830
      %v834 = vrot.slane %v549, 2
      %v835 = vrot.slane %v482, 2
      %v836 = vsel %vm712, %v834, %v835
      %v837 = vrot.slane %v566, 2
      %v838 = vsel %vm712, %v835, %v837
      %v841 = vpack.c.bf16 %v434, %v533
      %v842 = vpack.c.bf16 %v604, %v602
      %v843 = vpack.c.bf16 %v717, %v715
      %v844 = vpack.c.bf16 %v437, %v534
      %v845 = vpack.c.bf16 %v609, %v607
      %v846 = vpack.c.bf16 %v722, %v720
      %v847 = vpack.c.bf16 %v440, %v535
      %v848 = vpack.c.bf16 %v614, %v612
      %v849 = vpack.c.bf16 %v727, %v725
      %v850 = vpack.c.bf16 %v443, %v536
      %v851 = vpack.c.bf16 %v619, %v617
      %v852 = vpack.c.bf16 %v732, %v730
      %v853 = vpack.c.bf16 %v446, %v537
      %v854 = vpack.c.bf16 %v624, %v622
      %v855 = vpack.c.bf16 %v737, %v735
      %v856 = vpack.c.bf16 %v449, %v538
      %v857 = vpack.c.bf16 %v629, %v627
      %v858 = vpack.c.bf16 %v742, %v740
      %v859 = vpack.c.bf16 %v452, %v539
      %v860 = vpack.c.bf16 %v634, %v632
      %v861 = vpack.c.bf16 %v747, %v745
      %v862 = vpack.c.bf16 %v455, %v540
      %v863 = vpack.c.bf16 %v639, %v637
      %v864 = vpack.c.bf16 %v752, %v750
      %v865 = vpack.c.bf16 %v458, %v541
      %v866 = vpack.c.bf16 %v644, %v642
      %v867 = vpack.c.bf16 %v757, %v755
      %v868 = vpack.c.bf16 %v461, %v542
      %v869 = vpack.c.bf16 %v649, %v647
      %v870 = vpack.c.bf16 %v762, %v760
      %v871 = vpack.c.bf16 %v464, %v543
      %v872 = vpack.c.bf16 %v654, %v652
      %v873 = vpack.c.bf16 %v767, %v765
      %v874 = vpack.c.bf16 %v467, %v544
      %v875 = vpack.c.bf16 %v659, %v657
      %v876 = vpack.c.bf16 %v772, %v770
      %v877 = vpack.c.bf16 %v470, %v545
      %v878 = vpack.c.bf16 %v664, %v662
      %v879 = vpack.c.bf16 %v777, %v775
      %v880 = vpack.c.bf16 %v473, %v546
      %v881 = vpack.c.bf16 %v669, %v667
      %v882 = vpack.c.bf16 %v782, %v780
      %v883 = vpack.c.bf16 %v476, %v547
      %v884 = vpack.c.bf16 %v674, %v672
      %v885 = vpack.c.bf16 %v787, %v785
      %v886 = vpack.c.bf16 %v479, %v548
      %v887 = vpack.c.bf16 %v679, %v677
      %v888 = vpack.c.bf16 %v792, %v790
      %v889 = vpack.c.bf16 %v482, %v549
      %v890 = vpack.c.bf16 %v831, %v829
      %v891 = vpack.c.bf16 %v838, %v836
      %v892 = vld [vmem:[%s3] sm:$0xf]
      %v893 = vld [vmem:[%s3 + $0x4] sm:$0xf]
      %v894 = vld [vmem:[%s3 + $0x8] sm:$0xf]
      %v895 = vld [vmem:[%s3 + $0xc] sm:$0xf]
      %v896 = vld [vmem:[%s3 + $0x10] sm:$0xf]
      %v897 = vld [vmem:[%s3 + $0x14] sm:$0xf]
      %v898 = vld [vmem:[%s3 + $0x18] sm:$0xf]
      %v899 = vld [vmem:[%s3 + $0x1c] sm:$0xf]
      %v900 = vld [vmem:[%s3 + $0x20] sm:$0xf]
      %v901 = vld [vmem:[%s3 + $0x24] sm:$0xf]
      %v902 = vld [vmem:[%s3 + $0x28] sm:$0xf]
      %v903 = vld [vmem:[%s3 + $0x2c] sm:$0xf]
      %v904 = vld [vmem:[%s3 + $0x30] sm:$0xf]
      %v905 = vld [vmem:[%s3 + $0x34] sm:$0xf]
      %v906 = vld [vmem:[%s3 + $0x38] sm:$0xf]
      %v907 = vld [vmem:[%s3 + $0x3c] sm:$0xf]
      %v908 = vld [vmem:[%s3 + $0x40] sm:$0xf]
      %v909 = vld [vmem:[%s3 + $0x44] sm:$0xf]
      %v910 = vld [vmem:[%s3 + $0x48] sm:$0xf]
      %v911 = vld [vmem:[%s3 + $0x4c] sm:$0xf]
      %v912 = vld [vmem:[%s3 + $0x50] sm:$0xf]
      %v913 = vld [vmem:[%s3 + $0x54] sm:$0xf]
      %v914 = vld [vmem:[%s3 + $0x58] sm:$0xf]
      %v915 = vld [vmem:[%s3 + $0x5c] sm:$0xf]
      %v916 = vld [vmem:[%s3 + $0x60] sm:$0xf]
      %v917 = vld [vmem:[%s3 + $0x64] sm:$0xf]
      %v918 = vld [vmem:[%s3 + $0x68] sm:$0xf]
      %v919 = vld [vmem:[%s3 + $0x6c] sm:$0xf]
      %v920 = vld [vmem:[%s3 + $0x70] sm:$0xf]
      %v921 = vld [vmem:[%s3 + $0x74] sm:$0xf]
      %v922 = vld [vmem:[%s3 + $0x78] sm:$0xf]
      %v923 = vld [vmem:[%s3 + $0x7c] sm:$0xf]
      %v924 = vld [vmem:[%s3 + $0x80] sm:$0xf]
      %v925 = vld [vmem:[%s3 + $0x84] sm:$0xf]
      %v926 = vld [vmem:[%s3 + $0x88] sm:$0xf]
      %v927 = vld [vmem:[%s3 + $0x8c] sm:$0xf]
      %v928 = vld [vmem:[%s3 + $0x90] sm:$0xf]
      %v929 = vld [vmem:[%s3 + $0x94] sm:$0xf]
      %v930 = vld [vmem:[%s3 + $0x98] sm:$0xf]
      %v931 = vld [vmem:[%s3 + $0x9c] sm:$0xf]
      %v932 = vld [vmem:[%s3 + $0xa0] sm:$0xf]
      %v933 = vld [vmem:[%s3 + $0xa4] sm:$0xf]
      %v934 = vld [vmem:[%s3 + $0xa8] sm:$0xf]
      %v935 = vld [vmem:[%s3 + $0xac] sm:$0xf]
      %v936 = vld [vmem:[%s3 + $0xb0] sm:$0xf]
      %v937 = vld [vmem:[%s3 + $0xb4] sm:$0xf]
      %v938 = vld [vmem:[%s3 + $0xb8] sm:$0xf]
      %v939 = vld [vmem:[%s3 + $0xbc] sm:$0xf]
      %v940 = vld [vmem:[%s3 + $0xc0] sm:$0xf]
      %v941 = vld [vmem:[%s3 + $0xc4] sm:$0xf]
      %v942 = vld [vmem:[%s3 + $0xc8] sm:$0xf]
      %v943 = vld [vmem:[%s3 + $0xcc] sm:$0xf]
      %v944 = vld [vmem:[%s3 + $0xd0] sm:$0xf]
      %v945 = vld [vmem:[%s3 + $0xd4] sm:$0xf]
      %v946 = vld [vmem:[%s3 + $0xd8] sm:$0xf]
      %v947 = vld [vmem:[%s3 + $0xdc] sm:$0xf]
      %v948 = vld [vmem:[%s3 + $0xe0] sm:$0xf]
      %v949 = vld [vmem:[%s3 + $0xe4] sm:$0xf]
      %v950 = vld [vmem:[%s3 + $0xe8] sm:$0xf]
      %v951 = vld [vmem:[%s3 + $0xec] sm:$0xf]
      %v952 = vld [vmem:[%s3 + $0xf0] sm:$0xf]
      %v953 = vld [vmem:[%s3 + $0xf4] sm:$0xf]
      %v954 = vld [vmem:[%s3 + $0xf8] sm:$0xf]
      %v955 = vld [vmem:[%s3 + $0xfc] sm:$0xf]
      %v956 = vld [vmem:[%s3 + $0x100] sm:$0xf]
      %v957 = vld [vmem:[%s3 + $0x104] sm:$0xf]
      %v958 = vld [vmem:[%s3 + $0x108] sm:$0xf]
      %v959 = vld [vmem:[%s3 + $0x10c] sm:$0xf]
      %v960 = vld [vmem:[%s3 + $0x110] sm:$0xf]
      %v961 = vld [vmem:[%s3 + $0x114] sm:$0xf]
      %v962 = vld [vmem:[%s3 + $0x118] sm:$0xf]
      %v963 = vld [vmem:[%s3 + $0x11c] sm:$0xf]
      %v964 = vld [vmem:[%s3 + $0x120] sm:$0xf]
      %v965 = vld [vmem:[%s3 + $0x124] sm:$0xf]
      %v966 = vld [vmem:[%s3 + $0x128] sm:$0xf]
      %v967 = vld [vmem:[%s3 + $0x12c] sm:$0xf]
      %v968 = vld [vmem:[%s3 + $0x130] sm:$0xf]
      %v969 = vld [vmem:[%s3 + $0x134] sm:$0xf]
      %v970 = vld [vmem:[%s3 + $0x138] sm:$0xf]
      %v971 = vld [vmem:[%s3 + $0x13c] sm:$0xf]
      %v972 = vld [vmem:[%s3 + $0x140] sm:$0xf]
      %v973 = vld [vmem:[%s3 + $0x144] sm:$0xf]
      %v974 = vld [vmem:[%s3 + $0x148] sm:$0xf]
      %v975 = vld [vmem:[%s3 + $0x14c] sm:$0xf]
      %v976 = vld [vmem:[%s3 + $0x150] sm:$0xf]
      %v977 = vld [vmem:[%s3 + $0x154] sm:$0xf]
      %v978 = vld [vmem:[%s3 + $0x158] sm:$0xf]
      %v979 = vld [vmem:[%s3 + $0x15c] sm:$0xf]
      %v980 = vld [vmem:[%s3 + $0x160] sm:$0xf]
      %v981 = vld [vmem:[%s3 + $0x164] sm:$0xf]
      %v982 = vld [vmem:[%s3 + $0x168] sm:$0xf]
      %v983 = vld [vmem:[%s3 + $0x16c] sm:$0xf]
      %v984 = vld [vmem:[%s3 + $0x170] sm:$0xf]
      %v985 = vld [vmem:[%s3 + $0x174] sm:$0xf]
      %v986 = vld [vmem:[%s3 + $0x178] sm:$0xf]
      %v987 = vld [vmem:[%s3 + $0x17c] sm:$0xf]
      %v988 = vld [vmem:[%s3 + $0x180] sm:$0xf]
      %v989 = vld [vmem:[%s3 + $0x184] sm:$0xf]
      %v990 = vld [vmem:[%s3 + $0x188] sm:$0xf]
      %v991 = vld [vmem:[%s3 + $0x18c] sm:$0xf]
      %v992 = vld [vmem:[%s3 + $0x190] sm:$0xf]
      %v993 = vld [vmem:[%s3 + $0x194] sm:$0xf]
      %v994 = vld [vmem:[%s3 + $0x198] sm:$0xf]
      %v995 = vld [vmem:[%s3 + $0x19c] sm:$0xf]
      %v996 = vld [vmem:[%s3 + $0x1a0] sm:$0xf]
      %v997 = vld [vmem:[%s3 + $0x1a4] sm:$0xf]
      %v998 = vld [vmem:[%s3 + $0x1a8] sm:$0xf]
      %v999 = vld [vmem:[%s3 + $0x1ac] sm:$0xf]
      %v1000 = vld [vmem:[%s3 + $0x1b0] sm:$0xf]
      %v1001 = vld [vmem:[%s3 + $0x1b4] sm:$0xf]
      %v1002 = vld [vmem:[%s3 + $0x1b8] sm:$0xf]
      %v1003 = vld [vmem:[%s3 + $0x1bc] sm:$0xf]
      %v1004 = vld [vmem:[%s3 + $0x1c0] sm:$0xf]
      %v1005 = vld [vmem:[%s3 + $0x1c4] sm:$0xf]
      %v1006 = vld [vmem:[%s3 + $0x1c8] sm:$0xf]
      %v1007 = vld [vmem:[%s3 + $0x1cc] sm:$0xf]
      %v1008 = vld [vmem:[%s3 + $0x1d0] sm:$0xf]
      %v1009 = vld [vmem:[%s3 + $0x1d4] sm:$0xf]
      %v1010 = vld [vmem:[%s3 + $0x1d8] sm:$0xf]
      %v1011 = vld [vmem:[%s3 + $0x1dc] sm:$0xf]
      %v1012 = vld [vmem:[%s3 + $0x1e0] sm:$0xf]
      %v1013 = vld [vmem:[%s3 + $0x1e4] sm:$0xf]
      %v1014 = vld [vmem:[%s3 + $0x1e8] sm:$0xf]
      %v1015 = vld [vmem:[%s3 + $0x1ec] sm:$0xf]
      %v1016 = vld [vmem:[%s3 + $0x1f0] sm:$0xf]
      %v1017 = vld [vmem:[%s3 + $0x1f4] sm:$0xf]
      %v1018 = vld [vmem:[%s3 + $0x1f8] sm:$0xf]
      %v1019 = vld [vmem:[%s3 + $0x1fc] sm:$0xf]
      %v1020 = vld [vmem:[%s3 + $0x200] sm:$0xf]
      %v1021 = vld [vmem:[%s3 + $0x204] sm:$0xf]
      %v1022 = vld [vmem:[%s3 + $0x208] sm:$0xf]
      %v1023 = vld [vmem:[%s3 + $0x20c] sm:$0xf]
      %v1024 = vld [vmem:[%s3 + $0x210] sm:$0xf]
      %v1025 = vld [vmem:[%s3 + $0x214] sm:$0xf]
      %v1026 = vld [vmem:[%s3 + $0x218] sm:$0xf]
      %v1027 = vld [vmem:[%s3 + $0x21c] sm:$0xf]
      %v1028 = vld [vmem:[%s3 + $0x220] sm:$0xf]
      %v1029 = vld [vmem:[%s3 + $0x224] sm:$0xf]
      %v1030 = vld [vmem:[%s3 + $0x228] sm:$0xf]
      %v1031 = vld [vmem:[%s3 + $0x22c] sm:$0xf]
      %v1032 = vld [vmem:[%s3 + $0x230] sm:$0xf]
      %v1033 = vld [vmem:[%s3 + $0x234] sm:$0xf]
      %v1034 = vld [vmem:[%s3 + $0x238] sm:$0xf]
      %v1035 = vld [vmem:[%s3 + $0x23c] sm:$0xf]
      %v1036 = vld [vmem:[%s4] sm:$0x1]
      %v1038 = vperm.slane %v1036, 0
      %v1184 = vunpack.c.l.b16 %v892
      %v1185 = vunpack.c.l.b16 %v893
      %v1186 = vunpack.c.l.b16 %v894
      %v1187 = vunpack.c.l.b16 %v895
      %v1188 = vunpack.c.l.b16 %v896
      %v1189 = vunpack.c.l.b16 %v897
      %v1190 = vunpack.c.l.b16 %v898
      %v1191 = vunpack.c.l.b16 %v899
      %v1192 = vunpack.c.l.b16 %v900
      %v1193 = vunpack.c.l.b16 %v901
      %v1194 = vunpack.c.l.b16 %v902
      %v1195 = vunpack.c.l.b16 %v903
      %v1196 = vunpack.c.l.b16 %v904
      %v1197 = vunpack.c.l.b16 %v905
      %v1198 = vunpack.c.l.b16 %v906
      %v1199 = vunpack.c.l.b16 %v907
      %v1200 = vunpack.c.l.b16 %v908
      %v1201 = vunpack.c.l.b16 %v909
      %v1202 = vunpack.c.l.b16 %v910
      %v1203 = vunpack.c.l.b16 %v911
      %v1204 = vunpack.c.l.b16 %v912
      %v1205 = vunpack.c.l.b16 %v913
      %v1206 = vunpack.c.l.b16 %v914
      %v1207 = vunpack.c.l.b16 %v915
      %v1208 = vunpack.c.l.b16 %v916
      %v1209 = vunpack.c.l.b16 %v917
      %v1210 = vunpack.c.l.b16 %v918
      %v1211 = vunpack.c.l.b16 %v919
      %v1212 = vunpack.c.l.b16 %v920
      %v1213 = vunpack.c.l.b16 %v921
      %v1214 = vunpack.c.l.b16 %v922
      %v1215 = vunpack.c.l.b16 %v923
      %v1216 = vunpack.c.l.b16 %v924
      %v1217 = vunpack.c.l.b16 %v925
      %v1218 = vunpack.c.l.b16 %v926
      %v1219 = vunpack.c.l.b16 %v927
      %v1220 = vunpack.c.l.b16 %v928
      %v1221 = vunpack.c.l.b16 %v929
      %v1222 = vunpack.c.l.b16 %v930
      %v1223 = vunpack.c.l.b16 %v931
      %v1224 = vunpack.c.l.b16 %v932
      %v1225 = vunpack.c.l.b16 %v933
      %v1226 = vunpack.c.l.b16 %v934
      %v1227 = vunpack.c.l.b16 %v935
      %v1228 = vunpack.c.l.b16 %v936
      %v1229 = vunpack.c.l.b16 %v937
      %v1230 = vunpack.c.l.b16 %v938
      %v1231 = vunpack.c.l.b16 %v939
      %v1232 = vunpack.c.l.b16 %v940
      %v1233 = vunpack.c.l.b16 %v941
      %v1234 = vunpack.c.l.b16 %v942
      %v1235 = vunpack.c.l.b16 %v943
      %v1236 = vunpack.c.l.b16 %v944
      %v1237 = vunpack.c.l.b16 %v945
      %v1238 = vunpack.c.l.b16 %v946
      %v1239 = vunpack.c.l.b16 %v947
      %v1240 = vunpack.c.l.b16 %v948
      %v1241 = vunpack.c.l.b16 %v949
      %v1242 = vunpack.c.l.b16 %v950
      %v1243 = vunpack.c.l.b16 %v951
      %v1244 = vunpack.c.l.b16 %v952
      %v1245 = vunpack.c.l.b16 %v953
      %v1246 = vunpack.c.l.b16 %v954
      %v1247 = vunpack.c.l.b16 %v955
      %v1248 = vunpack.c.l.b16 %v956
      %v1249 = vunpack.c.l.b16 %v957
      %v1250 = vunpack.c.l.b16 %v958
      %v1251 = vunpack.c.l.b16 %v959
      %v1252 = vunpack.c.l.b16 %v960
      %v1253 = vunpack.c.l.b16 %v961
      %v1254 = vunpack.c.l.b16 %v962
      %v1255 = vunpack.c.l.b16 %v963
      %v1256 = vunpack.c.l.b16 %v964
      %v1257 = vunpack.c.l.b16 %v965
      %v1258 = vunpack.c.l.b16 %v966
      %v1259 = vunpack.c.l.b16 %v967
      %v1260 = vunpack.c.l.b16 %v968
      %v1261 = vunpack.c.l.b16 %v969
      %v1262 = vunpack.c.l.b16 %v970
      %v1263 = vunpack.c.l.b16 %v971
      %v1264 = vunpack.c.l.b16 %v972
      %v1265 = vunpack.c.l.b16 %v973
      %v1266 = vunpack.c.l.b16 %v974
      %v1267 = vunpack.c.l.b16 %v975
      %v1268 = vunpack.c.l.b16 %v976
      %v1269 = vunpack.c.l.b16 %v977
      %v1270 = vunpack.c.l.b16 %v978
      %v1271 = vunpack.c.l.b16 %v979
      %v1272 = vunpack.c.l.b16 %v980
      %v1273 = vunpack.c.l.b16 %v981
      %v1274 = vunpack.c.l.b16 %v982
      %v1275 = vunpack.c.l.b16 %v983
      %v1276 = vunpack.c.l.b16 %v984
      %v1277 = vunpack.c.l.b16 %v985
      %v1278 = vunpack.c.l.b16 %v986
      %v1279 = vunpack.c.l.b16 %v987
      %v1280 = vunpack.c.l.b16 %v988
      %v1281 = vunpack.c.l.b16 %v989
      %v1282 = vunpack.c.l.b16 %v990
      %v1283 = vunpack.c.l.b16 %v991
      %v1284 = vunpack.c.l.b16 %v992
      %v1285 = vunpack.c.l.b16 %v993
      %v1286 = vunpack.c.l.b16 %v994
      %v1287 = vunpack.c.l.b16 %v995
      %v1288 = vunpack.c.l.b16 %v996
      %v1289 = vunpack.c.l.b16 %v997
      %v1290 = vunpack.c.l.b16 %v998
      %v1291 = vunpack.c.l.b16 %v999
      %v1292 = vunpack.c.l.b16 %v1000
      %v1293 = vunpack.c.l.b16 %v1001
      %v1294 = vunpack.c.l.b16 %v1002
      %v1295 = vunpack.c.l.b16 %v1003
      %v1296 = vunpack.c.l.b16 %v1004
      %v1297 = vunpack.c.l.b16 %v1005
      %v1298 = vunpack.c.l.b16 %v1006
      %v1299 = vunpack.c.l.b16 %v1007
      %v1300 = vunpack.c.l.b16 %v1008
      %v1301 = vunpack.c.l.b16 %v1009
      %v1302 = vunpack.c.l.b16 %v1010
      %v1303 = vunpack.c.l.b16 %v1011
      %v1304 = vunpack.c.l.b16 %v1012
      %v1305 = vunpack.c.l.b16 %v1013
      %v1306 = vunpack.c.l.b16 %v1014
      %v1307 = vunpack.c.l.b16 %v1015
      %v1308 = vunpack.c.l.b16 %v1016
      %v1309 = vunpack.c.l.b16 %v1017
      %v1310 = vunpack.c.l.b16 %v1018
      %v1311 = vunpack.c.l.b16 %v1019
      %v1312 = vunpack.c.l.b16 %v1020
      %v1313 = vunpack.c.l.b16 %v1021
      %v1314 = vunpack.c.l.b16 %v1022
      %v1315 = vunpack.c.l.b16 %v1023
      %v1316 = vunpack.c.l.b16 %v1024
      %v1317 = vunpack.c.l.b16 %v1025
      %v1318 = vunpack.c.l.b16 %v1026
      %v1319 = vunpack.c.l.b16 %v1027
      %v1320 = vunpack.c.l.b16 %v1028
      %v1321 = vunpack.c.l.b16 %v1029
      %v1322 = vunpack.c.l.b16 %v1030
      %v1323 = vunpack.c.l.b16 %v1031
      %v1324 = vunpack.c.l.b16 %v1032
      %v1325 = vunpack.c.l.b16 %v1033
      %v1326 = vunpack.c.l.b16 %v1034
      %v1327 = vunpack.c.l.b16 %v1035
      %v1328 = vpack.c.b16 %v1185, %v1184
      %v1329 = vpack.c.b16 %v1187, %v1186
      %v1330 = vpack.c.b16 %v1189, %v1188
      %v1331 = vpack.c.b16 %v1191, %v1190
      %v1332 = vpack.c.b16 %v1193, %v1192
      %v1333 = vpack.c.b16 %v1195, %v1194
      %v1334 = vpack.c.b16 %v1197, %v1196
      %v1335 = vpack.c.b16 %v1199, %v1198
      %v1336 = vpack.c.b16 %v1201, %v1200
      %v1337 = vpack.c.b16 %v1203, %v1202
      %v1338 = vpack.c.b16 %v1205, %v1204
      %v1339 = vpack.c.b16 %v1207, %v1206
      %v1340 = vpack.c.b16 %v1209, %v1208
      %v1341 = vpack.c.b16 %v1211, %v1210
      %v1342 = vpack.c.b16 %v1213, %v1212
      %v1343 = vpack.c.b16 %v1215, %v1214
      %v1344 = vpack.c.b16 %v1217, %v1216
      %v1345 = vpack.c.b16 %v1219, %v1218
      %v1346 = vpack.c.b16 %v1221, %v1220
      %v1347 = vpack.c.b16 %v1223, %v1222
      %v1348 = vpack.c.b16 %v1225, %v1224
      %v1349 = vpack.c.b16 %v1227, %v1226
      %v1350 = vpack.c.b16 %v1229, %v1228
      %v1351 = vpack.c.b16 %v1231, %v1230
      %v1352 = vpack.c.b16 %v1233, %v1232
      %v1353 = vpack.c.b16 %v1235, %v1234
      %v1354 = vpack.c.b16 %v1237, %v1236
      %v1355 = vpack.c.b16 %v1239, %v1238
      %v1356 = vpack.c.b16 %v1241, %v1240
      %v1357 = vpack.c.b16 %v1243, %v1242
      %v1358 = vpack.c.b16 %v1245, %v1244
      %v1359 = vpack.c.b16 %v1247, %v1246
      %v1360 = vpack.c.b16 %v1249, %v1248
      %v1361 = vpack.c.b16 %v1251, %v1250
      %v1362 = vpack.c.b16 %v1253, %v1252
      %v1363 = vpack.c.b16 %v1255, %v1254
      %v1364 = vpack.c.b16 %v1257, %v1256
      %v1365 = vpack.c.b16 %v1259, %v1258
      %v1366 = vpack.c.b16 %v1261, %v1260
      %v1367 = vpack.c.b16 %v1263, %v1262
      %v1368 = vpack.c.b16 %v1265, %v1264
      %v1369 = vpack.c.b16 %v1267, %v1266
      %v1370 = vpack.c.b16 %v1269, %v1268
      %v1371 = vpack.c.b16 %v1271, %v1270
      %v1372 = vpack.c.b16 %v1273, %v1272
      %v1373 = vpack.c.b16 %v1275, %v1274
      %v1374 = vpack.c.b16 %v1277, %v1276
      %v1375 = vpack.c.b16 %v1279, %v1278
      %v1376 = vpack.c.b16 %v1281, %v1280
      %v1377 = vpack.c.b16 %v1283, %v1282
      %v1378 = vpack.c.b16 %v1285, %v1284
      %v1379 = vpack.c.b16 %v1287, %v1286
      %v1380 = vpack.c.b16 %v1289, %v1288
      %v1381 = vpack.c.b16 %v1291, %v1290
      %v1382 = vpack.c.b16 %v1293, %v1292
      %v1383 = vpack.c.b16 %v1295, %v1294
      %v1384 = vpack.c.b16 %v1297, %v1296
      %v1385 = vpack.c.b16 %v1299, %v1298
      %v1386 = vpack.c.b16 %v1301, %v1300
      %v1387 = vpack.c.b16 %v1303, %v1302
      %v1388 = vpack.c.b16 %v1305, %v1304
      %v1389 = vpack.c.b16 %v1307, %v1306
      %v1390 = vpack.c.b16 %v1309, %v1308
      %v1391 = vpack.c.b16 %v1311, %v1310
      %v1392 = vpack.c.b16 %v1313, %v1312
      %v1393 = vpack.c.b16 %v1315, %v1314
      %v1394 = vpack.c.b16 %v1317, %v1316
      %v1395 = vpack.c.b16 %v1319, %v1318
      %v1396 = vpack.c.b16 %v1321, %v1320
      %v1397 = vpack.c.b16 %v1323, %v1322
      %v1398 = vpack.c.b16 %v1325, %v1324
      %v1399 = vpack.c.b16 %v1327, %v1326
      %1472 = vmatpush.bf16.msra.mxu0 %v1335
      %1473 = vmatpush.bf16.msra.mxu0 %v1334
      %1474 = vmatpush.bf16.msra.mxu0 %v1333
      %1475 = vmatpush.bf16.msra.mxu0 %v1332
      %1476 = vmatpush.bf16.msra.mxu0 %v1331
      %1477 = vmatpush.bf16.msra.mxu0 %v1330
      %1478 = vmatpush.bf16.msra.mxu0 %v1329
      %1479 = vmatpush.bf16.msra.mxu0 %v1328
      %1480 = vmatmul.bf16.gmra.mxu0 %v841
      %v1481 = vpop.f32.mrf.mxu0
      %v1482 = vadd.f32 %v1038, %v1481
      %v1483 = vpop.f32.mrf.mxu0
      %v1484 = vadd.f32 %v1038, %v1483
      %1485 = vmatmul.bf16.gmra.mxu0 %v844
      %v1486 = vpop.f32.mrf.mxu0
      %v1487 = vadd.f32 %v1038, %v1486
      %v1488 = vpop.f32.mrf.mxu0
      %v1489 = vadd.f32 %v1038, %v1488
      %1490 = vmatmul.bf16.gmra.mxu0 %v847
      %v1491 = vpop.f32.mrf.mxu0
      %v1492 = vadd.f32 %v1038, %v1491
      %v1493 = vpop.f32.mrf.mxu0
      %v1494 = vadd.f32 %v1038, %v1493
      %1495 = vmatmul.bf16.gmra.mxu0 %v850
      %v1496 = vpop.f32.mrf.mxu0
      %v1497 = vadd.f32 %v1038, %v1496
      %v1498 = vpop.f32.mrf.mxu0
      %v1499 = vadd.f32 %v1038, %v1498
      %1500 = vmatmul.bf16.gmra.mxu0 %v853
      %v1501 = vpop.f32.mrf.mxu0
      %v1502 = vadd.f32 %v1038, %v1501
      %v1503 = vpop.f32.mrf.mxu0
      %v1504 = vadd.f32 %v1038, %v1503
      %1505 = vmatmul.bf16.gmra.mxu0 %v856
      %v1506 = vpop.f32.mrf.mxu0
      %v1507 = vadd.f32 %v1038, %v1506
      %v1508 = vpop.f32.mrf.mxu0
      %v1509 = vadd.f32 %v1038, %v1508
      %1510 = vmatmul.bf16.gmra.mxu0 %v859
      %v1511 = vpop.f32.mrf.mxu0
      %v1512 = vadd.f32 %v1038, %v1511
      %v1513 = vpop.f32.mrf.mxu0
      %v1514 = vadd.f32 %v1038, %v1513
      %1515 = vmatmul.bf16.gmra.mxu0 %v862
      %v1516 = vpop.f32.mrf.mxu0
      %v1517 = vadd.f32 %v1038, %v1516
      %v1518 = vpop.f32.mrf.mxu0
      %v1519 = vadd.f32 %v1038, %v1518
      %1520 = vmatmul.bf16.gmra.mxu0 %v865
      %v1521 = vpop.f32.mrf.mxu0
      %v1522 = vadd.f32 %v1038, %v1521
      %v1523 = vpop.f32.mrf.mxu0
      %v1524 = vadd.f32 %v1038, %v1523
      %1525 = vmatmul.bf16.gmra.mxu0 %v868
      %v1526 = vpop.f32.mrf.mxu0
      %v1527 = vadd.f32 %v1038, %v1526
      %v1528 = vpop.f32.mrf.mxu0
      %v1529 = vadd.f32 %v1038, %v1528
      %1530 = vmatmul.bf16.gmra.mxu0 %v871
      %v1531 = vpop.f32.mrf.mxu0
      %v1532 = vadd.f32 %v1038, %v1531
      %v1533 = vpop.f32.mrf.mxu0
      %v1534 = vadd.f32 %v1038, %v1533
      %1535 = vmatmul.bf16.gmra.mxu0 %v874
      %v1536 = vpop.f32.mrf.mxu0
      %v1537 = vadd.f32 %v1038, %v1536
      %v1538 = vpop.f32.mrf.mxu0
      %v1539 = vadd.f32 %v1038, %v1538
      %1540 = vmatmul.bf16.gmra.mxu0 %v877
      %v1541 = vpop.f32.mrf.mxu0
      %v1542 = vadd.f32 %v1038, %v1541
      %v1543 = vpop.f32.mrf.mxu0
      %v1544 = vadd.f32 %v1038, %v1543
      %1545 = vmatmul.bf16.gmra.mxu0 %v880
      %v1546 = vpop.f32.mrf.mxu0
      %v1547 = vadd.f32 %v1038, %v1546
      %v1548 = vpop.f32.mrf.mxu0
      %v1549 = vadd.f32 %v1038, %v1548
      %1550 = vmatmul.bf16.gmra.mxu0 %v883
      %v1551 = vpop.f32.mrf.mxu0
      %v1552 = vadd.f32 %v1038, %v1551
      %v1553 = vpop.f32.mrf.mxu0
      %v1554 = vadd.f32 %v1038, %v1553
      %1555 = vmatmul.bf16.gmra.mxu0 %v886
      %v1556 = vpop.f32.mrf.mxu0
      %v1557 = vadd.f32 %v1038, %v1556
      %v1558 = vpop.f32.mrf.mxu0
      %v1559 = vadd.f32 %v1038, %v1558
      %1560 = vdwg.mxu0
      %1561 = vmatpush.bf16.msra.mxu0 %v1343
      %1562 = vmatpush.bf16.msra.mxu0 %v1342
      %1563 = vmatpush.bf16.msra.mxu0 %v1341
      %1564 = vmatpush.bf16.msra.mxu0 %v1340
      %1565 = vmatpush.bf16.msra.mxu0 %v1339
      %1566 = vmatpush.bf16.msra.mxu0 %v1338
      %1567 = vmatpush.bf16.msra.mxu0 %v1337
      %1568 = vmatpush.bf16.msra.mxu0 %v1336
      %1569 = vmatmul.bf16.gmra.mxu0 %v842
      %v1570 = vpop.f32.mrf.mxu0
      %v1571 = vadd.f32 %v1482, %v1570
      %v1572 = vpop.f32.mrf.mxu0
      %v1573 = vadd.f32 %v1484, %v1572
      %1574 = vmatmul.bf16.gmra.mxu0 %v845
      %v1575 = vpop.f32.mrf.mxu0
      %v1576 = vadd.f32 %v1487, %v1575
      %v1577 = vpop.f32.mrf.mxu0
      %v1578 = vadd.f32 %v1489, %v1577
      %1579 = vmatmul.bf16.gmra.mxu0 %v848
      %v1580 = vpop.f32.mrf.mxu0
      %v1581 = vadd.f32 %v1492, %v1580
      %v1582 = vpop.f32.mrf.mxu0
      %v1583 = vadd.f32 %v1494, %v1582
      %1584 = vmatmul.bf16.gmra.mxu0 %v851
      %v1585 = vpop.f32.mrf.mxu0
      %v1586 = vadd.f32 %v1497, %v1585
      %v1587 = vpop.f32.mrf.mxu0
      %v1588 = vadd.f32 %v1499, %v1587
      %1589 = vmatmul.bf16.gmra.mxu0 %v854
      %v1590 = vpop.f32.mrf.mxu0
      %v1591 = vadd.f32 %v1502, %v1590
      %v1592 = vpop.f32.mrf.mxu0
      %v1593 = vadd.f32 %v1504, %v1592
      %1594 = vmatmul.bf16.gmra.mxu0 %v857
      %v1595 = vpop.f32.mrf.mxu0
      %v1596 = vadd.f32 %v1507, %v1595
      %v1597 = vpop.f32.mrf.mxu0
      %v1598 = vadd.f32 %v1509, %v1597
      %1599 = vmatmul.bf16.gmra.mxu0 %v860
      %v1600 = vpop.f32.mrf.mxu0
      %v1601 = vadd.f32 %v1512, %v1600
      %v1602 = vpop.f32.mrf.mxu0
      %v1603 = vadd.f32 %v1514, %v1602
      %1604 = vmatmul.bf16.gmra.mxu0 %v863
      %v1605 = vpop.f32.mrf.mxu0
      %v1606 = vadd.f32 %v1517, %v1605
      %v1607 = vpop.f32.mrf.mxu0
      %v1608 = vadd.f32 %v1519, %v1607
      %1609 = vmatmul.bf16.gmra.mxu0 %v866
      %v1610 = vpop.f32.mrf.mxu0
      %v1611 = vadd.f32 %v1522, %v1610
      %v1612 = vpop.f32.mrf.mxu0
      %v1613 = vadd.f32 %v1524, %v1612
      %1614 = vmatmul.bf16.gmra.mxu0 %v869
      %v1615 = vpop.f32.mrf.mxu0
      %v1616 = vadd.f32 %v1527, %v1615
      %v1617 = vpop.f32.mrf.mxu0
      %v1618 = vadd.f32 %v1529, %v1617
      %1619 = vmatmul.bf16.gmra.mxu0 %v872
      %v1620 = vpop.f32.mrf.mxu0
      %v1621 = vadd.f32 %v1532, %v1620
      %v1622 = vpop.f32.mrf.mxu0
      %v1623 = vadd.f32 %v1534, %v1622
      %1624 = vmatmul.bf16.gmra.mxu0 %v875
      %v1625 = vpop.f32.mrf.mxu0
      %v1626 = vadd.f32 %v1537, %v1625
      %v1627 = vpop.f32.mrf.mxu0
      %v1628 = vadd.f32 %v1539, %v1627
      %1629 = vmatmul.bf16.gmra.mxu0 %v878
      %v1630 = vpop.f32.mrf.mxu0
      %v1631 = vadd.f32 %v1542, %v1630
      %v1632 = vpop.f32.mrf.mxu0
      %v1633 = vadd.f32 %v1544, %v1632
      %1634 = vmatmul.bf16.gmra.mxu0 %v881
      %v1635 = vpop.f32.mrf.mxu0
      %v1636 = vadd.f32 %v1547, %v1635
      %v1637 = vpop.f32.mrf.mxu0
      %v1638 = vadd.f32 %v1549, %v1637
      %1639 = vmatmul.bf16.gmra.mxu0 %v884
      %v1640 = vpop.f32.mrf.mxu0
      %v1641 = vadd.f32 %v1552, %v1640
      %v1642 = vpop.f32.mrf.mxu0
      %v1643 = vadd.f32 %v1554, %v1642
      %1644 = vmatmul.bf16.gmra.mxu0 %v887
      %v1645 = vpop.f32.mrf.mxu0
      %v1646 = vadd.f32 %v1557, %v1645
      %v1647 = vpop.f32.mrf.mxu0
      %v1648 = vadd.f32 %v1559, %v1647
      %1649 = vdwg.mxu0
      %1650 = vmatpush.bf16.msra.mxu0 %v1351
      %1651 = vmatpush.bf16.msra.mxu0 %v1350
      %1652 = vmatpush.bf16.msra.mxu0 %v1349
      %1653 = vmatpush.bf16.msra.mxu0 %v1348
      %1654 = vmatpush.bf16.msra.mxu0 %v1347
      %1655 = vmatpush.bf16.msra.mxu0 %v1346
      %1656 = vmatpush.bf16.msra.mxu0 %v1345
      %1657 = vmatpush.bf16.msra.mxu0 %v1344
      %1658 = vmatmul.bf16.gmra.mxu0 %v843
      %v1659 = vpop.f32.mrf.mxu0
      %v1660 = vadd.f32 %v1571, %v1659
      %v1661 = vpop.f32.mrf.mxu0
      %v1662 = vadd.f32 %v1573, %v1661
      %1663 = vmatmul.bf16.gmra.mxu0 %v846
      %v1664 = vpop.f32.mrf.mxu0
      %v1665 = vadd.f32 %v1576, %v1664
      %v1666 = vpop.f32.mrf.mxu0
      %v1667 = vadd.f32 %v1578, %v1666
      %1668 = vmatmul.bf16.gmra.mxu0 %v849
      %v1669 = vpop.f32.mrf.mxu0
      %v1670 = vadd.f32 %v1581, %v1669
      %v1671 = vpop.f32.mrf.mxu0
      %v1672 = vadd.f32 %v1583, %v1671
      %1673 = vmatmul.bf16.gmra.mxu0 %v852
      %v1674 = vpop.f32.mrf.mxu0
      %v1675 = vadd.f32 %v1586, %v1674
      %v1676 = vpop.f32.mrf.mxu0
      %v1677 = vadd.f32 %v1588, %v1676
      %1678 = vmatmul.bf16.gmra.mxu0 %v855
      %v1679 = vpop.f32.mrf.mxu0
      %v1680 = vadd.f32 %v1591, %v1679
      %v1681 = vpop.f32.mrf.mxu0
      %v1682 = vadd.f32 %v1593, %v1681
      %1683 = vmatmul.bf16.gmra.mxu0 %v858
      %v1684 = vpop.f32.mrf.mxu0
      %v1685 = vadd.f32 %v1596, %v1684
      %v1686 = vpop.f32.mrf.mxu0
      %v1687 = vadd.f32 %v1598, %v1686
      %1688 = vmatmul.bf16.gmra.mxu0 %v861
      %v1689 = vpop.f32.mrf.mxu0
      %v1690 = vadd.f32 %v1601, %v1689
      %v1691 = vpop.f32.mrf.mxu0
      %v1692 = vadd.f32 %v1603, %v1691
      %1693 = vmatmul.bf16.gmra.mxu0 %v864
      %v1694 = vpop.f32.mrf.mxu0
      %v1695 = vadd.f32 %v1606, %v1694
      %v1696 = vpop.f32.mrf.mxu0
      %v1697 = vadd.f32 %v1608, %v1696
      %1698 = vmatmul.bf16.gmra.mxu0 %v867
      %v1699 = vpop.f32.mrf.mxu0
      %v1700 = vadd.f32 %v1611, %v1699
      %v1701 = vpop.f32.mrf.mxu0
      %v1702 = vadd.f32 %v1613, %v1701
      %1703 = vmatmul.bf16.gmra.mxu0 %v870
      %v1704 = vpop.f32.mrf.mxu0
      %v1705 = vadd.f32 %v1616, %v1704
      %v1706 = vpop.f32.mrf.mxu0
      %v1707 = vadd.f32 %v1618, %v1706
      %1708 = vmatmul.bf16.gmra.mxu0 %v873
      %v1709 = vpop.f32.mrf.mxu0
      %v1710 = vadd.f32 %v1621, %v1709
      %v1711 = vpop.f32.mrf.mxu0
      %v1712 = vadd.f32 %v1623, %v1711
      %1713 = vmatmul.bf16.gmra.mxu0 %v876
      %v1714 = vpop.f32.mrf.mxu0
      %v1715 = vadd.f32 %v1626, %v1714
      %v1716 = vpop.f32.mrf.mxu0
      %v1717 = vadd.f32 %v1628, %v1716
      %1718 = vmatmul.bf16.gmra.mxu0 %v879
      %v1719 = vpop.f32.mrf.mxu0
      %v1720 = vadd.f32 %v1631, %v1719
      %v1721 = vpop.f32.mrf.mxu0
      %v1722 = vadd.f32 %v1633, %v1721
      %1723 = vmatmul.bf16.gmra.mxu0 %v882
      %v1724 = vpop.f32.mrf.mxu0
      %v1725 = vadd.f32 %v1636, %v1724
      %v1726 = vpop.f32.mrf.mxu0
      %v1727 = vadd.f32 %v1638, %v1726
      %1728 = vmatmul.bf16.gmra.mxu0 %v885
      %v1729 = vpop.f32.mrf.mxu0
      %v1730 = vadd.f32 %v1641, %v1729
      %v1731 = vpop.f32.mrf.mxu0
      %v1732 = vadd.f32 %v1643, %v1731
      %1733 = vmatmul.bf16.gmra.mxu0 %v888
      %v1734 = vpop.f32.mrf.mxu0
      %v1735 = vadd.f32 %v1646, %v1734
      %v1736 = vpop.f32.mrf.mxu0
      %v1737 = vadd.f32 %v1648, %v1736
      %1738 = vdwg.mxu0
      %1739 = vmatpush.bf16.msra.mxu0 %v1359
      %1740 = vmatpush.bf16.msra.mxu0 %v1358
      %1741 = vmatpush.bf16.msra.mxu0 %v1357
      %1742 = vmatpush.bf16.msra.mxu0 %v1356
      %1743 = vmatpush.bf16.msra.mxu0 %v1355
      %1744 = vmatpush.bf16.msra.mxu0 %v1354
      %1745 = vmatpush.bf16.msra.mxu0 %v1353
      %1746 = vmatpush.bf16.msra.mxu0 %v1352
      %1747 = vmatmul.bf16.gmra.mxu0 %v844
      %v1748 = vpop.f32.mrf.mxu0
      %v1749 = vadd.f32 %v1660, %v1748
      %v1750 = vpop.f32.mrf.mxu0
      %v1751 = vadd.f32 %v1662, %v1750
      %1752 = vmatmul.bf16.gmra.mxu0 %v847
      %v1753 = vpop.f32.mrf.mxu0
      %v1754 = vadd.f32 %v1665, %v1753
      %v1755 = vpop.f32.mrf.mxu0
      %v1756 = vadd.f32 %v1667, %v1755
      %1757 = vmatmul.bf16.gmra.mxu0 %v850
      %v1758 = vpop.f32.mrf.mxu0
      %v1759 = vadd.f32 %v1670, %v1758
      %v1760 = vpop.f32.mrf.mxu0
      %v1761 = vadd.f32 %v1672, %v1760
      %1762 = vmatmul.bf16.gmra.mxu0 %v853
      %v1763 = vpop.f32.mrf.mxu0
      %v1764 = vadd.f32 %v1675, %v1763
      %v1765 = vpop.f32.mrf.mxu0
      %v1766 = vadd.f32 %v1677, %v1765
      %1767 = vmatmul.bf16.gmra.mxu0 %v856
      %v1768 = vpop.f32.mrf.mxu0
      %v1769 = vadd.f32 %v1680, %v1768
      %v1770 = vpop.f32.mrf.mxu0
      %v1771 = vadd.f32 %v1682, %v1770
      %1772 = vmatmul.bf16.gmra.mxu0 %v859
      %v1773 = vpop.f32.mrf.mxu0
      %v1774 = vadd.f32 %v1685, %v1773
      %v1775 = vpop.f32.mrf.mxu0
      %v1776 = vadd.f32 %v1687, %v1775
      %1777 = vmatmul.bf16.gmra.mxu0 %v862
      %v1778 = vpop.f32.mrf.mxu0
      %v1779 = vadd.f32 %v1690, %v1778
      %v1780 = vpop.f32.mrf.mxu0
      %v1781 = vadd.f32 %v1692, %v1780
      %1782 = vmatmul.bf16.gmra.mxu0 %v865
      %v1783 = vpop.f32.mrf.mxu0
      %v1784 = vadd.f32 %v1695, %v1783
      %v1785 = vpop.f32.mrf.mxu0
      %v1786 = vadd.f32 %v1697, %v1785
      %1787 = vmatmul.bf16.gmra.mxu0 %v868
      %v1788 = vpop.f32.mrf.mxu0
      %v1789 = vadd.f32 %v1700, %v1788
      %v1790 = vpop.f32.mrf.mxu0
      %v1791 = vadd.f32 %v1702, %v1790
      %1792 = vmatmul.bf16.gmra.mxu0 %v871
      %v1793 = vpop.f32.mrf.mxu0
      %v1794 = vadd.f32 %v1705, %v1793
      %v1795 = vpop.f32.mrf.mxu0
      %v1796 = vadd.f32 %v1707, %v1795
      %1797 = vmatmul.bf16.gmra.mxu0 %v874
      %v1798 = vpop.f32.mrf.mxu0
      %v1799 = vadd.f32 %v1710, %v1798
      %v1800 = vpop.f32.mrf.mxu0
      %v1801 = vadd.f32 %v1712, %v1800
      %1802 = vmatmul.bf16.gmra.mxu0 %v877
      %v1803 = vpop.f32.mrf.mxu0
      %v1804 = vadd.f32 %v1715, %v1803
      %v1805 = vpop.f32.mrf.mxu0
      %v1806 = vadd.f32 %v1717, %v1805
      %1807 = vmatmul.bf16.gmra.mxu0 %v880
      %v1808 = vpop.f32.mrf.mxu0
      %v1809 = vadd.f32 %v1720, %v1808
      %v1810 = vpop.f32.mrf.mxu0
      %v1811 = vadd.f32 %v1722, %v1810
      %1812 = vmatmul.bf16.gmra.mxu0 %v883
      %v1813 = vpop.f32.mrf.mxu0
      %v1814 = vadd.f32 %v1725, %v1813
      %v1815 = vpop.f32.mrf.mxu0
      %v1816 = vadd.f32 %v1727, %v1815
      %1817 = vmatmul.bf16.gmra.mxu0 %v886
      %v1818 = vpop.f32.mrf.mxu0
      %v1819 = vadd.f32 %v1730, %v1818
      %v1820 = vpop.f32.mrf.mxu0
      %v1821 = vadd.f32 %v1732, %v1820
      %1822 = vmatmul.bf16.gmra.mxu0 %v889
      %v1823 = vpop.f32.mrf.mxu0
      %v1824 = vadd.f32 %v1735, %v1823
      %v1825 = vpop.f32.mrf.mxu0
      %v1826 = vadd.f32 %v1737, %v1825
      %1827 = vdwg.mxu0
      %1828 = vmatpush.bf16.msra.mxu0 %v1367
      %1829 = vmatpush.bf16.msra.mxu0 %v1366
      %1830 = vmatpush.bf16.msra.mxu0 %v1365
      %1831 = vmatpush.bf16.msra.mxu0 %v1364
      %1832 = vmatpush.bf16.msra.mxu0 %v1363
      %1833 = vmatpush.bf16.msra.mxu0 %v1362
      %1834 = vmatpush.bf16.msra.mxu0 %v1361
      %1835 = vmatpush.bf16.msra.mxu0 %v1360
      %1836 = vmatmul.bf16.gmra.mxu0 %v845
      %v1837 = vpop.f32.mrf.mxu0
      %v1838 = vadd.f32 %v1749, %v1837
      %v1839 = vpop.f32.mrf.mxu0
      %v1840 = vadd.f32 %v1751, %v1839
      %1841 = vmatmul.bf16.gmra.mxu0 %v848
      %v1842 = vpop.f32.mrf.mxu0
      %v1843 = vadd.f32 %v1754, %v1842
      %v1844 = vpop.f32.mrf.mxu0
      %v1845 = vadd.f32 %v1756, %v1844
      %1846 = vmatmul.bf16.gmra.mxu0 %v851
      %v1847 = vpop.f32.mrf.mxu0
      %v1848 = vadd.f32 %v1759, %v1847
      %v1849 = vpop.f32.mrf.mxu0
      %v1850 = vadd.f32 %v1761, %v1849
      %1851 = vmatmul.bf16.gmra.mxu0 %v854
      %v1852 = vpop.f32.mrf.mxu0
      %v1853 = vadd.f32 %v1764, %v1852
      %v1854 = vpop.f32.mrf.mxu0
      %v1855 = vadd.f32 %v1766, %v1854
      %1856 = vmatmul.bf16.gmra.mxu0 %v857
      %v1857 = vpop.f32.mrf.mxu0
      %v1858 = vadd.f32 %v1769, %v1857
      %v1859 = vpop.f32.mrf.mxu0
      %v1860 = vadd.f32 %v1771, %v1859
      %1861 = vmatmul.bf16.gmra.mxu0 %v860
      %v1862 = vpop.f32.mrf.mxu0
      %v1863 = vadd.f32 %v1774, %v1862
      %v1864 = vpop.f32.mrf.mxu0
      %v1865 = vadd.f32 %v1776, %v1864
      %1866 = vmatmul.bf16.gmra.mxu0 %v863
      %v1867 = vpop.f32.mrf.mxu0
      %v1868 = vadd.f32 %v1779, %v1867
      %v1869 = vpop.f32.mrf.mxu0
      %v1870 = vadd.f32 %v1781, %v1869
      %1871 = vmatmul.bf16.gmra.mxu0 %v866
      %v1872 = vpop.f32.mrf.mxu0
      %v1873 = vadd.f32 %v1784, %v1872
      %v1874 = vpop.f32.mrf.mxu0
      %v1875 = vadd.f32 %v1786, %v1874
      %1876 = vmatmul.bf16.gmra.mxu0 %v869
      %v1877 = vpop.f32.mrf.mxu0
      %v1878 = vadd.f32 %v1789, %v1877
      %v1879 = vpop.f32.mrf.mxu0
      %v1880 = vadd.f32 %v1791, %v1879
      %1881 = vmatmul.bf16.gmra.mxu0 %v872
      %v1882 = vpop.f32.mrf.mxu0
      %v1883 = vadd.f32 %v1794, %v1882
      %v1884 = vpop.f32.mrf.mxu0
      %v1885 = vadd.f32 %v1796, %v1884
      %1886 = vmatmul.bf16.gmra.mxu0 %v875
      %v1887 = vpop.f32.mrf.mxu0
      %v1888 = vadd.f32 %v1799, %v1887
      %v1889 = vpop.f32.mrf.mxu0
      %v1890 = vadd.f32 %v1801, %v1889
      %1891 = vmatmul.bf16.gmra.mxu0 %v878
      %v1892 = vpop.f32.mrf.mxu0
      %v1893 = vadd.f32 %v1804, %v1892
      %v1894 = vpop.f32.mrf.mxu0
      %v1895 = vadd.f32 %v1806, %v1894
      %1896 = vmatmul.bf16.gmra.mxu0 %v881
      %v1897 = vpop.f32.mrf.mxu0
      %v1898 = vadd.f32 %v1809, %v1897
      %v1899 = vpop.f32.mrf.mxu0
      %v1900 = vadd.f32 %v1811, %v1899
      %1901 = vmatmul.bf16.gmra.mxu0 %v884
      %v1902 = vpop.f32.mrf.mxu0
      %v1903 = vadd.f32 %v1814, %v1902
      %v1904 = vpop.f32.mrf.mxu0
      %v1905 = vadd.f32 %v1816, %v1904
      %1906 = vmatmul.bf16.gmra.mxu0 %v887
      %v1907 = vpop.f32.mrf.mxu0
      %v1908 = vadd.f32 %v1819, %v1907
      %v1909 = vpop.f32.mrf.mxu0
      %v1910 = vadd.f32 %v1821, %v1909
      %1911 = vmatmul.bf16.gmra.mxu0 %v890
      %v1912 = vpop.f32.mrf.mxu0
      %v1913 = vadd.f32 %v1824, %v1912
      %v1914 = vpop.f32.mrf.mxu0
      %v1915 = vadd.f32 %v1826, %v1914
      %1916 = vdwg.mxu0
      %1917 = vmatpush.bf16.msra.mxu0 %v1375
      %1918 = vmatpush.bf16.msra.mxu0 %v1374
      %1919 = vmatpush.bf16.msra.mxu0 %v1373
      %1920 = vmatpush.bf16.msra.mxu0 %v1372
      %1921 = vmatpush.bf16.msra.mxu0 %v1371
      %1922 = vmatpush.bf16.msra.mxu0 %v1370
      %1923 = vmatpush.bf16.msra.mxu0 %v1369
      %1924 = vmatpush.bf16.msra.mxu0 %v1368
      %1925 = vmatmul.bf16.gmra.mxu0 %v846
      %v1926 = vpop.f32.mrf.mxu0
      %v1927 = vadd.f32 %v1838, %v1926
      %v1928 = vpop.f32.mrf.mxu0
      %v1929 = vadd.f32 %v1840, %v1928
      %1930 = vmatmul.bf16.gmra.mxu0 %v849
      %v1931 = vpop.f32.mrf.mxu0
      %v1932 = vadd.f32 %v1843, %v1931
      %v1933 = vpop.f32.mrf.mxu0
      %v1934 = vadd.f32 %v1845, %v1933
      %1935 = vmatmul.bf16.gmra.mxu0 %v852
      %v1936 = vpop.f32.mrf.mxu0
      %v1937 = vadd.f32 %v1848, %v1936
      %v1938 = vpop.f32.mrf.mxu0
      %v1939 = vadd.f32 %v1850, %v1938
      %1940 = vmatmul.bf16.gmra.mxu0 %v855
      %v1941 = vpop.f32.mrf.mxu0
      %v1942 = vadd.f32 %v1853, %v1941
      %v1943 = vpop.f32.mrf.mxu0
      %v1944 = vadd.f32 %v1855, %v1943
      %1945 = vmatmul.bf16.gmra.mxu0 %v858
      %v1946 = vpop.f32.mrf.mxu0
      %v1947 = vadd.f32 %v1858, %v1946
      %v1948 = vpop.f32.mrf.mxu0
      %v1949 = vadd.f32 %v1860, %v1948
      %1950 = vmatmul.bf16.gmra.mxu0 %v861
      %v1951 = vpop.f32.mrf.mxu0
      %v1952 = vadd.f32 %v1863, %v1951
      %v1953 = vpop.f32.mrf.mxu0
      %v1954 = vadd.f32 %v1865, %v1953
      %1955 = vmatmul.bf16.gmra.mxu0 %v864
      %v1956 = vpop.f32.mrf.mxu0
      %v1957 = vadd.f32 %v1868, %v1956
      %v1958 = vpop.f32.mrf.mxu0
      %v1959 = vadd.f32 %v1870, %v1958
      %1960 = vmatmul.bf16.gmra.mxu0 %v867
      %v1961 = vpop.f32.mrf.mxu0
      %v1962 = vadd.f32 %v1873, %v1961
      %v1963 = vpop.f32.mrf.mxu0
      %v1964 = vadd.f32 %v1875, %v1963
      %1965 = vmatmul.bf16.gmra.mxu0 %v870
      %v1966 = vpop.f32.mrf.mxu0
      %v1967 = vadd.f32 %v1878, %v1966
      %v1968 = vpop.f32.mrf.mxu0
      %v1969 = vadd.f32 %v1880, %v1968
      %1970 = vmatmul.bf16.gmra.mxu0 %v873
      %v1971 = vpop.f32.mrf.mxu0
      %v1972 = vadd.f32 %v1883, %v1971
      %v1973 = vpop.f32.mrf.mxu0
      %v1974 = vadd.f32 %v1885, %v1973
      %1975 = vmatmul.bf16.gmra.mxu0 %v876
      %v1976 = vpop.f32.mrf.mxu0
      %v1977 = vadd.f32 %v1888, %v1976
      %v1978 = vpop.f32.mrf.mxu0
      %v1979 = vadd.f32 %v1890, %v1978
      %1980 = vmatmul.bf16.gmra.mxu0 %v879
      %v1981 = vpop.f32.mrf.mxu0
      %v1982 = vadd.f32 %v1893, %v1981
      %v1983 = vpop.f32.mrf.mxu0
      %v1984 = vadd.f32 %v1895, %v1983
      %1985 = vmatmul.bf16.gmra.mxu0 %v882
      %v1986 = vpop.f32.mrf.mxu0
      %v1987 = vadd.f32 %v1898, %v1986
      %v1988 = vpop.f32.mrf.mxu0
      %v1989 = vadd.f32 %v1900, %v1988
      %1990 = vmatmul.bf16.gmra.mxu0 %v885
      %v1991 = vpop.f32.mrf.mxu0
      %v1992 = vadd.f32 %v1903, %v1991
      %v1993 = vpop.f32.mrf.mxu0
      %v1994 = vadd.f32 %v1905, %v1993
      %1995 = vmatmul.bf16.gmra.mxu0 %v888
      %v1996 = vpop.f32.mrf.mxu0
      %v1997 = vadd.f32 %v1908, %v1996
      %v1998 = vpop.f32.mrf.mxu0
      %v1999 = vadd.f32 %v1910, %v1998
      %2000 = vmatmul.bf16.gmra.mxu0 %v891
      %v2001 = vpop.f32.mrf.mxu0
      %v2002 = vadd.f32 %v1913, %v2001
      %v2003 = vpop.f32.mrf.mxu0
      %v2004 = vadd.f32 %v1915, %v2003
      %2005 = vdwg.mxu0
      %2006 = vmatpush.bf16.msra.mxu0 %v1383
      %2007 = vmatpush.bf16.msra.mxu0 %v1382
      %2008 = vmatpush.bf16.msra.mxu0 %v1381
      %2009 = vmatpush.bf16.msra.mxu0 %v1380
      %2010 = vmatpush.bf16.msra.mxu0 %v1379
      %2011 = vmatpush.bf16.msra.mxu0 %v1378
      %2012 = vmatpush.bf16.msra.mxu0 %v1377
      %2013 = vmatpush.bf16.msra.mxu0 %v1376
      %2014 = vmatmul.bf16.gmra.mxu0 %v847
      %v2015 = vpop.f32.mrf.mxu0
      %v2016 = vadd.f32 %v1927, %v2015
      %v2017 = vpop.f32.mrf.mxu0
      %v2018 = vadd.f32 %v1929, %v2017
      %2019 = vmatmul.bf16.gmra.mxu0 %v850
      %v2020 = vpop.f32.mrf.mxu0
      %v2021 = vadd.f32 %v1932, %v2020
      %v2022 = vpop.f32.mrf.mxu0
      %v2023 = vadd.f32 %v1934, %v2022
      %2024 = vmatmul.bf16.gmra.mxu0 %v853
      %v2025 = vpop.f32.mrf.mxu0
      %v2026 = vadd.f32 %v1937, %v2025
      %v2027 = vpop.f32.mrf.mxu0
      %v2028 = vadd.f32 %v1939, %v2027
      %2029 = vmatmul.bf16.gmra.mxu0 %v856
      %v2030 = vpop.f32.mrf.mxu0
      %v2031 = vadd.f32 %v1942, %v2030
      %v2032 = vpop.f32.mrf.mxu0
      %v2033 = vadd.f32 %v1944, %v2032
      %2034 = vmatmul.bf16.gmra.mxu0 %v859
      %v2035 = vpop.f32.mrf.mxu0
      %v2036 = vadd.f32 %v1947, %v2035
      %v2037 = vpop.f32.mrf.mxu0
      %v2038 = vadd.f32 %v1949, %v2037
      %2039 = vmatmul.bf16.gmra.mxu0 %v862
      %v2040 = vpop.f32.mrf.mxu0
      %v2041 = vadd.f32 %v1952, %v2040
      %v2042 = vpop.f32.mrf.mxu0
      %v2043 = vadd.f32 %v1954, %v2042
      %2044 = vmatmul.bf16.gmra.mxu0 %v865
      %v2045 = vpop.f32.mrf.mxu0
      %v2046 = vadd.f32 %v1957, %v2045
      %v2047 = vpop.f32.mrf.mxu0
      %v2048 = vadd.f32 %v1959, %v2047
      %2049 = vmatmul.bf16.gmra.mxu0 %v868
      %v2050 = vpop.f32.mrf.mxu0
      %v2051 = vadd.f32 %v1962, %v2050
      %v2052 = vpop.f32.mrf.mxu0
      %v2053 = vadd.f32 %v1964, %v2052
      %2054 = vmatmul.bf16.gmra.mxu0 %v871
      %v2055 = vpop.f32.mrf.mxu0
      %v2056 = vadd.f32 %v1967, %v2055
      %v2057 = vpop.f32.mrf.mxu0
      %v2058 = vadd.f32 %v1969, %v2057
      %2059 = vmatmul.bf16.gmra.mxu0 %v874
      %v2060 = vpop.f32.mrf.mxu0
      %v2061 = vadd.f32 %v1972, %v2060
      %v2062 = vpop.f32.mrf.mxu0
      %v2063 = vadd.f32 %v1974, %v2062
      %2064 = vmatmul.bf16.gmra.mxu0 %v877
      %v2065 = vpop.f32.mrf.mxu0
      %v2066 = vadd.f32 %v1977, %v2065
      %v2067 = vpop.f32.mrf.mxu0
      %v2068 = vadd.f32 %v1979, %v2067
      %2069 = vmatmul.bf16.gmra.mxu0 %v880
      %v2070 = vpop.f32.mrf.mxu0
      %v2071 = vadd.f32 %v1982, %v2070
      %v2072 = vpop.f32.mrf.mxu0
      %v2073 = vadd.f32 %v1984, %v2072
      %2074 = vmatmul.bf16.gmra.mxu0 %v883
      %v2075 = vpop.f32.mrf.mxu0
      %v2076 = vadd.f32 %v1987, %v2075
      %v2077 = vpop.f32.mrf.mxu0
      %v2078 = vadd.f32 %v1989, %v2077
      %2079 = vmatmul.bf16.gmra.mxu0 %v886
      %v2080 = vpop.f32.mrf.mxu0
      %v2081 = vadd.f32 %v1992, %v2080
      %v2082 = vpop.f32.mrf.mxu0
      %v2083 = vadd.f32 %v1994, %v2082
      %2084 = vmatmul.bf16.gmra.mxu0 %v889
      %v2085 = vpop.f32.mrf.mxu0
      %v2086 = vadd.f32 %v1997, %v2085
      %v2087 = vpop.f32.mrf.mxu0
      %v2088 = vadd.f32 %v1999, %v2087
      %2089 = vmatmul.bf16.gmra.mxu0 %v841
      %v2090 = vpop.f32.mrf.mxu0
      %v2091 = vadd.f32 %v2002, %v2090
      %v2092 = vpop.f32.mrf.mxu0
      %v2093 = vadd.f32 %v2004, %v2092
      %2094 = vdwg.mxu0
      %2095 = vmatpush.bf16.msra.mxu0 %v1391
      %2096 = vmatpush.bf16.msra.mxu0 %v1390
      %2097 = vmatpush.bf16.msra.mxu0 %v1389
      %2098 = vmatpush.bf16.msra.mxu0 %v1388
      %2099 = vmatpush.bf16.msra.mxu0 %v1387
      %2100 = vmatpush.bf16.msra.mxu0 %v1386
      %2101 = vmatpush.bf16.msra.mxu0 %v1385
      %2102 = vmatpush.bf16.msra.mxu0 %v1384
      %2103 = vmatmul.bf16.gmra.mxu0 %v848
      %v2104 = vpop.f32.mrf.mxu0
      %v2105 = vadd.f32 %v2016, %v2104
      %v2106 = vpop.f32.mrf.mxu0
      %v2107 = vadd.f32 %v2018, %v2106
      %2108 = vmatmul.bf16.gmra.mxu0 %v851
      %v2109 = vpop.f32.mrf.mxu0
      %v2110 = vadd.f32 %v2021, %v2109
      %v2111 = vpop.f32.mrf.mxu0
      %v2112 = vadd.f32 %v2023, %v2111
      %2113 = vmatmul.bf16.gmra.mxu0 %v854
      %v2114 = vpop.f32.mrf.mxu0
      %v2115 = vadd.f32 %v2026, %v2114
      %v2116 = vpop.f32.mrf.mxu0
      %v2117 = vadd.f32 %v2028, %v2116
      %2118 = vmatmul.bf16.gmra.mxu0 %v857
      %v2119 = vpop.f32.mrf.mxu0
      %v2120 = vadd.f32 %v2031, %v2119
      %v2121 = vpop.f32.mrf.mxu0
      %v2122 = vadd.f32 %v2033, %v2121
      %2123 = vmatmul.bf16.gmra.mxu0 %v860
      %v2124 = vpop.f32.mrf.mxu0
      %v2125 = vadd.f32 %v2036, %v2124
      %v2126 = vpop.f32.mrf.mxu0
      %v2127 = vadd.f32 %v2038, %v2126
      %2128 = vmatmul.bf16.gmra.mxu0 %v863
      %v2129 = vpop.f32.mrf.mxu0
      %v2130 = vadd.f32 %v2041, %v2129
      %v2131 = vpop.f32.mrf.mxu0
      %v2132 = vadd.f32 %v2043, %v2131
      %2133 = vmatmul.bf16.gmra.mxu0 %v866
      %v2134 = vpop.f32.mrf.mxu0
      %v2135 = vadd.f32 %v2046, %v2134
      %v2136 = vpop.f32.mrf.mxu0
      %v2137 = vadd.f32 %v2048, %v2136
      %2138 = vmatmul.bf16.gmra.mxu0 %v869
      %v2139 = vpop.f32.mrf.mxu0
      %v2140 = vadd.f32 %v2051, %v2139
      %v2141 = vpop.f32.mrf.mxu0
      %v2142 = vadd.f32 %v2053, %v2141
      %2143 = vmatmul.bf16.gmra.mxu0 %v872
      %v2144 = vpop.f32.mrf.mxu0
      %v2145 = vadd.f32 %v2056, %v2144
      %v2146 = vpop.f32.mrf.mxu0
      %v2147 = vadd.f32 %v2058, %v2146
      %2148 = vmatmul.bf16.gmra.mxu0 %v875
      %v2149 = vpop.f32.mrf.mxu0
      %v2150 = vadd.f32 %v2061, %v2149
      %v2151 = vpop.f32.mrf.mxu0
      %v2152 = vadd.f32 %v2063, %v2151
      %2153 = vmatmul.bf16.gmra.mxu0 %v878
      %v2154 = vpop.f32.mrf.mxu0
      %v2155 = vadd.f32 %v2066, %v2154
      %v2156 = vpop.f32.mrf.mxu0
      %v2157 = vadd.f32 %v2068, %v2156
      %2158 = vmatmul.bf16.gmra.mxu0 %v881
      %v2159 = vpop.f32.mrf.mxu0
      %v2160 = vadd.f32 %v2071, %v2159
      %v2161 = vpop.f32.mrf.mxu0
      %v2162 = vadd.f32 %v2073, %v2161
      %2163 = vmatmul.bf16.gmra.mxu0 %v884
      %v2164 = vpop.f32.mrf.mxu0
      %v2165 = vadd.f32 %v2076, %v2164
      %v2166 = vpop.f32.mrf.mxu0
      %v2167 = vadd.f32 %v2078, %v2166
      %2168 = vmatmul.bf16.gmra.mxu0 %v887
      %v2169 = vpop.f32.mrf.mxu0
      %v2170 = vadd.f32 %v2081, %v2169
      %v2171 = vpop.f32.mrf.mxu0
      %v2172 = vadd.f32 %v2083, %v2171
      %2173 = vmatmul.bf16.gmra.mxu0 %v890
      %v2174 = vpop.f32.mrf.mxu0
      %v2175 = vadd.f32 %v2086, %v2174
      %v2176 = vpop.f32.mrf.mxu0
      %v2177 = vadd.f32 %v2088, %v2176
      %2178 = vmatmul.bf16.gmra.mxu0 %v842
      %v2179 = vpop.f32.mrf.mxu0
      %v2180 = vadd.f32 %v2091, %v2179
      %v2181 = vpop.f32.mrf.mxu0
      %v2182 = vadd.f32 %v2093, %v2181
      %2183 = vdwg.mxu0
      %2184 = vmatpush.bf16.msra.mxu0 %v1399
      %2185 = vmatpush.bf16.msra.mxu0 %v1398
      %2186 = vmatpush.bf16.msra.mxu0 %v1397
      %2187 = vmatpush.bf16.msra.mxu0 %v1396
      %2188 = vmatpush.bf16.msra.mxu0 %v1395
      %2189 = vmatpush.bf16.msra.mxu0 %v1394
      %2190 = vmatpush.bf16.msra.mxu0 %v1393
      %2191 = vmatpush.bf16.msra.mxu0 %v1392
      %2192 = vmatmul.bf16.gmra.mxu0 %v849
      %v2193 = vpop.f32.mrf.mxu0
      %v2194 = vadd.f32 %v2105, %v2193
      %v2195 = vpop.f32.mrf.mxu0
      %v2196 = vadd.f32 %v2107, %v2195
      %2197 = vmatmul.bf16.gmra.mxu0 %v852
      %v2198 = vpop.f32.mrf.mxu0
      %v2199 = vadd.f32 %v2110, %v2198
      %v2200 = vpop.f32.mrf.mxu0
      %v2201 = vadd.f32 %v2112, %v2200
      %2202 = vmatmul.bf16.gmra.mxu0 %v855
      %v2203 = vpop.f32.mrf.mxu0
      %v2204 = vadd.f32 %v2115, %v2203
      %v2205 = vpop.f32.mrf.mxu0
      %v2206 = vadd.f32 %v2117, %v2205
      %2207 = vmatmul.bf16.gmra.mxu0 %v858
      %v2208 = vpop.f32.mrf.mxu0
      %v2209 = vadd.f32 %v2120, %v2208
      %v2210 = vpop.f32.mrf.mxu0
      %v2211 = vadd.f32 %v2122, %v2210
      %2212 = vmatmul.bf16.gmra.mxu0 %v861
      %v2213 = vpop.f32.mrf.mxu0
      %v2214 = vadd.f32 %v2125, %v2213
      %v2215 = vpop.f32.mrf.mxu0
      %v2216 = vadd.f32 %v2127, %v2215
      %2217 = vmatmul.bf16.gmra.mxu0 %v864
      %v2218 = vpop.f32.mrf.mxu0
      %v2219 = vadd.f32 %v2130, %v2218
      %v2220 = vpop.f32.mrf.mxu0
      %v2221 = vadd.f32 %v2132, %v2220
      %2222 = vmatmul.bf16.gmra.mxu0 %v867
      %v2223 = vpop.f32.mrf.mxu0
      %v2224 = vadd.f32 %v2135, %v2223
      %v2225 = vpop.f32.mrf.mxu0
      %v2226 = vadd.f32 %v2137, %v2225
      %2227 = vmatmul.bf16.gmra.mxu0 %v870
      %v2228 = vpop.f32.mrf.mxu0
      %v2229 = vadd.f32 %v2140, %v2228
      %v2230 = vpop.f32.mrf.mxu0
      %v2231 = vadd.f32 %v2142, %v2230
      %2232 = vmatmul.bf16.gmra.mxu0 %v873
      %v2233 = vpop.f32.mrf.mxu0
      %v2234 = vadd.f32 %v2145, %v2233
      %v2235 = vpop.f32.mrf.mxu0
      %v2236 = vadd.f32 %v2147, %v2235
      %2237 = vmatmul.bf16.gmra.mxu0 %v876
      %v2238 = vpop.f32.mrf.mxu0
      %v2239 = vadd.f32 %v2150, %v2238
      %v2240 = vpop.f32.mrf.mxu0
      %v2241 = vadd.f32 %v2152, %v2240
      %2242 = vmatmul.bf16.gmra.mxu0 %v879
      %v2243 = vpop.f32.mrf.mxu0
      %v2244 = vadd.f32 %v2155, %v2243
      %v2245 = vpop.f32.mrf.mxu0
      %v2246 = vadd.f32 %v2157, %v2245
      %2247 = vmatmul.bf16.gmra.mxu0 %v882
      %v2248 = vpop.f32.mrf.mxu0
      %v2249 = vadd.f32 %v2160, %v2248
      %v2250 = vpop.f32.mrf.mxu0
      %v2251 = vadd.f32 %v2162, %v2250
      %2252 = vmatmul.bf16.gmra.mxu0 %v885
      %v2253 = vpop.f32.mrf.mxu0
      %v2254 = vadd.f32 %v2165, %v2253
      %v2255 = vpop.f32.mrf.mxu0
      %v2256 = vadd.f32 %v2167, %v2255
      %2257 = vmatmul.bf16.gmra.mxu0 %v888
      %v2258 = vpop.f32.mrf.mxu0
      %v2259 = vadd.f32 %v2170, %v2258
      %v2260 = vpop.f32.mrf.mxu0
      %v2261 = vadd.f32 %v2172, %v2260
      %2262 = vmatmul.bf16.gmra.mxu0 %v891
      %v2263 = vpop.f32.mrf.mxu0
      %v2264 = vadd.f32 %v2175, %v2263
      %v2265 = vpop.f32.mrf.mxu0
      %v2266 = vadd.f32 %v2177, %v2265
      %2267 = vmatmul.bf16.gmra.mxu0 %v843
      %v2268 = vpop.f32.mrf.mxu0
      %v2269 = vadd.f32 %v2180, %v2268
      %v2270 = vpop.f32.mrf.mxu0
      %v2271 = vadd.f32 %v2182, %v2270
      %2272 = vdwg.mxu0
      %2273 = vst [vmem:[%s258] sm:$0xff] %v2194
      %2274 = vst [vmem:[%s258 + $0x8] sm:$0xff] %v2196
      %2275 = vst [vmem:[%s258 + $0x10] sm:$0xff] %v2199
      %2276 = vst [vmem:[%s258 + $0x18] sm:$0xff] %v2201
      %2277 = vst [vmem:[%s258 + $0x20] sm:$0xff] %v2204
      %2278 = vst [vmem:[%s258 + $0x28] sm:$0xff] %v2206
      %2279 = vst [vmem:[%s258 + $0x30] sm:$0xff] %v2209
      %2280 = vst [vmem:[%s258 + $0x38] sm:$0xff] %v2211
      %2281 = vst [vmem:[%s258 + $0x40] sm:$0xff] %v2214
      %2282 = vst [vmem:[%s258 + $0x48] sm:$0xff] %v2216
      %2283 = vst [vmem:[%s258 + $0x50] sm:$0xff] %v2219
      %2284 = vst [vmem:[%s258 + $0x58] sm:$0xff] %v2221
      %2285 = vst [vmem:[%s258 + $0x60] sm:$0xff] %v2224
      %2286 = vst [vmem:[%s258 + $0x68] sm:$0xff] %v2226
      %2287 = vst [vmem:[%s258 + $0x70] sm:$0xff] %v2229
      %2288 = vst [vmem:[%s258 + $0x78] sm:$0xff] %v2231
      %2289 = vst [vmem:[%s258 + $0x80] sm:$0xff] %v2234
      %2290 = vst [vmem:[%s258 + $0x88] sm:$0xff] %v2236
      %2291 = vst [vmem:[%s258 + $0x90] sm:$0xff] %v2239
      %2292 = vst [vmem:[%s258 + $0x98] sm:$0xff] %v2241
      %2293 = vst [vmem:[%s258 + $0xa0] sm:$0xff] %v2244
      %2294 = vst [vmem:[%s258 + $0xa8] sm:$0xff] %v2246
      %2295 = vst [vmem:[%s258 + $0xb0] sm:$0xff] %v2249
      %2296 = vst [vmem:[%s258 + $0xb8] sm:$0xff] %v2251
      %2297 = vst [vmem:[%s258 + $0xc0] sm:$0xff] %v2254
      %2298 = vst [vmem:[%s258 + $0xc8] sm:$0xff] %v2256
      %2299 = vst [vmem:[%s258 + $0xd0] sm:$0xff] %v2259
      %2300 = vst [vmem:[%s258 + $0xd8] sm:$0xff] %v2261
      %2301 = vst [vmem:[%s258 + $0xe0] sm:$0xff] %v2264
      %2302 = vst [vmem:[%s258 + $0xe8] sm:$0xff] %v2266
      %2303 = vst [vmem:[%s258 + $0xf0] sm:$0xff] %v2269
      %2304 = vst [vmem:[%s258 + $0xf8] sm:$0xff] %v2271
      %v2305 = vadd.f32 %v2194, %v2196
      %v2306 = vadd.f32 %v2305, %v2199
      %v2307 = vadd.f32 %v2306, %v2201
      %v2308 = vadd.f32 %v2307, %v2204
      %v2309 = vadd.f32 %v2308, %v2206
      %v2310 = vadd.f32 %v2309, %v2209
      %v2311 = vadd.f32 %v2310, %v2211
      %v2312 = vadd.f32 %v2311, %v2214
      %v2313 = vadd.f32 %v2312, %v2216
      %v2314 = vadd.f32 %v2313, %v2219
      %v2315 = vadd.f32 %v2314, %v2221
      %v2316 = vadd.f32 %v2315, %v2224
      %v2317 = vadd.f32 %v2316, %v2226
      %v2318 = vadd.f32 %v2317, %v2229
      %v2319 = vadd.f32 %v2318, %v2231
      %v2320 = vadd.f32 %v2319, %v2234
      %v2321 = vadd.f32 %v2320, %v2236
      %v2322 = vadd.f32 %v2321, %v2239
      %v2323 = vadd.f32 %v2322, %v2241
      %v2324 = vadd.f32 %v2323, %v2244
      %v2325 = vadd.f32 %v2324, %v2246
      %v2326 = vadd.f32 %v2325, %v2249
      %v2327 = vadd.f32 %v2326, %v2251
      %v2328 = vadd.f32 %v2327, %v2254
      %v2329 = vadd.f32 %v2328, %v2256
      %v2330 = vadd.f32 %v2329, %v2259
      %v2331 = vadd.f32 %v2330, %v2261
      %v2332 = vadd.f32 %v2331, %v2264
      %v2333 = vadd.f32 %v2332, %v2266
      %v2334 = vadd.f32 %v2333, %v2269
      %v2335 = vadd.f32 %v2334, %v2271
      %v2336 = vrot.slane %v2335, 4
      %v2337 = vadd.f32 %v2335, %v2336
      %v2338 = vrot.slane %v2337, 2
      %v2339 = vadd.f32 %v2337, %v2338
      %v2340 = vrot.slane %v2339, 1
      %v2341 = vadd.f32 %v2339, %v2340
      %v2342 = vmul.f32 %v2194, %v2194
      %v2343 = vmul.f32 %v2196, %v2196
      %v2344 = vmul.f32 %v2199, %v2199
      %v2345 = vmul.f32 %v2201, %v2201
      %v2346 = vmul.f32 %v2204, %v2204
      %v2347 = vmul.f32 %v2206, %v2206
      %v2348 = vmul.f32 %v2209, %v2209
      %v2349 = vmul.f32 %v2211, %v2211
      %v2350 = vmul.f32 %v2214, %v2214
      %v2351 = vmul.f32 %v2216, %v2216
      %v2352 = vmul.f32 %v2219, %v2219
      %v2353 = vmul.f32 %v2221, %v2221
      %v2354 = vmul.f32 %v2224, %v2224
      %v2355 = vmul.f32 %v2226, %v2226
      %v2356 = vmul.f32 %v2229, %v2229
      %v2357 = vmul.f32 %v2231, %v2231
      %v2358 = vmul.f32 %v2234, %v2234
      %v2359 = vmul.f32 %v2236, %v2236
      %v2360 = vmul.f32 %v2239, %v2239
      %v2361 = vmul.f32 %v2241, %v2241
      %v2362 = vmul.f32 %v2244, %v2244
      %v2363 = vmul.f32 %v2246, %v2246
      %v2364 = vmul.f32 %v2249, %v2249
      %v2365 = vmul.f32 %v2251, %v2251
      %v2366 = vmul.f32 %v2254, %v2254
      %v2367 = vmul.f32 %v2256, %v2256
      %v2368 = vmul.f32 %v2259, %v2259
      %v2369 = vmul.f32 %v2261, %v2261
      %v2370 = vmul.f32 %v2264, %v2264
      %v2371 = vmul.f32 %v2266, %v2266
      %v2372 = vmul.f32 %v2269, %v2269
      %v2373 = vmul.f32 %v2271, %v2271
      %v2374 = vadd.f32 %v2342, %v2343
      %v2375 = vadd.f32 %v2374, %v2344
      %v2376 = vadd.f32 %v2375, %v2345
      %v2377 = vadd.f32 %v2376, %v2346
      %v2378 = vadd.f32 %v2377, %v2347
      %v2379 = vadd.f32 %v2378, %v2348
      %v2380 = vadd.f32 %v2379, %v2349
      %v2381 = vadd.f32 %v2380, %v2350
      %v2382 = vadd.f32 %v2381, %v2351
      %v2383 = vadd.f32 %v2382, %v2352
      %v2384 = vadd.f32 %v2383, %v2353
      %v2385 = vadd.f32 %v2384, %v2354
      %v2386 = vadd.f32 %v2385, %v2355
      %v2387 = vadd.f32 %v2386, %v2356
      %v2388 = vadd.f32 %v2387, %v2357
      %v2389 = vadd.f32 %v2388, %v2358
      %v2390 = vadd.f32 %v2389, %v2359
      %v2391 = vadd.f32 %v2390, %v2360
      %v2392 = vadd.f32 %v2391, %v2361
      %v2393 = vadd.f32 %v2392, %v2362
      %v2394 = vadd.f32 %v2393, %v2363
      %v2395 = vadd.f32 %v2394, %v2364
      %v2396 = vadd.f32 %v2395, %v2365
      %v2397 = vadd.f32 %v2396, %v2366
      %v2398 = vadd.f32 %v2397, %v2367
      %v2399 = vadd.f32 %v2398, %v2368
      %v2400 = vadd.f32 %v2399, %v2369
      %v2401 = vadd.f32 %v2400, %v2370
      %v2402 = vadd.f32 %v2401, %v2371
      %v2403 = vadd.f32 %v2402, %v2372
      %v2404 = vadd.f32 %v2403, %v2373
      %v2405 = vrot.slane %v2404, 4
      %v2406 = vadd.f32 %v2404, %v2405
      %v2407 = vrot.slane %v2406, 2
      %v2408 = vadd.f32 %v2406, %v2407
      %v2409 = vrot.slane %v2408, 1
      %v2410 = vadd.f32 %v2408, %v2409
      %v2411 = vsel %vm432, %v2341, %v2410
      %2412 = vst [vmem:[%s262] sm:$0x3] %v2411
      %p2413 = scmp.lt.s32.totalorder %s18, 1
      %s2414 = scalar_select %p2413, %s18, 1
      %s2415 = smul.addr %s2414, 32
      %s2416 = smul.addr %s2415, 8
      %s2417 = scalar_lea.vmem %s5, %s2416
      %p2418 = scmp.lt.s32.totalorder %s18, 1
      %s2419 = scalar_select %p2418, %s18, 1
      %s2420 = smul.addr %s2419, 2
      %s2421 = scalar_lea.vmem %s6, %s2420
      // Predicated region
      $region41: #{seg_head.4} parent=39 // pred_check
        %p2422 = pneg %p146
      $region42: #{seg_head.4} parent=39 // pred_check_branch
        %2424 = sbr.rel (%p2422) target = $region44
      $region43: #{seg_head.4} parent=39 // pred_region
        _
      $region44: #{seg_head.4} parent=39 // pred_fallthru
        _
      // Predicated region
      $region45: #{seg_head.4} parent=39 // pred_check
        %p2425 = pneg %p172
      $region46: #{seg_head.4} parent=39 // pred_check_branch
        %2427 = sbr.rel (%p2425) target = $region48
      $region47: #{seg_head.4} parent=39 // pred_region
        _
      $region48: #{seg_head.4} parent=39 // pred_fallthru
        _
    $region40: #{seg_head.4} parent=5 // pred_fallthru
      _
    %p2428 = scmp.le.s32.totalorder 2, %s13
    // Predicated region
    $region49: #{seg_head.4} parent=5 // pred_check
      %p2429 = pneg %p2428
    $region50: #{seg_head.4} parent=5 // pred_check_branch
      %2431 = sbr.rel (%p2429) target = $region52
    $region51: #{seg_head.4} parent=5 // pred_region
      %s2432 = ssub.s32 %s13, 2
      // Predicated region
      $region53: #{seg_head.4} parent=51 // pred_check
        %p2433 = pneg %p152
      $region54: #{seg_head.4} parent=51 // pred_check_branch
        %2435 = sbr.rel (%p2433) target = $region56
      $region55: #{seg_head.4} parent=51 // pred_region
        %p2436 = scmp.lt.s32.totalorder %s19, 1
        %s2437 = scalar_select %p2436, %s19, 1
        %s2438 = smul.addr %s2437, 32
        %s2439 = smul.addr %s2438, 8
        %s2440 = scalar_lea.vmem %s5, %s2439
      $region56: #{seg_head.4} parent=51 // pred_fallthru
        _
      // Predicated region
      $region57: #{seg_head.4} parent=51 // pred_check
        %p2441 = pneg %p178
      $region58: #{seg_head.4} parent=51 // pred_check_branch
        %2443 = sbr.rel (%p2441) target = $region60
      $region59: #{seg_head.4} parent=51 // pred_region
        %p2444 = scmp.lt.s32.totalorder %s19, 1
        %s2445 = scalar_select %p2444, %s19, 1
        %s2446 = smul.addr %s2445, 2
        %s2447 = scalar_lea.vmem %s6, %s2446
      $region60: #{seg_head.4} parent=51 // pred_fallthru
        _
    $region52: #{seg_head.4} parent=5 // pred_fallthru
      _
  $region6: #{seg_head.4} parent=0 // loop_footer
    %s17 = sadd.s32 1, %s13
  $region7: #{seg_head.4} parent=0 // loop_footer_branch
    %12 = sbr.rel target = $region3
  $region8: #{seg_head.4} parent=0 // loop_exit
    _

</llo_original>
